<compile_context>
chip_gen: v6e
topology: v6e:2x2x1
jax: 0.10.0
libtpu: 0.0.40
codegen_flags: <defaults>
</compile_context>

<pallas_src>
import math
import numpy as np
import jax
import jax.numpy as jnp
from jax.experimental import pallas as pl
from jax.experimental.pallas import tpu as pltpu

# ---------------- model hyper-params (small, structure-faithful) -------------
DOCS_PER_GROUP = 2       # documents processed per grid step (8-row slab)
SEQ_LEN     = 3          # number of chunks per doc (module: self.seq_len = 3)
WINDOW      = 16         # chunk window (module: 512, shrunk)
D_MODEL     = 64         # hidden dim (module: 768, shrunk)
NUM_HEADS   = 4          # module: 12, shrunk (D_MODEL % NUM_HEADS == 0)
HEAD_DIM    = D_MODEL // NUM_HEADS
DIM_FF      = 128        # TransformerEncoderLayer default 2048, shrunk
NUM_LAYERS  = 4          # matches nn.TransformerEncoder(num_layers=4)
VOCAB       = 64
CLS_ID      = 1
MAX_LEN     = 64         # PositionalEncoding max_len (5000 in module, shrunk)
LN_EPS      = 1e-5

S1   = SEQ_LEN + 1            # [CLS] slot + chunks per document
N1   = DOCS_PER_GROUP * S1    # rows of the per-group activation slab (= 8)
NTOK = N1 * WINDOW            # flattened token rows per group (= 128)
HN   = NUM_HEADS * N1         # batched-head score width (= 32)


# ---------------- Pallas helpers ---------------------------------------------
def const_spec(shape):
    nd = len(shape)
    return pl.BlockSpec(shape, lambda g, nd=nd: (0,) * nd)


def _layer_norm(v, w, b):
    mu = jnp.mean(v, axis=-1, keepdims=True)
    var = jnp.mean((v - mu) ** 2, axis=-1, keepdims=True)
    return (v - mu) * jax.lax.rsqrt(var + LN_EPS) * w + b


# ---------------- constant helper tensors -------------------------------------
_rb = np.arange(N1) // S1
_blk = np.where(_rb[:, None] == _rb[None, :], 0.0, -1e30).astype(np.float32)
ATTN_BIAS_BD = jnp.asarray(np.tile(_blk, (1, NUM_HEADS)))          # (N1, HN)

# HEAD_MASK[h*N1 + j, c] = 1 iff channel c belongs to head h
_hm = (np.arange(HN)[:, None] // N1 ==
       np.arange(D_MODEL)[None, :] // HEAD_DIM).astype(np.float32)
HEAD_MASK = jnp.asarray(_hm)                                        # (HN, D)


# ---------------- fused forward kernel ----------------------------------------
def fused_ranker_kernel(ids_ref, pool_ref, tokproj_ref, bp_ref, pe_ref,
                        bias_ref, hmask_ref,
                        wqkv_ref, bqkv_ref, wo_ref, bo_ref,
                        ln1w_ref, ln1b_ref, w1_ref, b1_ref, w2_ref, b2_ref,
                        ln2w_ref, ln2b_ref, out_ref):
    f32, bf16 = jnp.float32, jnp.bfloat16

    # ---- stand-in chunk encoder: masked mean pool as two 2-D MXU matmuls ----
    ids = ids_ref[...]                                             # (NTOK, 1) i32
    tok_iota = jax.lax.broadcasted_iota(jnp.int32, (NTOK, VOCAB), 1)
    onehot = (ids == tok_iota).astype(f32)                         # (NTOK, V)
    counts = jnp.dot(pool_ref[...], onehot,
                     preferred_element_type=f32)                   # (N1, V) mean weights
    x = jnp.tanh(jnp.dot(counts.astype(bf16), tokproj_ref[...],
                         preferred_element_type=f32) + bp_ref[...])

    # ---- positional encoding (+ eval-mode dropout == identity) ----
    x = x + pe_ref[...]                                            # (N1, D) f32

    bias = bias_ref[...]                                           # (N1, HN)
    hm = hmask_ref[...]                                            # (HN, D)
    scale = 1.0 / math.sqrt(HEAD_DIM)

    # ---- 4-layer TransformerEncoder (post-norm, relu), fully unrolled ----
    for li in range(NUM_LAYERS):
        xb = x.astype(bf16)
        # fused QKV projection: one (N1, D) @ (D, 3D) dot
        qkv = jnp.dot(xb, wqkv_ref[li], preferred_element_type=f32) + bqkv_ref[li]
        q = qkv[:, :D_MODEL] * scale
        k = qkv[:, D_MODEL:2 * D_MODEL]
        v = qkv[:, 2 * D_MODEL:]

        # batched heads: block-masked head-tiled K, one score matmul for all heads
        k_bd = jnp.concatenate([k] * NUM_HEADS, axis=0) * hm       # (HN, D)
        s = jnp.einsum('nd,md->nm', q, k_bd,
                       preferred_element_type=f32) + bias          # (N1, HN)
        # one softmax chain: global row max (cancels per head), per-head
        # denominators come from the fused [blockV | blockOnes] matmul below
        p = jnp.exp(s - jnp.max(s, axis=-1, keepdims=True))        # (N1, HN)

        v_cat = jnp.concatenate(
            [jnp.concatenate([v] * NUM_HEADS, axis=0) * hm, hm], axis=1)  # (HN, 2D)
        cd = jnp.dot(p, v_cat, preferred_element_type=f32)         # (N1, 2D)
        ctx = cd[:, :D_MODEL] * pl.reciprocal(cd[:, D_MODEL:] + 1e-30,
                                              approx=True)         # (N1, D)
        attn = jnp.dot(ctx.astype(bf16), wo_ref[li],
                       preferred_element_type=f32) + bo_ref[li]

        x = _layer_norm(x + attn, ln1w_ref[li], ln1b_ref[li])

        h1 = jnp.dot(x.astype(bf16), w1_ref[li],
                     preferred_element_type=f32) + b1_ref[li]
        h1 = jnp.maximum(h1, 0.0)                                  # relu
        y = jnp.dot(h1.astype(bf16), w2_ref[li],
                    preferred_element_type=f32) + b2_ref[li]
        x = _layer_norm(x + y, ln2w_ref[li], ln2b_ref[li])

    # ---- per-document [CLS] rows (row d*S1): plain slices, no selector matmul ----
    cls_rows = jnp.concatenate(
        [x[d * S1:d * S1 + 1, :] for d in range(DOCS_PER_GROUP)], axis=0)
    out_ref[...] = cls_rows.reshape(1, DOCS_PER_GROUP, D_MODEL)


# ---------------- parameter construction (deterministic) ----------------------
def make_positional_encoding():
    position = np.arange(MAX_LEN, dtype=np.float32)[:, None]
    div_term = np.exp(np.arange(0, D_MODEL, 2, dtype=np.float32)
                      * (-math.log(10000.0) / D_MODEL))
    pe = np.zeros((MAX_LEN, D_MODEL), np.float32)
    pe[:, 0::2] = np.sin(position * div_term)
    pe[:, 1::2] = np.cos(position * div_term)
    return jnp.asarray(pe)


def init_params(key):
    def nrm(k, shape, scale=0.02):
        return (scale * jax.random.normal(k, shape)).astype(jnp.float32)

    keys = jax.random.split(key, 3 + NUM_LAYERS)
    params = {
        'tok_emb': nrm(keys[0], (VOCAB, D_MODEL), 1.0),
        'wp': nrm(keys[1], (D_MODEL, D_MODEL)),
        'bp': jnp.zeros((1, D_MODEL), jnp.float32),
        'pe': make_positional_encoding(),
        'layers': [],
    }
    for li in range(NUM_LAYERS):
        lk = jax.random.split(keys[3 + li], 8)
        params['layers'].append({
            'wq': nrm(lk[0], (D_MODEL, D_MODEL)),
            'bq': jnp.zeros((1, D_MODEL), jnp.float32),
            'wk': nrm(lk[1], (D_MODEL, D_MODEL)),
            'bk': jnp.zeros((1, D_MODEL), jnp.float32),
            'wv': nrm(lk[2], (D_MODEL, D_MODEL)),
            'bv': jnp.zeros((1, D_MODEL), jnp.float32),
            'wo': nrm(lk[3], (D_MODEL, D_MODEL)),
            'bo': jnp.zeros((1, D_MODEL), jnp.float32),
            'ln1w': jnp.ones((1, D_MODEL), jnp.float32),
            'ln1b': jnp.zeros((1, D_MODEL), jnp.float32),
            'w1': nrm(lk[4], (D_MODEL, DIM_FF)),
            'b1': jnp.zeros((1, DIM_FF), jnp.float32),
            'w2': nrm(lk[5], (DIM_FF, D_MODEL)),
            'b2': jnp.zeros((1, D_MODEL), jnp.float32),
            'ln2w': jnp.ones((1, D_MODEL), jnp.float32),
            'ln2b': jnp.zeros((1, D_MODEL), jnp.float32),
        })
    return params


def _stack(layers, name, dtype=None):
    a = jnp.stack([lp[name] for lp in layers], axis=0)
    return a if dtype is None else a.astype(dtype)


# ---------------- full forward (mirrors DeBERTa_Ranker.forward) ---------------
def deberta_ranker_forward(input_ids, attention_mask, params):
    tb = input_ids.shape[0]
    assert tb % DOCS_PER_GROUP == 0, "batch must be a multiple of DOCS_PER_GROUP"
    n_groups = tb // DOCS_PER_GROUP

    ids_chunks = input_ids.reshape(tb, SEQ_LEN, WINDOW)
    mask_chunks = attention_mask.reshape(tb, SEQ_LEN, WINDOW).astype(jnp.float32)

    # prepend one synthetic [CLS]-only "chunk" row per document so a single
    # chunk-encoder pass yields [cls_emb, chunk_0..chunk_{S-1}] per document
    cls_ids = jnp.zeros((tb, 1, WINDOW), jnp.int32).at[:, :, 0].set(CLS_ID)
    cls_mask = jnp.zeros((tb, 1, WINDOW), jnp.float32).at[:, :, 0].set(1.0)
    ids_all = jnp.concatenate([cls_ids, ids_chunks], axis=1).reshape(tb * S1, WINDOW)
    mask_all = jnp.concatenate([cls_mask, mask_chunks], axis=1).reshape(tb * S1, WINDOW)

    # flattened token ids (one row per token) for the in-kernel one-hot
    ids_flat = ids_all.reshape(n_groups * NTOK, 1)

    # block-diagonal mean-pool selector (mask rows pre-normalised by their sum)
    mnorm = mask_all / (jnp.sum(mask_all, axis=1, keepdims=True) + 1e-9)
    mnorm = mnorm.reshape(n_groups, N1, WINDOW)
    eye = jnp.eye(N1, dtype=jnp.float32)
    pool_mask = (eye[None, :, :, None] * mnorm[:, :, None, :]).reshape(
        n_groups * N1, NTOK)                                        # (G*N1, NTOK)

    pe_rows = jnp.tile(params['pe'][:S1, :], (DOCS_PER_GROUP, 1))   # (N1, D)

    lay = params['layers']
    wqkv = jnp.concatenate([_stack(lay, 'wq'), _stack(lay, 'wk'),
                            _stack(lay, 'wv')], axis=2).astype(jnp.bfloat16)
    bqkv = jnp.concatenate([_stack(lay, 'bq'), _stack(lay, 'bk'),
                            _stack(lay, 'bv')], axis=2)
    wo, bo = _stack(lay, 'wo', jnp.bfloat16), _stack(lay, 'bo')
    ln1w, ln1b = _stack(lay, 'ln1w'), _stack(lay, 'ln1b')
    w1, b1 = _stack(lay, 'w1', jnp.bfloat16), _stack(lay, 'b1')
    w2, b2 = _stack(lay, 'w2', jnp.bfloat16), _stack(lay, 'b2')
    ln2w, ln2b = _stack(lay, 'ln2w'), _stack(lay, 'ln2b')

    # stand-in chunk encoder: fold token-embedding and projection together
    tok_proj = jnp.dot(params['tok_emb'], params['wp']).astype(jnp.bfloat16)

    args = (ids_flat, pool_mask, tok_proj, params['bp'], pe_rows,
            ATTN_BIAS_BD, HEAD_MASK,
            wqkv, bqkv, wo, bo, ln1w, ln1b, w1, b1, w2, b2, ln2w, ln2b)

    in_specs = [
        pl.BlockSpec((NTOK, 1), lambda g: (g, 0)),      # per-group token ids
        pl.BlockSpec((N1, NTOK), lambda g: (g, 0)),     # per-group pool mask
    ] + [const_spec(a.shape) for a in args[2:]]         # weights stay VMEM resident

    out = pl.pallas_call(
        fused_ranker_kernel,
        grid=(n_groups,),
        in_specs=in_specs,
        out_specs=pl.BlockSpec((1, DOCS_PER_GROUP, D_MODEL), lambda g: (g, 0, 0)),
        out_shape=jax.ShapeDtypeStruct((n_groups, DOCS_PER_GROUP, D_MODEL),
                                       jnp.float32),
        compiler_params=pltpu.CompilerParams(dimension_semantics=("parallel",)),
    )(*args)
    return out.reshape(tb, D_MODEL)


# ---------------- main ---------------------------------------------------------
if __name__ == "__main__":
    key = jax.random.PRNGKey(0)
    k_par, k_ids, k_msk = jax.random.split(key, 3)

    params = init_params(k_par)

    TOTAL_BATCH = 4                      # 2 document-groups -> grid=(2,) "parallel"
    input_ids = jax.random.randint(k_ids, (TOTAL_BATCH, SEQ_LEN * WINDOW), 0, VOCAB,
                                   dtype=jnp.int32)
    attention_mask = (jax.random.uniform(k_msk, (TOTAL_BATCH, SEQ_LEN * WINDOW))
                      > 0.1).astype(jnp.int32)

    out = deberta_ranker_forward(input_ids, attention_mask, params)
    out = jax.block_until_ready(out)
    assert out.shape == (TOTAL_BATCH, D_MODEL)
    assert bool(jnp.all(jnp.isfinite(out)))
    print("KERNEL_OK")
</pallas_src>

<mosaic_0001>
module attributes {stable_mosaic.version = 11 : i64} {
  func.func @fused_ranker_kernel(%arg0: i32, %arg1: memref<128x1xi32, #tpu.memory_space<vmem>>, %arg2: memref<8x128xf32, #tpu.memory_space<vmem>>, %arg3: memref<64x64xbf16, #tpu.memory_space<vmem>>, %arg4: memref<1x64xf32, #tpu.memory_space<vmem>>, %arg5: memref<8x64xf32, #tpu.memory_space<vmem>>, %arg6: memref<8x32xf32, #tpu.memory_space<vmem>>, %arg7: memref<32x64xf32, #tpu.memory_space<vmem>>, %arg8: memref<4x64x192xbf16, #tpu.memory_space<vmem>>, %arg9: memref<4x1x192xf32, #tpu.memory_space<vmem>>, %arg10: memref<4x64x64xbf16, #tpu.memory_space<vmem>>, %arg11: memref<4x1x64xf32, #tpu.memory_space<vmem>>, %arg12: memref<4x1x64xf32, #tpu.memory_space<vmem>>, %arg13: memref<4x1x64xf32, #tpu.memory_space<vmem>>, %arg14: memref<4x64x128xbf16, #tpu.memory_space<vmem>>, %arg15: memref<4x1x128xf32, #tpu.memory_space<vmem>>, %arg16: memref<4x128x64xbf16, #tpu.memory_space<vmem>>, %arg17: memref<4x1x64xf32, #tpu.memory_space<vmem>>, %arg18: memref<4x1x64xf32, #tpu.memory_space<vmem>>, %arg19: memref<4x1x64xf32, #tpu.memory_space<vmem>>, %arg20: memref<1x2x64xf32, #tpu.memory_space<vmem>>) attributes {dimension_semantics = [#tpu.dimension_semantics<parallel>], iteration_bounds = array<i64: 2>, scalar_prefetch = 0 : i64, scratch_operands = 0 : i64, tpu.core_type = #tpu.core_type<tc>, window_params = [{transform_indices = @transform_0, window_bounds = array<i64: 128, 1>}, {transform_indices = @transform_1, window_bounds = array<i64: 8, 128>}, {pipeline_mode = #tpu.pipeline_mode<synchronous>, transform_indices = @transform_2, window_bounds = array<i64: 64, 64>}, {pipeline_mode = #tpu.pipeline_mode<synchronous>, transform_indices = @transform_3, window_bounds = array<i64: 1, 64>}, {pipeline_mode = #tpu.pipeline_mode<synchronous>, transform_indices = @transform_4, window_bounds = array<i64: 8, 64>}, {pipeline_mode = #tpu.pipeline_mode<synchronous>, transform_indices = @transform_5, window_bounds = array<i64: 8, 32>}, {pipeline_mode = #tpu.pipeline_mode<synchronous>, transform_indices = @transform_6, window_bounds = array<i64: 32, 64>}, {pipeline_mode = #tpu.pipeline_mode<synchronous>, transform_indices = @transform_7, window_bounds = array<i64: 4, 64, 192>}, {pipeline_mode = #tpu.pipeline_mode<synchronous>, transform_indices = @transform_8, window_bounds = array<i64: 4, 1, 192>}, {pipeline_mode = #tpu.pipeline_mode<synchronous>, transform_indices = @transform_9, window_bounds = array<i64: 4, 64, 64>}, {pipeline_mode = #tpu.pipeline_mode<synchronous>, transform_indices = @transform_10, window_bounds = array<i64: 4, 1, 64>}, {pipeline_mode = #tpu.pipeline_mode<synchronous>, transform_indices = @transform_11, window_bounds = array<i64: 4, 1, 64>}, {pipeline_mode = #tpu.pipeline_mode<synchronous>, transform_indices = @transform_12, window_bounds = array<i64: 4, 1, 64>}, {pipeline_mode = #tpu.pipeline_mode<synchronous>, transform_indices = @transform_13, window_bounds = array<i64: 4, 64, 128>}, {pipeline_mode = #tpu.pipeline_mode<synchronous>, transform_indices = @transform_14, window_bounds = array<i64: 4, 1, 128>}, {pipeline_mode = #tpu.pipeline_mode<synchronous>, transform_indices = @transform_15, window_bounds = array<i64: 4, 128, 64>}, {pipeline_mode = #tpu.pipeline_mode<synchronous>, transform_indices = @transform_16, window_bounds = array<i64: 4, 1, 64>}, {pipeline_mode = #tpu.pipeline_mode<synchronous>, transform_indices = @transform_17, window_bounds = array<i64: 4, 1, 64>}, {pipeline_mode = #tpu.pipeline_mode<synchronous>, transform_indices = @transform_18, window_bounds = array<i64: 4, 1, 64>}, {transform_indices = @transform_19, window_bounds = array<i64: 1, 2, 64>}]} {
    %c0 = arith.constant 0 : index
    %c0_0 = arith.constant 0 : index
    %0 = vector.load %arg1[%c0, %c0_0] : memref<128x1xi32, #tpu.memory_space<vmem>>, vector<128x1xi32>
    %1 = tpu.iota {dimensions = array<i32: 1>} : vector<128x64xi32>
    %2 = vector.broadcast %0 : vector<128x1xi32> to vector<128x64xi32>
    %3 = arith.cmpi eq, %2, %1 : vector<128x64xi32>
    %4 = arith.extui %3 : vector<128x64xi1> to vector<128x64xi32>
    %5 = arith.sitofp %4 : vector<128x64xi32> to vector<128x64xf32>
    %c0_1 = arith.constant 0 : index
    %c0_2 = arith.constant 0 : index
    %6 = vector.load %arg2[%c0_1, %c0_2] : memref<8x128xf32, #tpu.memory_space<vmem>>, vector<8x128xf32>
    %cst = arith.constant dense<0.000000e+00> : vector<8x64xf32>
    %7 = tpu.matmul %6, %5, %cst {dimension_numbers = #tpu.dot_dimension_numbers<[1], [0], [0], [1], [0, 0, 1, 1], [], []>} : vector<8x128xf32>, vector<128x64xf32>, vector<8x64xf32> -> vector<8x64xf32>
    %8 = arith.truncf %7 : vector<8x64xf32> to vector<8x64xbf16>
    %c0_3 = arith.constant 0 : index
    %c0_4 = arith.constant 0 : index
    %9 = vector.load %arg3[%c0_3, %c0_4] : memref<64x64xbf16, #tpu.memory_space<vmem>>, vector<64x64xbf16>
    %cst_5 = arith.constant dense<0.000000e+00> : vector<8x64xf32>
    %10 = tpu.matmul %8, %9, %cst_5 {dimension_numbers = #tpu.dot_dimension_numbers<[1], [0], [0], [1], [0, 0, 1, 1], [], []>} : vector<8x64xbf16>, vector<64x64xbf16>, vector<8x64xf32> -> vector<8x64xf32>
    %c0_6 = arith.constant 0 : index
    %c0_7 = arith.constant 0 : index
    %11 = vector.load %arg4[%c0_6, %c0_7] : memref<1x64xf32, #tpu.memory_space<vmem>>, vector<1x64xf32>
    %12 = vector.broadcast %11 : vector<1x64xf32> to vector<8x64xf32>
    %13 = arith.addf %10, %12 : vector<8x64xf32>
    %14 = math.tanh %13 : vector<8x64xf32>
    %c0_8 = arith.constant 0 : index
    %c0_9 = arith.constant 0 : index
    %15 = vector.load %arg5[%c0_8, %c0_9] : memref<8x64xf32, #tpu.memory_space<vmem>>, vector<8x64xf32>
    %16 = arith.addf %14, %15 : vector<8x64xf32>
    %c0_10 = arith.constant 0 : index
    %c0_11 = arith.constant 0 : index
    %17 = vector.load %arg6[%c0_10, %c0_11] : memref<8x32xf32, #tpu.memory_space<vmem>>, vector<8x32xf32>
    %c0_12 = arith.constant 0 : index
    %c0_13 = arith.constant 0 : index
    %18 = vector.load %arg7[%c0_12, %c0_13] : memref<32x64xf32, #tpu.memory_space<vmem>>, vector<32x64xf32>
    %19 = arith.truncf %16 : vector<8x64xf32> to vector<8x64xbf16>
    %c0_14 = arith.constant 0 : index
    %c0_15 = arith.constant 0 : index
    %c0_16 = arith.constant 0 : index
    %20 = vector.load %arg8[%c0_14, %c0_15, %c0_16] : memref<4x64x192xbf16, #tpu.memory_space<vmem>>, vector<1x64x192xbf16>
    %21 = vector.shape_cast %20 : vector<1x64x192xbf16> to vector<64x192xbf16>
    %cst_17 = arith.constant dense<0.000000e+00> : vector<8x192xf32>
    %22 = tpu.matmul %19, %21, %cst_17 {dimension_numbers = #tpu.dot_dimension_numbers<[1], [0], [0], [1], [0, 0, 1, 1], [], []>} : vector<8x64xbf16>, vector<64x192xbf16>, vector<8x192xf32> -> vector<8x192xf32>
    %c0_18 = arith.constant 0 : index
    %c0_19 = arith.constant 0 : index
    %c0_20 = arith.constant 0 : index
    %23 = vector.load %arg9[%c0_18, %c0_19, %c0_20] : memref<4x1x192xf32, #tpu.memory_space<vmem>>, vector<1x1x192xf32>
    %24 = vector.shape_cast %23 : vector<1x1x192xf32> to vector<1x192xf32>
    %25 = vector.broadcast %24 : vector<1x192xf32> to vector<8x192xf32>
    %26 = arith.addf %22, %25 : vector<8x192xf32>
    %27 = vector.extract_strided_slice %26 {offsets = [0, 0], sizes = [8, 64], strides = [1, 1]} : vector<8x192xf32> to vector<8x64xf32>
    %cst_21 = arith.constant 2.500000e-01 : f32
    %28 = vector.broadcast %cst_21 : f32 to vector<8x64xf32>
    %29 = arith.mulf %27, %28 : vector<8x64xf32>
    %30 = vector.extract_strided_slice %26 {offsets = [0, 64], sizes = [8, 64], strides = [1, 1]} : vector<8x192xf32> to vector<8x64xf32>
    %31 = vector.extract_strided_slice %26 {offsets = [0, 128], sizes = [8, 64], strides = [1, 1]} : vector<8x192xf32> to vector<8x64xf32>
    %32 = tpu.concatenate %30, %30, %30, %30 in 0 : vector<8x64xf32>, vector<8x64xf32>, vector<8x64xf32>, vector<8x64xf32> -> vector<32x64xf32>
    %33 = arith.mulf %32, %18 : vector<32x64xf32>
    "tpu.trace_start"() <{level = 10 : i32, message = "nd,md->nm"}> : () -> ()
    %cst_22 = arith.constant dense<0.000000e+00> : vector<8x32xf32>
    %34 = tpu.matmul %29, %33, %cst_22 {dimension_numbers = #tpu.dot_dimension_numbers<[1], [1], [0], [0], [0, 0, 1, 0], [], []>} : vector<8x64xf32>, vector<32x64xf32>, vector<8x32xf32> -> vector<8x32xf32>
    "tpu.trace_stop"() : () -> ()
    %35 = arith.addf %34, %17 : vector<8x32xf32>
    %cst_23 = arith.constant dense<0xFF800000> : vector<8xf32>
    %36 = vector.multi_reduction <maximumf>, %35, %cst_23 [1] : vector<8x32xf32> to vector<8xf32>
    %37 = vector.shape_cast %36 : vector<8xf32> to vector<8x1xf32>
    %38 = vector.broadcast %37 : vector<8x1xf32> to vector<8x32xf32>
    %39 = arith.subf %35, %38 : vector<8x32xf32>
    %40 = math.exp %39 : vector<8x32xf32>
    %41 = tpu.concatenate %31, %31, %31, %31 in 0 : vector<8x64xf32>, vector<8x64xf32>, vector<8x64xf32>, vector<8x64xf32> -> vector<32x64xf32>
    %42 = arith.mulf %41, %18 : vector<32x64xf32>
    %43 = tpu.concatenate %42, %18 in 1 : vector<32x64xf32>, vector<32x64xf32> -> vector<32x128xf32>
    %cst_24 = arith.constant dense<0.000000e+00> : vector<8x128xf32>
    %44 = tpu.matmul %40, %43, %cst_24 {dimension_numbers = #tpu.dot_dimension_numbers<[1], [0], [0], [1], [0, 0, 1, 1], [], []>} : vector<8x32xf32>, vector<32x128xf32>, vector<8x128xf32> -> vector<8x128xf32>
    %45 = vector.extract_strided_slice %44 {offsets = [0, 0], sizes = [8, 64], strides = [1, 1]} : vector<8x128xf32> to vector<8x64xf32>
    %46 = vector.extract_strided_slice %44 {offsets = [0, 64], sizes = [8, 64], strides = [1, 1]} : vector<8x128xf32> to vector<8x64xf32>
    %cst_25 = arith.constant 1.000000e-30 : f32
    %47 = vector.broadcast %cst_25 : f32 to vector<8x64xf32>
    %48 = arith.addf %46, %47 : vector<8x64xf32>
    %49 = tpu.reciprocal %48 {approx = true} : vector<8x64xf32> -> vector<8x64xf32>
    %50 = arith.mulf %45, %49 : vector<8x64xf32>
    %51 = arith.truncf %50 : vector<8x64xf32> to vector<8x64xbf16>
    %c0_26 = arith.constant 0 : index
    %c0_27 = arith.constant 0 : index
    %c0_28 = arith.constant 0 : index
    %52 = vector.load %arg10[%c0_26, %c0_27, %c0_28] : memref<4x64x64xbf16, #tpu.memory_space<vmem>>, vector<1x64x64xbf16>
    %53 = vector.shape_cast %52 : vector<1x64x64xbf16> to vector<64x64xbf16>
    %cst_29 = arith.constant dense<0.000000e+00> : vector<8x64xf32>
    %54 = tpu.matmul %51, %53, %cst_29 {dimension_numbers = #tpu.dot_dimension_numbers<[1], [0], [0], [1], [0, 0, 1, 1], [], []>} : vector<8x64xbf16>, vector<64x64xbf16>, vector<8x64xf32> -> vector<8x64xf32>
    %c0_30 = arith.constant 0 : index
    %c0_31 = arith.constant 0 : index
    %c0_32 = arith.constant 0 : index
    %55 = vector.load %arg11[%c0_30, %c0_31, %c0_32] : memref<4x1x64xf32, #tpu.memory_space<vmem>>, vector<1x1x64xf32>
    %56 = vector.shape_cast %55 : vector<1x1x64xf32> to vector<1x64xf32>
    %57 = vector.broadcast %56 : vector<1x64xf32> to vector<8x64xf32>
    %58 = arith.addf %54, %57 : vector<8x64xf32>
    %59 = arith.addf %16, %58 : vector<8x64xf32>
    %c0_33 = arith.constant 0 : index
    %c0_34 = arith.constant 0 : index
    %c0_35 = arith.constant 0 : index
    %60 = vector.load %arg12[%c0_33, %c0_34, %c0_35] : memref<4x1x64xf32, #tpu.memory_space<vmem>>, vector<1x1x64xf32>
    %61 = vector.shape_cast %60 : vector<1x1x64xf32> to vector<1x64xf32>
    %c0_36 = arith.constant 0 : index
    %c0_37 = arith.constant 0 : index
    %c0_38 = arith.constant 0 : index
    %62 = vector.load %arg13[%c0_36, %c0_37, %c0_38] : memref<4x1x64xf32, #tpu.memory_space<vmem>>, vector<1x1x64xf32>
    %63 = vector.shape_cast %62 : vector<1x1x64xf32> to vector<1x64xf32>
    %cst_39 = arith.constant dense<0.000000e+00> : vector<8xf32>
    %64 = vector.multi_reduction <add>, %59, %cst_39 [1] : vector<8x64xf32> to vector<8xf32>
    %65 = vector.shape_cast %64 : vector<8xf32> to vector<8x1xf32>
    %cst_40 = arith.constant 6.400000e+01 : f32
    %66 = vector.broadcast %cst_40 : f32 to vector<8x1xf32>
    %67 = arith.divf %65, %66 : vector<8x1xf32>
    %68 = vector.broadcast %67 : vector<8x1xf32> to vector<8x64xf32>
    %69 = arith.subf %59, %68 : vector<8x64xf32>
    %70 = arith.mulf %69, %69 : vector<8x64xf32>
    %cst_41 = arith.constant dense<0.000000e+00> : vector<8xf32>
    %71 = vector.multi_reduction <add>, %70, %cst_41 [1] : vector<8x64xf32> to vector<8xf32>
    %72 = vector.shape_cast %71 : vector<8xf32> to vector<8x1xf32>
    %cst_42 = arith.constant 6.400000e+01 : f32
    %73 = vector.broadcast %cst_42 : f32 to vector<8x1xf32>
    %74 = arith.divf %72, %73 : vector<8x1xf32>
    %75 = vector.broadcast %67 : vector<8x1xf32> to vector<8x64xf32>
    %76 = arith.subf %59, %75 : vector<8x64xf32>
    %cst_43 = arith.constant 9.99999974E-6 : f32
    %77 = vector.broadcast %cst_43 : f32 to vector<8x1xf32>
    %78 = arith.addf %74, %77 : vector<8x1xf32>
    %79 = math.rsqrt %78 : vector<8x1xf32>
    %80 = vector.broadcast %79 : vector<8x1xf32> to vector<8x64xf32>
    %81 = arith.mulf %76, %80 : vector<8x64xf32>
    %82 = vector.broadcast %61 : vector<1x64xf32> to vector<8x64xf32>
    %83 = arith.mulf %81, %82 : vector<8x64xf32>
    %84 = vector.broadcast %63 : vector<1x64xf32> to vector<8x64xf32>
    %85 = arith.addf %83, %84 : vector<8x64xf32>
    %86 = arith.truncf %85 : vector<8x64xf32> to vector<8x64xbf16>
    %c0_44 = arith.constant 0 : index
    %c0_45 = arith.constant 0 : index
    %c0_46 = arith.constant 0 : index
    %87 = vector.load %arg14[%c0_44, %c0_45, %c0_46] : memref<4x64x128xbf16, #tpu.memory_space<vmem>>, vector<1x64x128xbf16>
    %88 = vector.shape_cast %87 : vector<1x64x128xbf16> to vector<64x128xbf16>
    %cst_47 = arith.constant dense<0.000000e+00> : vector<8x128xf32>
    %89 = tpu.matmul %86, %88, %cst_47 {dimension_numbers = #tpu.dot_dimension_numbers<[1], [0], [0], [1], [0, 0, 1, 1], [], []>} : vector<8x64xbf16>, vector<64x128xbf16>, vector<8x128xf32> -> vector<8x128xf32>
    %c0_48 = arith.constant 0 : index
    %c0_49 = arith.constant 0 : index
    %c0_50 = arith.constant 0 : index
    %90 = vector.load %arg15[%c0_48, %c0_49, %c0_50] : memref<4x1x128xf32, #tpu.memory_space<vmem>>, vector<1x1x128xf32>
    %91 = vector.shape_cast %90 : vector<1x1x128xf32> to vector<1x128xf32>
    %92 = vector.broadcast %91 : vector<1x128xf32> to vector<8x128xf32>
    %93 = arith.addf %89, %92 : vector<8x128xf32>
    %cst_51 = arith.constant 0.000000e+00 : f32
    %94 = vector.broadcast %cst_51 : f32 to vector<8x128xf32>
    %95 = arith.maximumf %93, %94 : vector<8x128xf32>
    %96 = arith.truncf %95 : vector<8x128xf32> to vector<8x128xbf16>
    %c0_52 = arith.constant 0 : index
    %c0_53 = arith.constant 0 : index
    %c0_54 = arith.constant 0 : index
    %97 = vector.load %arg16[%c0_52, %c0_53, %c0_54] : memref<4x128x64xbf16, #tpu.memory_space<vmem>>, vector<1x128x64xbf16>
    %98 = vector.shape_cast %97 : vector<1x128x64xbf16> to vector<128x64xbf16>
    %cst_55 = arith.constant dense<0.000000e+00> : vector<8x64xf32>
    %99 = tpu.matmul %96, %98, %cst_55 {dimension_numbers = #tpu.dot_dimension_numbers<[1], [0], [0], [1], [0, 0, 1, 1], [], []>} : vector<8x128xbf16>, vector<128x64xbf16>, vector<8x64xf32> -> vector<8x64xf32>
    %c0_56 = arith.constant 0 : index
    %c0_57 = arith.constant 0 : index
    %c0_58 = arith.constant 0 : index
    %100 = vector.load %arg17[%c0_56, %c0_57, %c0_58] : memref<4x1x64xf32, #tpu.memory_space<vmem>>, vector<1x1x64xf32>
    %101 = vector.shape_cast %100 : vector<1x1x64xf32> to vector<1x64xf32>
    %102 = vector.broadcast %101 : vector<1x64xf32> to vector<8x64xf32>
    %103 = arith.addf %99, %102 : vector<8x64xf32>
    %104 = arith.addf %85, %103 : vector<8x64xf32>
    %c0_59 = arith.constant 0 : index
    %c0_60 = arith.constant 0 : index
    %c0_61 = arith.constant 0 : index
    %105 = vector.load %arg18[%c0_59, %c0_60, %c0_61] : memref<4x1x64xf32, #tpu.memory_space<vmem>>, vector<1x1x64xf32>
    %106 = vector.shape_cast %105 : vector<1x1x64xf32> to vector<1x64xf32>
    %c0_62 = arith.constant 0 : index
    %c0_63 = arith.constant 0 : index
    %c0_64 = arith.constant 0 : index
    %107 = vector.load %arg19[%c0_62, %c0_63, %c0_64] : memref<4x1x64xf32, #tpu.memory_space<vmem>>, vector<1x1x64xf32>
    %108 = vector.shape_cast %107 : vector<1x1x64xf32> to vector<1x64xf32>
    %cst_65 = arith.constant dense<0.000000e+00> : vector<8xf32>
    %109 = vector.multi_reduction <add>, %104, %cst_65 [1] : vector<8x64xf32> to vector<8xf32>
    %110 = vector.shape_cast %109 : vector<8xf32> to vector<8x1xf32>
    %cst_66 = arith.constant 6.400000e+01 : f32
    %111 = vector.broadcast %cst_66 : f32 to vector<8x1xf32>
    %112 = arith.divf %110, %111 : vector<8x1xf32>
    %113 = vector.broadcast %112 : vector<8x1xf32> to vector<8x64xf32>
    %114 = arith.subf %104, %113 : vector<8x64xf32>
    %115 = arith.mulf %114, %114 : vector<8x64xf32>
    %cst_67 = arith.constant dense<0.000000e+00> : vector<8xf32>
    %116 = vector.multi_reduction <add>, %115, %cst_67 [1] : vector<8x64xf32> to vector<8xf32>
    %117 = vector.shape_cast %116 : vector<8xf32> to vector<8x1xf32>
    %cst_68 = arith.constant 6.400000e+01 : f32
    %118 = vector.broadcast %cst_68 : f32 to vector<8x1xf32>
    %119 = arith.divf %117, %118 : vector<8x1xf32>
    %120 = vector.broadcast %112 : vector<8x1xf32> to vector<8x64xf32>
    %121 = arith.subf %104, %120 : vector<8x64xf32>
    %cst_69 = arith.constant 9.99999974E-6 : f32
    %122 = vector.broadcast %cst_69 : f32 to vector<8x1xf32>
    %123 = arith.addf %119, %122 : vector<8x1xf32>
    %124 = math.rsqrt %123 : vector<8x1xf32>
    %125 = vector.broadcast %124 : vector<8x1xf32> to vector<8x64xf32>
    %126 = arith.mulf %121, %125 : vector<8x64xf32>
    %127 = vector.broadcast %106 : vector<1x64xf32> to vector<8x64xf32>
    %128 = arith.mulf %126, %127 : vector<8x64xf32>
    %129 = vector.broadcast %108 : vector<1x64xf32> to vector<8x64xf32>
    %130 = arith.addf %128, %129 : vector<8x64xf32>
    %131 = arith.truncf %130 : vector<8x64xf32> to vector<8x64xbf16>
    %c1 = arith.constant 1 : index
    %c0_70 = arith.constant 0 : index
    %c0_71 = arith.constant 0 : index
    %132 = vector.load %arg8[%c1, %c0_70, %c0_71] : memref<4x64x192xbf16, #tpu.memory_space<vmem>>, vector<1x64x192xbf16>
    %133 = vector.shape_cast %132 : vector<1x64x192xbf16> to vector<64x192xbf16>
    %cst_72 = arith.constant dense<0.000000e+00> : vector<8x192xf32>
    %134 = tpu.matmul %131, %133, %cst_72 {dimension_numbers = #tpu.dot_dimension_numbers<[1], [0], [0], [1], [0, 0, 1, 1], [], []>} : vector<8x64xbf16>, vector<64x192xbf16>, vector<8x192xf32> -> vector<8x192xf32>
    %c1_73 = arith.constant 1 : index
    %c0_74 = arith.constant 0 : index
    %c0_75 = arith.constant 0 : index
    %135 = vector.load %arg9[%c1_73, %c0_74, %c0_75] : memref<4x1x192xf32, #tpu.memory_space<vmem>>, vector<1x1x192xf32>
    %136 = vector.shape_cast %135 : vector<1x1x192xf32> to vector<1x192xf32>
    %137 = vector.broadcast %136 : vector<1x192xf32> to vector<8x192xf32>
    %138 = arith.addf %134, %137 : vector<8x192xf32>
    %139 = vector.extract_strided_slice %138 {offsets = [0, 0], sizes = [8, 64], strides = [1, 1]} : vector<8x192xf32> to vector<8x64xf32>
    %cst_76 = arith.constant 2.500000e-01 : f32
    %140 = vector.broadcast %cst_76 : f32 to vector<8x64xf32>
    %141 = arith.mulf %139, %140 : vector<8x64xf32>
    %142 = vector.extract_strided_slice %138 {offsets = [0, 64], sizes = [8, 64], strides = [1, 1]} : vector<8x192xf32> to vector<8x64xf32>
    %143 = vector.extract_strided_slice %138 {offsets = [0, 128], sizes = [8, 64], strides = [1, 1]} : vector<8x192xf32> to vector<8x64xf32>
    %144 = tpu.concatenate %142, %142, %142, %142 in 0 : vector<8x64xf32>, vector<8x64xf32>, vector<8x64xf32>, vector<8x64xf32> -> vector<32x64xf32>
    %145 = arith.mulf %144, %18 : vector<32x64xf32>
    "tpu.trace_start"() <{level = 10 : i32, message = "nd,md->nm"}> : () -> ()
    %cst_77 = arith.constant dense<0.000000e+00> : vector<8x32xf32>
    %146 = tpu.matmul %141, %145, %cst_77 {dimension_numbers = #tpu.dot_dimension_numbers<[1], [1], [0], [0], [0, 0, 1, 0], [], []>} : vector<8x64xf32>, vector<32x64xf32>, vector<8x32xf32> -> vector<8x32xf32>
    "tpu.trace_stop"() : () -> ()
    %147 = arith.addf %146, %17 : vector<8x32xf32>
    %cst_78 = arith.constant dense<0xFF800000> : vector<8xf32>
    %148 = vector.multi_reduction <maximumf>, %147, %cst_78 [1] : vector<8x32xf32> to vector<8xf32>
    %149 = vector.shape_cast %148 : vector<8xf32> to vector<8x1xf32>
    %150 = vector.broadcast %149 : vector<8x1xf32> to vector<8x32xf32>
    %151 = arith.subf %147, %150 : vector<8x32xf32>
    %152 = math.exp %151 : vector<8x32xf32>
    %153 = tpu.concatenate %143, %143, %143, %143 in 0 : vector<8x64xf32>, vector<8x64xf32>, vector<8x64xf32>, vector<8x64xf32> -> vector<32x64xf32>
    %154 = arith.mulf %153, %18 : vector<32x64xf32>
    %155 = tpu.concatenate %154, %18 in 1 : vector<32x64xf32>, vector<32x64xf32> -> vector<32x128xf32>
    %cst_79 = arith.constant dense<0.000000e+00> : vector<8x128xf32>
    %156 = tpu.matmul %152, %155, %cst_79 {dimension_numbers = #tpu.dot_dimension_numbers<[1], [0], [0], [1], [0, 0, 1, 1], [], []>} : vector<8x32xf32>, vector<32x128xf32>, vector<8x128xf32> -> vector<8x128xf32>
    %157 = vector.extract_strided_slice %156 {offsets = [0, 0], sizes = [8, 64], strides = [1, 1]} : vector<8x128xf32> to vector<8x64xf32>
    %158 = vector.extract_strided_slice %156 {offsets = [0, 64], sizes = [8, 64], strides = [1, 1]} : vector<8x128xf32> to vector<8x64xf32>
    %cst_80 = arith.constant 1.000000e-30 : f32
    %159 = vector.broadcast %cst_80 : f32 to vector<8x64xf32>
    %160 = arith.addf %158, %159 : vector<8x64xf32>
    %161 = tpu.reciprocal %160 {approx = true} : vector<8x64xf32> -> vector<8x64xf32>
    %162 = arith.mulf %157, %161 : vector<8x64xf32>
    %163 = arith.truncf %162 : vector<8x64xf32> to vector<8x64xbf16>
    %c1_81 = arith.constant 1 : index
    %c0_82 = arith.constant 0 : index
    %c0_83 = arith.constant 0 : index
    %164 = vector.load %arg10[%c1_81, %c0_82, %c0_83] : memref<4x64x64xbf16, #tpu.memory_space<vmem>>, vector<1x64x64xbf16>
    %165 = vector.shape_cast %164 : vector<1x64x64xbf16> to vector<64x64xbf16>
    %cst_84 = arith.constant dense<0.000000e+00> : vector<8x64xf32>
    %166 = tpu.matmul %163, %165, %cst_84 {dimension_numbers = #tpu.dot_dimension_numbers<[1], [0], [0], [1], [0, 0, 1, 1], [], []>} : vector<8x64xbf16>, vector<64x64xbf16>, vector<8x64xf32> -> vector<8x64xf32>
    %c1_85 = arith.constant 1 : index
    %c0_86 = arith.constant 0 : index
    %c0_87 = arith.constant 0 : index
    %167 = vector.load %arg11[%c1_85, %c0_86, %c0_87] : memref<4x1x64xf32, #tpu.memory_space<vmem>>, vector<1x1x64xf32>
    %168 = vector.shape_cast %167 : vector<1x1x64xf32> to vector<1x64xf32>
    %169 = vector.broadcast %168 : vector<1x64xf32> to vector<8x64xf32>
    %170 = arith.addf %166, %169 : vector<8x64xf32>
    %171 = arith.addf %130, %170 : vector<8x64xf32>
    %c1_88 = arith.constant 1 : index
    %c0_89 = arith.constant 0 : index
    %c0_90 = arith.constant 0 : index
    %172 = vector.load %arg12[%c1_88, %c0_89, %c0_90] : memref<4x1x64xf32, #tpu.memory_space<vmem>>, vector<1x1x64xf32>
    %173 = vector.shape_cast %172 : vector<1x1x64xf32> to vector<1x64xf32>
    %c1_91 = arith.constant 1 : index
    %c0_92 = arith.constant 0 : index
    %c0_93 = arith.constant 0 : index
    %174 = vector.load %arg13[%c1_91, %c0_92, %c0_93] : memref<4x1x64xf32, #tpu.memory_space<vmem>>, vector<1x1x64xf32>
    %175 = vector.shape_cast %174 : vector<1x1x64xf32> to vector<1x64xf32>
    %cst_94 = arith.constant dense<0.000000e+00> : vector<8xf32>
    %176 = vector.multi_reduction <add>, %171, %cst_94 [1] : vector<8x64xf32> to vector<8xf32>
    %177 = vector.shape_cast %176 : vector<8xf32> to vector<8x1xf32>
    %cst_95 = arith.constant 6.400000e+01 : f32
    %178 = vector.broadcast %cst_95 : f32 to vector<8x1xf32>
    %179 = arith.divf %177, %178 : vector<8x1xf32>
    %180 = vector.broadcast %179 : vector<8x1xf32> to vector<8x64xf32>
    %181 = arith.subf %171, %180 : vector<8x64xf32>
    %182 = arith.mulf %181, %181 : vector<8x64xf32>
    %cst_96 = arith.constant dense<0.000000e+00> : vector<8xf32>
    %183 = vector.multi_reduction <add>, %182, %cst_96 [1] : vector<8x64xf32> to vector<8xf32>
    %184 = vector.shape_cast %183 : vector<8xf32> to vector<8x1xf32>
    %cst_97 = arith.constant 6.400000e+01 : f32
    %185 = vector.broadcast %cst_97 : f32 to vector<8x1xf32>
    %186 = arith.divf %184, %185 : vector<8x1xf32>
    %187 = vector.broadcast %179 : vector<8x1xf32> to vector<8x64xf32>
    %188 = arith.subf %171, %187 : vector<8x64xf32>
    %cst_98 = arith.constant 9.99999974E-6 : f32
    %189 = vector.broadcast %cst_98 : f32 to vector<8x1xf32>
    %190 = arith.addf %186, %189 : vector<8x1xf32>
    %191 = math.rsqrt %190 : vector<8x1xf32>
    %192 = vector.broadcast %191 : vector<8x1xf32> to vector<8x64xf32>
    %193 = arith.mulf %188, %192 : vector<8x64xf32>
    %194 = vector.broadcast %173 : vector<1x64xf32> to vector<8x64xf32>
    %195 = arith.mulf %193, %194 : vector<8x64xf32>
    %196 = vector.broadcast %175 : vector<1x64xf32> to vector<8x64xf32>
    %197 = arith.addf %195, %196 : vector<8x64xf32>
    %198 = arith.truncf %197 : vector<8x64xf32> to vector<8x64xbf16>
    %c1_99 = arith.constant 1 : index
    %c0_100 = arith.constant 0 : index
    %c0_101 = arith.constant 0 : index
    %199 = vector.load %arg14[%c1_99, %c0_100, %c0_101] : memref<4x64x128xbf16, #tpu.memory_space<vmem>>, vector<1x64x128xbf16>
    %200 = vector.shape_cast %199 : vector<1x64x128xbf16> to vector<64x128xbf16>
    %cst_102 = arith.constant dense<0.000000e+00> : vector<8x128xf32>
    %201 = tpu.matmul %198, %200, %cst_102 {dimension_numbers = #tpu.dot_dimension_numbers<[1], [0], [0], [1], [0, 0, 1, 1], [], []>} : vector<8x64xbf16>, vector<64x128xbf16>, vector<8x128xf32> -> vector<8x128xf32>
    %c1_103 = arith.constant 1 : index
    %c0_104 = arith.constant 0 : index
    %c0_105 = arith.constant 0 : index
    %202 = vector.load %arg15[%c1_103, %c0_104, %c0_105] : memref<4x1x128xf32, #tpu.memory_space<vmem>>, vector<1x1x128xf32>
    %203 = vector.shape_cast %202 : vector<1x1x128xf32> to vector<1x128xf32>
    %204 = vector.broadcast %203 : vector<1x128xf32> to vector<8x128xf32>
    %205 = arith.addf %201, %204 : vector<8x128xf32>
    %cst_106 = arith.constant 0.000000e+00 : f32
    %206 = vector.broadcast %cst_106 : f32 to vector<8x128xf32>
    %207 = arith.maximumf %205, %206 : vector<8x128xf32>
    %208 = arith.truncf %207 : vector<8x128xf32> to vector<8x128xbf16>
    %c1_107 = arith.constant 1 : index
    %c0_108 = arith.constant 0 : index
    %c0_109 = arith.constant 0 : index
    %209 = vector.load %arg16[%c1_107, %c0_108, %c0_109] : memref<4x128x64xbf16, #tpu.memory_space<vmem>>, vector<1x128x64xbf16>
    %210 = vector.shape_cast %209 : vector<1x128x64xbf16> to vector<128x64xbf16>
    %cst_110 = arith.constant dense<0.000000e+00> : vector<8x64xf32>
    %211 = tpu.matmul %208, %210, %cst_110 {dimension_numbers = #tpu.dot_dimension_numbers<[1], [0], [0], [1], [0, 0, 1, 1], [], []>} : vector<8x128xbf16>, vector<128x64xbf16>, vector<8x64xf32> -> vector<8x64xf32>
    %c1_111 = arith.constant 1 : index
    %c0_112 = arith.constant 0 : index
    %c0_113 = arith.constant 0 : index
    %212 = vector.load %arg17[%c1_111, %c0_112, %c0_113] : memref<4x1x64xf32, #tpu.memory_space<vmem>>, vector<1x1x64xf32>
    %213 = vector.shape_cast %212 : vector<1x1x64xf32> to vector<1x64xf32>
    %214 = vector.broadcast %213 : vector<1x64xf32> to vector<8x64xf32>
    %215 = arith.addf %211, %214 : vector<8x64xf32>
    %216 = arith.addf %197, %215 : vector<8x64xf32>
    %c1_114 = arith.constant 1 : index
    %c0_115 = arith.constant 0 : index
    %c0_116 = arith.constant 0 : index
    %217 = vector.load %arg18[%c1_114, %c0_115, %c0_116] : memref<4x1x64xf32, #tpu.memory_space<vmem>>, vector<1x1x64xf32>
    %218 = vector.shape_cast %217 : vector<1x1x64xf32> to vector<1x64xf32>
    %c1_117 = arith.constant 1 : index
    %c0_118 = arith.constant 0 : index
    %c0_119 = arith.constant 0 : index
    %219 = vector.load %arg19[%c1_117, %c0_118, %c0_119] : memref<4x1x64xf32, #tpu.memory_space<vmem>>, vector<1x1x64xf32>
    %220 = vector.shape_cast %219 : vector<1x1x64xf32> to vector<1x64xf32>
    %cst_120 = arith.constant dense<0.000000e+00> : vector<8xf32>
    %221 = vector.multi_reduction <add>, %216, %cst_120 [1] : vector<8x64xf32> to vector<8xf32>
    %222 = vector.shape_cast %221 : vector<8xf32> to vector<8x1xf32>
    %cst_121 = arith.constant 6.400000e+01 : f32
    %223 = vector.broadcast %cst_121 : f32 to vector<8x1xf32>
    %224 = arith.divf %222, %223 : vector<8x1xf32>
    %225 = vector.broadcast %224 : vector<8x1xf32> to vector<8x64xf32>
    %226 = arith.subf %216, %225 : vector<8x64xf32>
    %227 = arith.mulf %226, %226 : vector<8x64xf32>
    %cst_122 = arith.constant dense<0.000000e+00> : vector<8xf32>
    %228 = vector.multi_reduction <add>, %227, %cst_122 [1] : vector<8x64xf32> to vector<8xf32>
    %229 = vector.shape_cast %228 : vector<8xf32> to vector<8x1xf32>
    %cst_123 = arith.constant 6.400000e+01 : f32
    %230 = vector.broadcast %cst_123 : f32 to vector<8x1xf32>
    %231 = arith.divf %229, %230 : vector<8x1xf32>
    %232 = vector.broadcast %224 : vector<8x1xf32> to vector<8x64xf32>
    %233 = arith.subf %216, %232 : vector<8x64xf32>
    %cst_124 = arith.constant 9.99999974E-6 : f32
    %234 = vector.broadcast %cst_124 : f32 to vector<8x1xf32>
    %235 = arith.addf %231, %234 : vector<8x1xf32>
    %236 = math.rsqrt %235 : vector<8x1xf32>
    %237 = vector.broadcast %236 : vector<8x1xf32> to vector<8x64xf32>
    %238 = arith.mulf %233, %237 : vector<8x64xf32>
    %239 = vector.broadcast %218 : vector<1x64xf32> to vector<8x64xf32>
    %240 = arith.mulf %238, %239 : vector<8x64xf32>
    %241 = vector.broadcast %220 : vector<1x64xf32> to vector<8x64xf32>
    %242 = arith.addf %240, %241 : vector<8x64xf32>
    %243 = arith.truncf %242 : vector<8x64xf32> to vector<8x64xbf16>
    %c2 = arith.constant 2 : index
    %c0_125 = arith.constant 0 : index
    %c0_126 = arith.constant 0 : index
    %244 = vector.load %arg8[%c2, %c0_125, %c0_126] : memref<4x64x192xbf16, #tpu.memory_space<vmem>>, vector<1x64x192xbf16>
    %245 = vector.shape_cast %244 : vector<1x64x192xbf16> to vector<64x192xbf16>
    %cst_127 = arith.constant dense<0.000000e+00> : vector<8x192xf32>
    %246 = tpu.matmul %243, %245, %cst_127 {dimension_numbers = #tpu.dot_dimension_numbers<[1], [0], [0], [1], [0, 0, 1, 1], [], []>} : vector<8x64xbf16>, vector<64x192xbf16>, vector<8x192xf32> -> vector<8x192xf32>
    %c2_128 = arith.constant 2 : index
    %c0_129 = arith.constant 0 : index
    %c0_130 = arith.constant 0 : index
    %247 = vector.load %arg9[%c2_128, %c0_129, %c0_130] : memref<4x1x192xf32, #tpu.memory_space<vmem>>, vector<1x1x192xf32>
    %248 = vector.shape_cast %247 : vector<1x1x192xf32> to vector<1x192xf32>
    %249 = vector.broadcast %248 : vector<1x192xf32> to vector<8x192xf32>
    %250 = arith.addf %246, %249 : vector<8x192xf32>
    %251 = vector.extract_strided_slice %250 {offsets = [0, 0], sizes = [8, 64], strides = [1, 1]} : vector<8x192xf32> to vector<8x64xf32>
    %cst_131 = arith.constant 2.500000e-01 : f32
    %252 = vector.broadcast %cst_131 : f32 to vector<8x64xf32>
    %253 = arith.mulf %251, %252 : vector<8x64xf32>
    %254 = vector.extract_strided_slice %250 {offsets = [0, 64], sizes = [8, 64], strides = [1, 1]} : vector<8x192xf32> to vector<8x64xf32>
    %255 = vector.extract_strided_slice %250 {offsets = [0, 128], sizes = [8, 64], strides = [1, 1]} : vector<8x192xf32> to vector<8x64xf32>
    %256 = tpu.concatenate %254, %254, %254, %254 in 0 : vector<8x64xf32>, vector<8x64xf32>, vector<8x64xf32>, vector<8x64xf32> -> vector<32x64xf32>
    %257 = arith.mulf %256, %18 : vector<32x64xf32>
    "tpu.trace_start"() <{level = 10 : i32, message = "nd,md->nm"}> : () -> ()
    %cst_132 = arith.constant dense<0.000000e+00> : vector<8x32xf32>
    %258 = tpu.matmul %253, %257, %cst_132 {dimension_numbers = #tpu.dot_dimension_numbers<[1], [1], [0], [0], [0, 0, 1, 0], [], []>} : vector<8x64xf32>, vector<32x64xf32>, vector<8x32xf32> -> vector<8x32xf32>
    "tpu.trace_stop"() : () -> ()
    %259 = arith.addf %258, %17 : vector<8x32xf32>
    %cst_133 = arith.constant dense<0xFF800000> : vector<8xf32>
    %260 = vector.multi_reduction <maximumf>, %259, %cst_133 [1] : vector<8x32xf32> to vector<8xf32>
    %261 = vector.shape_cast %260 : vector<8xf32> to vector<8x1xf32>
    %262 = vector.broadcast %261 : vector<8x1xf32> to vector<8x32xf32>
    %263 = arith.subf %259, %262 : vector<8x32xf32>
    %264 = math.exp %263 : vector<8x32xf32>
    %265 = tpu.concatenate %255, %255, %255, %255 in 0 : vector<8x64xf32>, vector<8x64xf32>, vector<8x64xf32>, vector<8x64xf32> -> vector<32x64xf32>
    %266 = arith.mulf %265, %18 : vector<32x64xf32>
    %267 = tpu.concatenate %266, %18 in 1 : vector<32x64xf32>, vector<32x64xf32> -> vector<32x128xf32>
    %cst_134 = arith.constant dense<0.000000e+00> : vector<8x128xf32>
    %268 = tpu.matmul %264, %267, %cst_134 {dimension_numbers = #tpu.dot_dimension_numbers<[1], [0], [0], [1], [0, 0, 1, 1], [], []>} : vector<8x32xf32>, vector<32x128xf32>, vector<8x128xf32> -> vector<8x128xf32>
    %269 = vector.extract_strided_slice %268 {offsets = [0, 0], sizes = [8, 64], strides = [1, 1]} : vector<8x128xf32> to vector<8x64xf32>
    %270 = vector.extract_strided_slice %268 {offsets = [0, 64], sizes = [8, 64], strides = [1, 1]} : vector<8x128xf32> to vector<8x64xf32>
    %cst_135 = arith.constant 1.000000e-30 : f32
    %271 = vector.broadcast %cst_135 : f32 to vector<8x64xf32>
    %272 = arith.addf %270, %271 : vector<8x64xf32>
    %273 = tpu.reciprocal %272 {approx = true} : vector<8x64xf32> -> vector<8x64xf32>
    %274 = arith.mulf %269, %273 : vector<8x64xf32>
    %275 = arith.truncf %274 : vector<8x64xf32> to vector<8x64xbf16>
    %c2_136 = arith.constant 2 : index
    %c0_137 = arith.constant 0 : index
    %c0_138 = arith.constant 0 : index
    %276 = vector.load %arg10[%c2_136, %c0_137, %c0_138] : memref<4x64x64xbf16, #tpu.memory_space<vmem>>, vector<1x64x64xbf16>
    %277 = vector.shape_cast %276 : vector<1x64x64xbf16> to vector<64x64xbf16>
    %cst_139 = arith.constant dense<0.000000e+00> : vector<8x64xf32>
    %278 = tpu.matmul %275, %277, %cst_139 {dimension_numbers = #tpu.dot_dimension_numbers<[1], [0], [0], [1], [0, 0, 1, 1], [], []>} : vector<8x64xbf16>, vector<64x64xbf16>, vector<8x64xf32> -> vector<8x64xf32>
    %c2_140 = arith.constant 2 : index
    %c0_141 = arith.constant 0 : index
    %c0_142 = arith.constant 0 : index
    %279 = vector.load %arg11[%c2_140, %c0_141, %c0_142] : memref<4x1x64xf32, #tpu.memory_space<vmem>>, vector<1x1x64xf32>
    %280 = vector.shape_cast %279 : vector<1x1x64xf32> to vector<1x64xf32>
    %281 = vector.broadcast %280 : vector<1x64xf32> to vector<8x64xf32>
    %282 = arith.addf %278, %281 : vector<8x64xf32>
    %283 = arith.addf %242, %282 : vector<8x64xf32>
    %c2_143 = arith.constant 2 : index
    %c0_144 = arith.constant 0 : index
    %c0_145 = arith.constant 0 : index
    %284 = vector.load %arg12[%c2_143, %c0_144, %c0_145] : memref<4x1x64xf32, #tpu.memory_space<vmem>>, vector<1x1x64xf32>
    %285 = vector.shape_cast %284 : vector<1x1x64xf32> to vector<1x64xf32>
    %c2_146 = arith.constant 2 : index
    %c0_147 = arith.constant 0 : index
    %c0_148 = arith.constant 0 : index
    %286 = vector.load %arg13[%c2_146, %c0_147, %c0_148] : memref<4x1x64xf32, #tpu.memory_space<vmem>>, vector<1x1x64xf32>
    %287 = vector.shape_cast %286 : vector<1x1x64xf32> to vector<1x64xf32>
    %cst_149 = arith.constant dense<0.000000e+00> : vector<8xf32>
    %288 = vector.multi_reduction <add>, %283, %cst_149 [1] : vector<8x64xf32> to vector<8xf32>
    %289 = vector.shape_cast %288 : vector<8xf32> to vector<8x1xf32>
    %cst_150 = arith.constant 6.400000e+01 : f32
    %290 = vector.broadcast %cst_150 : f32 to vector<8x1xf32>
    %291 = arith.divf %289, %290 : vector<8x1xf32>
    %292 = vector.broadcast %291 : vector<8x1xf32> to vector<8x64xf32>
    %293 = arith.subf %283, %292 : vector<8x64xf32>
    %294 = arith.mulf %293, %293 : vector<8x64xf32>
    %cst_151 = arith.constant dense<0.000000e+00> : vector<8xf32>
    %295 = vector.multi_reduction <add>, %294, %cst_151 [1] : vector<8x64xf32> to vector<8xf32>
    %296 = vector.shape_cast %295 : vector<8xf32> to vector<8x1xf32>
    %cst_152 = arith.constant 6.400000e+01 : f32
    %297 = vector.broadcast %cst_152 : f32 to vector<8x1xf32>
    %298 = arith.divf %296, %297 : vector<8x1xf32>
    %299 = vector.broadcast %291 : vector<8x1xf32> to vector<8x64xf32>
    %300 = arith.subf %283, %299 : vector<8x64xf32>
    %cst_153 = arith.constant 9.99999974E-6 : f32
    %301 = vector.broadcast %cst_153 : f32 to vector<8x1xf32>
    %302 = arith.addf %298, %301 : vector<8x1xf32>
    %303 = math.rsqrt %302 : vector<8x1xf32>
    %304 = vector.broadcast %303 : vector<8x1xf32> to vector<8x64xf32>
    %305 = arith.mulf %300, %304 : vector<8x64xf32>
    %306 = vector.broadcast %285 : vector<1x64xf32> to vector<8x64xf32>
    %307 = arith.mulf %305, %306 : vector<8x64xf32>
    %308 = vector.broadcast %287 : vector<1x64xf32> to vector<8x64xf32>
    %309 = arith.addf %307, %308 : vector<8x64xf32>
    %310 = arith.truncf %309 : vector<8x64xf32> to vector<8x64xbf16>
    %c2_154 = arith.constant 2 : index
    %c0_155 = arith.constant 0 : index
    %c0_156 = arith.constant 0 : index
    %311 = vector.load %arg14[%c2_154, %c0_155, %c0_156] : memref<4x64x128xbf16, #tpu.memory_space<vmem>>, vector<1x64x128xbf16>
    %312 = vector.shape_cast %311 : vector<1x64x128xbf16> to vector<64x128xbf16>
    %cst_157 = arith.constant dense<0.000000e+00> : vector<8x128xf32>
    %313 = tpu.matmul %310, %312, %cst_157 {dimension_numbers = #tpu.dot_dimension_numbers<[1], [0], [0], [1], [0, 0, 1, 1], [], []>} : vector<8x64xbf16>, vector<64x128xbf16>, vector<8x128xf32> -> vector<8x128xf32>
    %c2_158 = arith.constant 2 : index
    %c0_159 = arith.constant 0 : index
    %c0_160 = arith.constant 0 : index
    %314 = vector.load %arg15[%c2_158, %c0_159, %c0_160] : memref<4x1x128xf32, #tpu.memory_space<vmem>>, vector<1x1x128xf32>
    %315 = vector.shape_cast %314 : vector<1x1x128xf32> to vector<1x128xf32>
    %316 = vector.broadcast %315 : vector<1x128xf32> to vector<8x128xf32>
    %317 = arith.addf %313, %316 : vector<8x128xf32>
    %cst_161 = arith.constant 0.000000e+00 : f32
    %318 = vector.broadcast %cst_161 : f32 to vector<8x128xf32>
    %319 = arith.maximumf %317, %318 : vector<8x128xf32>
    %320 = arith.truncf %319 : vector<8x128xf32> to vector<8x128xbf16>
    %c2_162 = arith.constant 2 : index
    %c0_163 = arith.constant 0 : index
    %c0_164 = arith.constant 0 : index
    %321 = vector.load %arg16[%c2_162, %c0_163, %c0_164] : memref<4x128x64xbf16, #tpu.memory_space<vmem>>, vector<1x128x64xbf16>
    %322 = vector.shape_cast %321 : vector<1x128x64xbf16> to vector<128x64xbf16>
    %cst_165 = arith.constant dense<0.000000e+00> : vector<8x64xf32>
    %323 = tpu.matmul %320, %322, %cst_165 {dimension_numbers = #tpu.dot_dimension_numbers<[1], [0], [0], [1], [0, 0, 1, 1], [], []>} : vector<8x128xbf16>, vector<128x64xbf16>, vector<8x64xf32> -> vector<8x64xf32>
    %c2_166 = arith.constant 2 : index
    %c0_167 = arith.constant 0 : index
    %c0_168 = arith.constant 0 : index
    %324 = vector.load %arg17[%c2_166, %c0_167, %c0_168] : memref<4x1x64xf32, #tpu.memory_space<vmem>>, vector<1x1x64xf32>
    %325 = vector.shape_cast %324 : vector<1x1x64xf32> to vector<1x64xf32>
    %326 = vector.broadcast %325 : vector<1x64xf32> to vector<8x64xf32>
    %327 = arith.addf %323, %326 : vector<8x64xf32>
    %328 = arith.addf %309, %327 : vector<8x64xf32>
    %c2_169 = arith.constant 2 : index
    %c0_170 = arith.constant 0 : index
    %c0_171 = arith.constant 0 : index
    %329 = vector.load %arg18[%c2_169, %c0_170, %c0_171] : memref<4x1x64xf32, #tpu.memory_space<vmem>>, vector<1x1x64xf32>
    %330 = vector.shape_cast %329 : vector<1x1x64xf32> to vector<1x64xf32>
    %c2_172 = arith.constant 2 : index
    %c0_173 = arith.constant 0 : index
    %c0_174 = arith.constant 0 : index
    %331 = vector.load %arg19[%c2_172, %c0_173, %c0_174] : memref<4x1x64xf32, #tpu.memory_space<vmem>>, vector<1x1x64xf32>
    %332 = vector.shape_cast %331 : vector<1x1x64xf32> to vector<1x64xf32>
    %cst_175 = arith.constant dense<0.000000e+00> : vector<8xf32>
    %333 = vector.multi_reduction <add>, %328, %cst_175 [1] : vector<8x64xf32> to vector<8xf32>
    %334 = vector.shape_cast %333 : vector<8xf32> to vector<8x1xf32>
    %cst_176 = arith.constant 6.400000e+01 : f32
    %335 = vector.broadcast %cst_176 : f32 to vector<8x1xf32>
    %336 = arith.divf %334, %335 : vector<8x1xf32>
    %337 = vector.broadcast %336 : vector<8x1xf32> to vector<8x64xf32>
    %338 = arith.subf %328, %337 : vector<8x64xf32>
    %339 = arith.mulf %338, %338 : vector<8x64xf32>
    %cst_177 = arith.constant dense<0.000000e+00> : vector<8xf32>
    %340 = vector.multi_reduction <add>, %339, %cst_177 [1] : vector<8x64xf32> to vector<8xf32>
    %341 = vector.shape_cast %340 : vector<8xf32> to vector<8x1xf32>
    %cst_178 = arith.constant 6.400000e+01 : f32
    %342 = vector.broadcast %cst_178 : f32 to vector<8x1xf32>
    %343 = arith.divf %341, %342 : vector<8x1xf32>
    %344 = vector.broadcast %336 : vector<8x1xf32> to vector<8x64xf32>
    %345 = arith.subf %328, %344 : vector<8x64xf32>
    %cst_179 = arith.constant 9.99999974E-6 : f32
    %346 = vector.broadcast %cst_179 : f32 to vector<8x1xf32>
    %347 = arith.addf %343, %346 : vector<8x1xf32>
    %348 = math.rsqrt %347 : vector<8x1xf32>
    %349 = vector.broadcast %348 : vector<8x1xf32> to vector<8x64xf32>
    %350 = arith.mulf %345, %349 : vector<8x64xf32>
    %351 = vector.broadcast %330 : vector<1x64xf32> to vector<8x64xf32>
    %352 = arith.mulf %350, %351 : vector<8x64xf32>
    %353 = vector.broadcast %332 : vector<1x64xf32> to vector<8x64xf32>
    %354 = arith.addf %352, %353 : vector<8x64xf32>
    %355 = arith.truncf %354 : vector<8x64xf32> to vector<8x64xbf16>
    %c3 = arith.constant 3 : index
    %c0_180 = arith.constant 0 : index
    %c0_181 = arith.constant 0 : index
    %356 = vector.load %arg8[%c3, %c0_180, %c0_181] : memref<4x64x192xbf16, #tpu.memory_space<vmem>>, vector<1x64x192xbf16>
    %357 = vector.shape_cast %356 : vector<1x64x192xbf16> to vector<64x192xbf16>
    %cst_182 = arith.constant dense<0.000000e+00> : vector<8x192xf32>
    %358 = tpu.matmul %355, %357, %cst_182 {dimension_numbers = #tpu.dot_dimension_numbers<[1], [0], [0], [1], [0, 0, 1, 1], [], []>} : vector<8x64xbf16>, vector<64x192xbf16>, vector<8x192xf32> -> vector<8x192xf32>
    %c3_183 = arith.constant 3 : index
    %c0_184 = arith.constant 0 : index
    %c0_185 = arith.constant 0 : index
    %359 = vector.load %arg9[%c3_183, %c0_184, %c0_185] : memref<4x1x192xf32, #tpu.memory_space<vmem>>, vector<1x1x192xf32>
    %360 = vector.shape_cast %359 : vector<1x1x192xf32> to vector<1x192xf32>
    %361 = vector.broadcast %360 : vector<1x192xf32> to vector<8x192xf32>
    %362 = arith.addf %358, %361 : vector<8x192xf32>
    %363 = vector.extract_strided_slice %362 {offsets = [0, 0], sizes = [8, 64], strides = [1, 1]} : vector<8x192xf32> to vector<8x64xf32>
    %cst_186 = arith.constant 2.500000e-01 : f32
    %364 = vector.broadcast %cst_186 : f32 to vector<8x64xf32>
    %365 = arith.mulf %363, %364 : vector<8x64xf32>
    %366 = vector.extract_strided_slice %362 {offsets = [0, 64], sizes = [8, 64], strides = [1, 1]} : vector<8x192xf32> to vector<8x64xf32>
    %367 = vector.extract_strided_slice %362 {offsets = [0, 128], sizes = [8, 64], strides = [1, 1]} : vector<8x192xf32> to vector<8x64xf32>
    %368 = tpu.concatenate %366, %366, %366, %366 in 0 : vector<8x64xf32>, vector<8x64xf32>, vector<8x64xf32>, vector<8x64xf32> -> vector<32x64xf32>
    %369 = arith.mulf %368, %18 : vector<32x64xf32>
    "tpu.trace_start"() <{level = 10 : i32, message = "nd,md->nm"}> : () -> ()
    %cst_187 = arith.constant dense<0.000000e+00> : vector<8x32xf32>
    %370 = tpu.matmul %365, %369, %cst_187 {dimension_numbers = #tpu.dot_dimension_numbers<[1], [1], [0], [0], [0, 0, 1, 0], [], []>} : vector<8x64xf32>, vector<32x64xf32>, vector<8x32xf32> -> vector<8x32xf32>
    "tpu.trace_stop"() : () -> ()
    %371 = arith.addf %370, %17 : vector<8x32xf32>
    %cst_188 = arith.constant dense<0xFF800000> : vector<8xf32>
    %372 = vector.multi_reduction <maximumf>, %371, %cst_188 [1] : vector<8x32xf32> to vector<8xf32>
    %373 = vector.shape_cast %372 : vector<8xf32> to vector<8x1xf32>
    %374 = vector.broadcast %373 : vector<8x1xf32> to vector<8x32xf32>
    %375 = arith.subf %371, %374 : vector<8x32xf32>
    %376 = math.exp %375 : vector<8x32xf32>
    %377 = tpu.concatenate %367, %367, %367, %367 in 0 : vector<8x64xf32>, vector<8x64xf32>, vector<8x64xf32>, vector<8x64xf32> -> vector<32x64xf32>
    %378 = arith.mulf %377, %18 : vector<32x64xf32>
    %379 = tpu.concatenate %378, %18 in 1 : vector<32x64xf32>, vector<32x64xf32> -> vector<32x128xf32>
    %cst_189 = arith.constant dense<0.000000e+00> : vector<8x128xf32>
    %380 = tpu.matmul %376, %379, %cst_189 {dimension_numbers = #tpu.dot_dimension_numbers<[1], [0], [0], [1], [0, 0, 1, 1], [], []>} : vector<8x32xf32>, vector<32x128xf32>, vector<8x128xf32> -> vector<8x128xf32>
    %381 = vector.extract_strided_slice %380 {offsets = [0, 0], sizes = [8, 64], strides = [1, 1]} : vector<8x128xf32> to vector<8x64xf32>
    %382 = vector.extract_strided_slice %380 {offsets = [0, 64], sizes = [8, 64], strides = [1, 1]} : vector<8x128xf32> to vector<8x64xf32>
    %cst_190 = arith.constant 1.000000e-30 : f32
    %383 = vector.broadcast %cst_190 : f32 to vector<8x64xf32>
    %384 = arith.addf %382, %383 : vector<8x64xf32>
    %385 = tpu.reciprocal %384 {approx = true} : vector<8x64xf32> -> vector<8x64xf32>
    %386 = arith.mulf %381, %385 : vector<8x64xf32>
    %387 = arith.truncf %386 : vector<8x64xf32> to vector<8x64xbf16>
    %c3_191 = arith.constant 3 : index
    %c0_192 = arith.constant 0 : index
    %c0_193 = arith.constant 0 : index
    %388 = vector.load %arg10[%c3_191, %c0_192, %c0_193] : memref<4x64x64xbf16, #tpu.memory_space<vmem>>, vector<1x64x64xbf16>
    %389 = vector.shape_cast %388 : vector<1x64x64xbf16> to vector<64x64xbf16>
    %cst_194 = arith.constant dense<0.000000e+00> : vector<8x64xf32>
    %390 = tpu.matmul %387, %389, %cst_194 {dimension_numbers = #tpu.dot_dimension_numbers<[1], [0], [0], [1], [0, 0, 1, 1], [], []>} : vector<8x64xbf16>, vector<64x64xbf16>, vector<8x64xf32> -> vector<8x64xf32>
    %c3_195 = arith.constant 3 : index
    %c0_196 = arith.constant 0 : index
    %c0_197 = arith.constant 0 : index
    %391 = vector.load %arg11[%c3_195, %c0_196, %c0_197] : memref<4x1x64xf32, #tpu.memory_space<vmem>>, vector<1x1x64xf32>
    %392 = vector.shape_cast %391 : vector<1x1x64xf32> to vector<1x64xf32>
    %393 = vector.broadcast %392 : vector<1x64xf32> to vector<8x64xf32>
    %394 = arith.addf %390, %393 : vector<8x64xf32>
    %395 = arith.addf %354, %394 : vector<8x64xf32>
    %c3_198 = arith.constant 3 : index
    %c0_199 = arith.constant 0 : index
    %c0_200 = arith.constant 0 : index
    %396 = vector.load %arg12[%c3_198, %c0_199, %c0_200] : memref<4x1x64xf32, #tpu.memory_space<vmem>>, vector<1x1x64xf32>
    %397 = vector.shape_cast %396 : vector<1x1x64xf32> to vector<1x64xf32>
    %c3_201 = arith.constant 3 : index
    %c0_202 = arith.constant 0 : index
    %c0_203 = arith.constant 0 : index
    %398 = vector.load %arg13[%c3_201, %c0_202, %c0_203] : memref<4x1x64xf32, #tpu.memory_space<vmem>>, vector<1x1x64xf32>
    %399 = vector.shape_cast %398 : vector<1x1x64xf32> to vector<1x64xf32>
    %cst_204 = arith.constant dense<0.000000e+00> : vector<8xf32>
    %400 = vector.multi_reduction <add>, %395, %cst_204 [1] : vector<8x64xf32> to vector<8xf32>
    %401 = vector.shape_cast %400 : vector<8xf32> to vector<8x1xf32>
    %cst_205 = arith.constant 6.400000e+01 : f32
    %402 = vector.broadcast %cst_205 : f32 to vector<8x1xf32>
    %403 = arith.divf %401, %402 : vector<8x1xf32>
    %404 = vector.broadcast %403 : vector<8x1xf32> to vector<8x64xf32>
    %405 = arith.subf %395, %404 : vector<8x64xf32>
    %406 = arith.mulf %405, %405 : vector<8x64xf32>
    %cst_206 = arith.constant dense<0.000000e+00> : vector<8xf32>
    %407 = vector.multi_reduction <add>, %406, %cst_206 [1] : vector<8x64xf32> to vector<8xf32>
    %408 = vector.shape_cast %407 : vector<8xf32> to vector<8x1xf32>
    %cst_207 = arith.constant 6.400000e+01 : f32
    %409 = vector.broadcast %cst_207 : f32 to vector<8x1xf32>
    %410 = arith.divf %408, %409 : vector<8x1xf32>
    %411 = vector.broadcast %403 : vector<8x1xf32> to vector<8x64xf32>
    %412 = arith.subf %395, %411 : vector<8x64xf32>
    %cst_208 = arith.constant 9.99999974E-6 : f32
    %413 = vector.broadcast %cst_208 : f32 to vector<8x1xf32>
    %414 = arith.addf %410, %413 : vector<8x1xf32>
    %415 = math.rsqrt %414 : vector<8x1xf32>
    %416 = vector.broadcast %415 : vector<8x1xf32> to vector<8x64xf32>
    %417 = arith.mulf %412, %416 : vector<8x64xf32>
    %418 = vector.broadcast %397 : vector<1x64xf32> to vector<8x64xf32>
    %419 = arith.mulf %417, %418 : vector<8x64xf32>
    %420 = vector.broadcast %399 : vector<1x64xf32> to vector<8x64xf32>
    %421 = arith.addf %419, %420 : vector<8x64xf32>
    %422 = arith.truncf %421 : vector<8x64xf32> to vector<8x64xbf16>
    %c3_209 = arith.constant 3 : index
    %c0_210 = arith.constant 0 : index
    %c0_211 = arith.constant 0 : index
    %423 = vector.load %arg14[%c3_209, %c0_210, %c0_211] : memref<4x64x128xbf16, #tpu.memory_space<vmem>>, vector<1x64x128xbf16>
    %424 = vector.shape_cast %423 : vector<1x64x128xbf16> to vector<64x128xbf16>
    %cst_212 = arith.constant dense<0.000000e+00> : vector<8x128xf32>
    %425 = tpu.matmul %422, %424, %cst_212 {dimension_numbers = #tpu.dot_dimension_numbers<[1], [0], [0], [1], [0, 0, 1, 1], [], []>} : vector<8x64xbf16>, vector<64x128xbf16>, vector<8x128xf32> -> vector<8x128xf32>
    %c3_213 = arith.constant 3 : index
    %c0_214 = arith.constant 0 : index
    %c0_215 = arith.constant 0 : index
    %426 = vector.load %arg15[%c3_213, %c0_214, %c0_215] : memref<4x1x128xf32, #tpu.memory_space<vmem>>, vector<1x1x128xf32>
    %427 = vector.shape_cast %426 : vector<1x1x128xf32> to vector<1x128xf32>
    %428 = vector.broadcast %427 : vector<1x128xf32> to vector<8x128xf32>
    %429 = arith.addf %425, %428 : vector<8x128xf32>
    %cst_216 = arith.constant 0.000000e+00 : f32
    %430 = vector.broadcast %cst_216 : f32 to vector<8x128xf32>
    %431 = arith.maximumf %429, %430 : vector<8x128xf32>
    %432 = arith.truncf %431 : vector<8x128xf32> to vector<8x128xbf16>
    %c3_217 = arith.constant 3 : index
    %c0_218 = arith.constant 0 : index
    %c0_219 = arith.constant 0 : index
    %433 = vector.load %arg16[%c3_217, %c0_218, %c0_219] : memref<4x128x64xbf16, #tpu.memory_space<vmem>>, vector<1x128x64xbf16>
    %434 = vector.shape_cast %433 : vector<1x128x64xbf16> to vector<128x64xbf16>
    %cst_220 = arith.constant dense<0.000000e+00> : vector<8x64xf32>
    %435 = tpu.matmul %432, %434, %cst_220 {dimension_numbers = #tpu.dot_dimension_numbers<[1], [0], [0], [1], [0, 0, 1, 1], [], []>} : vector<8x128xbf16>, vector<128x64xbf16>, vector<8x64xf32> -> vector<8x64xf32>
    %c3_221 = arith.constant 3 : index
    %c0_222 = arith.constant 0 : index
    %c0_223 = arith.constant 0 : index
    %436 = vector.load %arg17[%c3_221, %c0_222, %c0_223] : memref<4x1x64xf32, #tpu.memory_space<vmem>>, vector<1x1x64xf32>
    %437 = vector.shape_cast %436 : vector<1x1x64xf32> to vector<1x64xf32>
    %438 = vector.broadcast %437 : vector<1x64xf32> to vector<8x64xf32>
    %439 = arith.addf %435, %438 : vector<8x64xf32>
    %440 = arith.addf %421, %439 : vector<8x64xf32>
    %c3_224 = arith.constant 3 : index
    %c0_225 = arith.constant 0 : index
    %c0_226 = arith.constant 0 : index
    %441 = vector.load %arg18[%c3_224, %c0_225, %c0_226] : memref<4x1x64xf32, #tpu.memory_space<vmem>>, vector<1x1x64xf32>
    %442 = vector.shape_cast %441 : vector<1x1x64xf32> to vector<1x64xf32>
    %c3_227 = arith.constant 3 : index
    %c0_228 = arith.constant 0 : index
    %c0_229 = arith.constant 0 : index
    %443 = vector.load %arg19[%c3_227, %c0_228, %c0_229] : memref<4x1x64xf32, #tpu.memory_space<vmem>>, vector<1x1x64xf32>
    %444 = vector.shape_cast %443 : vector<1x1x64xf32> to vector<1x64xf32>
    %cst_230 = arith.constant dense<0.000000e+00> : vector<8xf32>
    %445 = vector.multi_reduction <add>, %440, %cst_230 [1] : vector<8x64xf32> to vector<8xf32>
    %446 = vector.shape_cast %445 : vector<8xf32> to vector<8x1xf32>
    %cst_231 = arith.constant 6.400000e+01 : f32
    %447 = vector.broadcast %cst_231 : f32 to vector<8x1xf32>
    %448 = arith.divf %446, %447 : vector<8x1xf32>
    %449 = vector.broadcast %448 : vector<8x1xf32> to vector<8x64xf32>
    %450 = arith.subf %440, %449 : vector<8x64xf32>
    %451 = arith.mulf %450, %450 : vector<8x64xf32>
    %cst_232 = arith.constant dense<0.000000e+00> : vector<8xf32>
    %452 = vector.multi_reduction <add>, %451, %cst_232 [1] : vector<8x64xf32> to vector<8xf32>
    %453 = vector.shape_cast %452 : vector<8xf32> to vector<8x1xf32>
    %cst_233 = arith.constant 6.400000e+01 : f32
    %454 = vector.broadcast %cst_233 : f32 to vector<8x1xf32>
    %455 = arith.divf %453, %454 : vector<8x1xf32>
    %456 = vector.broadcast %448 : vector<8x1xf32> to vector<8x64xf32>
    %457 = arith.subf %440, %456 : vector<8x64xf32>
    %cst_234 = arith.constant 9.99999974E-6 : f32
    %458 = vector.broadcast %cst_234 : f32 to vector<8x1xf32>
    %459 = arith.addf %455, %458 : vector<8x1xf32>
    %460 = math.rsqrt %459 : vector<8x1xf32>
    %461 = vector.broadcast %460 : vector<8x1xf32> to vector<8x64xf32>
    %462 = arith.mulf %457, %461 : vector<8x64xf32>
    %463 = vector.broadcast %442 : vector<1x64xf32> to vector<8x64xf32>
    %464 = arith.mulf %462, %463 : vector<8x64xf32>
    %465 = vector.broadcast %444 : vector<1x64xf32> to vector<8x64xf32>
    %466 = arith.addf %464, %465 : vector<8x64xf32>
    %467 = vector.extract_strided_slice %466 {offsets = [0, 0], sizes = [1, 64], strides = [1, 1]} : vector<8x64xf32> to vector<1x64xf32>
    %468 = vector.extract_strided_slice %466 {offsets = [4, 0], sizes = [1, 64], strides = [1, 1]} : vector<8x64xf32> to vector<1x64xf32>
    %469 = tpu.concatenate %467, %468 in 0 : vector<1x64xf32>, vector<1x64xf32> -> vector<2x64xf32>
    %470 = vector.shape_cast %469 : vector<2x64xf32> to vector<1x2x64xf32>
    %c0_235 = arith.constant 0 : index
    %c0_236 = arith.constant 0 : index
    %c0_237 = arith.constant 0 : index
    %471 = vector.load %arg20[%c0_235, %c0_236, %c0_237] : memref<1x2x64xf32, #tpu.memory_space<vmem>>, vector<1x2x64xf32>
    tpu.vector_store %arg20[%c0_235, %c0_236, %c0_237], %470 {strides = array<i32>} : memref<1x2x64xf32, #tpu.memory_space<vmem>>, vector<1x2x64xf32>,
    return
  }
  func.func @transform_0(%arg0: i32) -> (i32, i32) {
    %c0_i32 = arith.constant 0 : i32
    %c0_i32_0 = arith.constant 0 : i32
    return %arg0, %c0_i32 : i32, i32
  }
  func.func @transform_1(%arg0: i32) -> (i32, i32) {
    %c0_i32 = arith.constant 0 : i32
    %c0_i32_0 = arith.constant 0 : i32
    return %arg0, %c0_i32 : i32, i32
  }
  func.func @transform_2(%arg0: i32) -> (i32, i32) {
    %c0_i32 = arith.constant 0 : i32
    %c0_i32_0 = arith.constant 0 : i32
    %c0_i32_1 = arith.constant 0 : i32
    return %c0_i32, %c0_i32_0 : i32, i32
  }
  func.func @transform_3(%arg0: i32) -> (i32, i32) {
    %c0_i32 = arith.constant 0 : i32
    %c0_i32_0 = arith.constant 0 : i32
    %c0_i32_1 = arith.constant 0 : i32
    return %c0_i32, %c0_i32_0 : i32, i32
  }
  func.func @transform_4(%arg0: i32) -> (i32, i32) {
    %c0_i32 = arith.constant 0 : i32
    %c0_i32_0 = arith.constant 0 : i32
    %c0_i32_1 = arith.constant 0 : i32
    return %c0_i32, %c0_i32_0 : i32, i32
  }
  func.func @transform_5(%arg0: i32) -> (i32, i32) {
    %c0_i32 = arith.constant 0 : i32
    %c0_i32_0 = arith.constant 0 : i32
    %c0_i32_1 = arith.constant 0 : i32
    return %c0_i32, %c0_i32_0 : i32, i32
  }
  func.func @transform_6(%arg0: i32) -> (i32, i32) {
    %c0_i32 = arith.constant 0 : i32
    %c0_i32_0 = arith.constant 0 : i32
    %c0_i32_1 = arith.constant 0 : i32
    return %c0_i32, %c0_i32_0 : i32, i32
  }
  func.func @transform_7(%arg0: i32) -> (i32, i32, i32) {
    %c0_i32 = arith.constant 0 : i32
    %c0_i32_0 = arith.constant 0 : i32
    %c0_i32_1 = arith.constant 0 : i32
    %c0_i32_2 = arith.constant 0 : i32
    return %c0_i32, %c0_i32_0, %c0_i32_1 : i32, i32, i32
  }
  func.func @transform_8(%arg0: i32) -> (i32, i32, i32) {
    %c0_i32 = arith.constant 0 : i32
    %c0_i32_0 = arith.constant 0 : i32
    %c0_i32_1 = arith.constant 0 : i32
    %c0_i32_2 = arith.constant 0 : i32
    return %c0_i32, %c0_i32_0, %c0_i32_1 : i32, i32, i32
  }
  func.func @transform_9(%arg0: i32) -> (i32, i32, i32) {
    %c0_i32 = arith.constant 0 : i32
    %c0_i32_0 = arith.constant 0 : i32
    %c0_i32_1 = arith.constant 0 : i32
    %c0_i32_2 = arith.constant 0 : i32
    return %c0_i32, %c0_i32_0, %c0_i32_1 : i32, i32, i32
  }
  func.func @transform_10(%arg0: i32) -> (i32, i32, i32) {
    %c0_i32 = arith.constant 0 : i32
    %c0_i32_0 = arith.constant 0 : i32
    %c0_i32_1 = arith.constant 0 : i32
    %c0_i32_2 = arith.constant 0 : i32
    return %c0_i32, %c0_i32_0, %c0_i32_1 : i32, i32, i32
  }
  func.func @transform_11(%arg0: i32) -> (i32, i32, i32) {
    %c0_i32 = arith.constant 0 : i32
    %c0_i32_0 = arith.constant 0 : i32
    %c0_i32_1 = arith.constant 0 : i32
    %c0_i32_2 = arith.constant 0 : i32
    return %c0_i32, %c0_i32_0, %c0_i32_1 : i32, i32, i32
  }
  func.func @transform_12(%arg0: i32) -> (i32, i32, i32) {
    %c0_i32 = arith.constant 0 : i32
    %c0_i32_0 = arith.constant 0 : i32
    %c0_i32_1 = arith.constant 0 : i32
    %c0_i32_2 = arith.constant 0 : i32
    return %c0_i32, %c0_i32_0, %c0_i32_1 : i32, i32, i32
  }
  func.func @transform_13(%arg0: i32) -> (i32, i32, i32) {
    %c0_i32 = arith.constant 0 : i32
    %c0_i32_0 = arith.constant 0 : i32
    %c0_i32_1 = arith.constant 0 : i32
    %c0_i32_2 = arith.constant 0 : i32
    return %c0_i32, %c0_i32_0, %c0_i32_1 : i32, i32, i32
  }
  func.func @transform_14(%arg0: i32) -> (i32, i32, i32) {
    %c0_i32 = arith.constant 0 : i32
    %c0_i32_0 = arith.constant 0 : i32
    %c0_i32_1 = arith.constant 0 : i32
    %c0_i32_2 = arith.constant 0 : i32
    return %c0_i32, %c0_i32_0, %c0_i32_1 : i32, i32, i32
  }
  func.func @transform_15(%arg0: i32) -> (i32, i32, i32) {
    %c0_i32 = arith.constant 0 : i32
    %c0_i32_0 = arith.constant 0 : i32
    %c0_i32_1 = arith.constant 0 : i32
    %c0_i32_2 = arith.constant 0 : i32
    return %c0_i32, %c0_i32_0, %c0_i32_1 : i32, i32, i32
  }
  func.func @transform_16(%arg0: i32) -> (i32, i32, i32) {
    %c0_i32 = arith.constant 0 : i32
    %c0_i32_0 = arith.constant 0 : i32
    %c0_i32_1 = arith.constant 0 : i32
    %c0_i32_2 = arith.constant 0 : i32
    return %c0_i32, %c0_i32_0, %c0_i32_1 : i32, i32, i32
  }
  func.func @transform_17(%arg0: i32) -> (i32, i32, i32) {
    %c0_i32 = arith.constant 0 : i32
    %c0_i32_0 = arith.constant 0 : i32
    %c0_i32_1 = arith.constant 0 : i32
    %c0_i32_2 = arith.constant 0 : i32
    return %c0_i32, %c0_i32_0, %c0_i32_1 : i32, i32, i32
  }
  func.func @transform_18(%arg0: i32) -> (i32, i32, i32) {
    %c0_i32 = arith.constant 0 : i32
    %c0_i32_0 = arith.constant 0 : i32
    %c0_i32_1 = arith.constant 0 : i32
    %c0_i32_2 = arith.constant 0 : i32
    return %c0_i32, %c0_i32_0, %c0_i32_1 : i32, i32, i32
  }
  func.func @transform_19(%arg0: i32) -> (i32, i32, i32) {
    %c0_i32 = arith.constant 0 : i32
    %c0_i32_0 = arith.constant 0 : i32
    %c0_i32_1 = arith.constant 0 : i32
    return %arg0, %c0_i32, %c0_i32_0 : i32, i32, i32
  }
}

</mosaic_0001>

<llo_original>
// kernel: tpu_custom_call.1
$region0: #{tpu_custom_call.1}
  #allocation0 [shape = 'u32[]', space=smem, size = 0x4, offset = 0x4, fixed_abs, tag = 'smem constant byte address 0x4 - core index']
  #allocation1 [shape = 'u32[144,128]{1,0:T(1,128)}', space=vmem, size = 0x12000, scoped, tag = 'internal scratch']
  %s0 = inlined_call_operand.vmem [shape: s32[256,1], index: 0, kind: input, shape index: {}]
  %s1 = inlined_call_operand.hbm [shape: f32[16,128], index: 1, kind: input, shape index: {}]
  %s2 = inlined_call_operand.hbm [shape: bf16[64,64], index: 2, kind: input, shape index: {}]
  %s3 = inlined_call_operand.hbm [shape: f32[1,64], index: 3, kind: input, shape index: {}]
  %s4 = inlined_call_operand.vmem [shape: f32[8,64], index: 4, kind: input, shape index: {}]
  %s5 = inlined_call_operand.hbm [shape: f32[8,32], index: 5, kind: input, shape index: {}]
  %s6 = inlined_call_operand.hbm [shape: f32[32,64], index: 6, kind: input, shape index: {}]
  %s7 = inlined_call_operand.vmem [shape: bf16[4,64,192], index: 7, kind: input, shape index: {}]
  %s8 = inlined_call_operand.vmem [shape: f32[4,1,192], index: 8, kind: input, shape index: {}]
  %s9 = inlined_call_operand.vmem [shape: bf16[4,64,64], index: 9, kind: input, shape index: {}]
  %s10 = inlined_call_operand.hbm [shape: f32[4,1,64], index: 10, kind: input, shape index: {}]
  %s11 = inlined_call_operand.hbm [shape: f32[4,1,64], index: 11, kind: input, shape index: {}]
  %s12 = inlined_call_operand.vmem [shape: f32[4,1,64], index: 12, kind: input, shape index: {}]
  %s13 = inlined_call_operand.vmem [shape: bf16[4,64,128], index: 13, kind: input, shape index: {}]
  %s14 = inlined_call_operand.hbm [shape: f32[4,1,128], index: 14, kind: input, shape index: {}]
  %s15 = inlined_call_operand.vmem [shape: bf16[4,128,64], index: 15, kind: input, shape index: {}]
  %s16 = inlined_call_operand.vmem [shape: f32[4,1,64], index: 16, kind: input, shape index: {}]
  %s17 = inlined_call_operand.vmem [shape: f32[4,1,64], index: 17, kind: input, shape index: {}]
  %s18 = inlined_call_operand.hbm [shape: f32[4,1,64], index: 18, kind: input, shape index: {}]
  %s19 = inlined_call_operand.hbm [shape: f32[2,2,64], index: 19, kind: output, shape index: {}]
  %s20 = sld [smem:[#allocation0]]
  $region145: #{tpu_custom_call.1} parent=0
    _
  %s22 = ssub.s32 1, %s20
  %s23 = scalar_select 0, %s22, %s20
  $region1: #{tpu_custom_call.1} parent=0
    #allocation2 [shape = 'u8[8192]{0}', space=vmem, size = 0x2000, scoped, tag = 'input window, operand 1']
    #allocation3 [shape = 's32[2]{0}', space=sflag, size = 0x8, scoped, tag = 'scoped memory for tpu_custom_call.1']
    #allocation4 [shape = 's32[2]{0}', space=sflag, size = 0x8, scoped, tag = 'scoped memory for tpu_custom_call.1']
    #allocation5 [shape = 'u8[16384]{0}', space=vmem, size = 0x4000, scoped, tag = 'input window, operand 2, single buffered']
    #allocation6 [shape = 's32[1]{0}', space=sflag, size = 0x4, scoped, tag = 'scoped memory for tpu_custom_call.1']
    #allocation7 [shape = 'u8[512]{0}', space=vmem, size = 0x400, scoped, tag = 'input window, operand 3, single buffered']
    #allocation8 [shape = 'u8[4096]{0}', space=vmem, size = 0x1000, scoped, tag = 'input window, operand 5, single buffered']
    #allocation9 [shape = 's32[1]{0}', space=sflag, size = 0x4, scoped, tag = 'scoped memory for tpu_custom_call.1']
    #allocation10 [shape = 'u8[16384]{0}', space=vmem, size = 0x4000, scoped, tag = 'input window, operand 6, single buffered']
    #allocation11 [shape = 'u8[2048]{0}', space=vmem, size = 0x800, scoped, tag = 'input window, operand 10, single buffered']
    #allocation12 [shape = 's32[1]{0}', space=sflag, size = 0x4, scoped, tag = 'scoped memory for tpu_custom_call.1']
    #allocation13 [shape = 'u8[2048]{0}', space=vmem, size = 0x800, scoped, tag = 'input window, operand 11, single buffered']
    #allocation14 [shape = 'u8[2048]{0}', space=vmem, size = 0x800, scoped, tag = 'input window, operand 14, single buffered']
    #allocation15 [shape = 's32[1]{0}', space=sflag, size = 0x4, scoped, tag = 'scoped memory for tpu_custom_call.1']
    #allocation16 [shape = 'u8[2048]{0}', space=vmem, size = 0x800, scoped, tag = 'input window, operand 18, single buffered']
    #allocation17 [shape = 'u8[2048]{0}', space=vmem, size = 0x800, scoped, tag = 'output window, operand 0']
    %24 = vsyncpa [#allocation3], 0
    %s25 = scalar_lea.sflag [#allocation3], 1
    %26 = vsyncpa %s25, 0
    %27 = vsyncpa [#allocation6], 0
    %28 = vsyncpa [#allocation9], 0
    %29 = vsyncpa [#allocation12], 0
    %30 = vsyncpa [#allocation15], 0
    %31 = vsyncpa [#allocation4], 0
    %s32 = scalar_lea.sflag [#allocation4], 1
    %33 = vsyncpa %s32, 0
    loop: start=0, step=1, limit=4
    $region2: #{tpu_custom_call.1} parent=1 // loop_pre_header
      _
    $region3: #{tpu_custom_call.1} parent=1 // loop_header
      %s35 = sphi 0, %s39
      %p36 = scmp.ge.s32.totalorder %s35, 4
      %s45 = sphi 0, %s47
      %s48 = sphi 0, %s45
      %s49 = sphi 0, %s48
      %s65 = sphi 0, %s49
      %s71 = sphi 0, %s73
      %s74 = sphi 0, %s71
      %s75 = sphi 0, %s74
      %s91 = sphi 0, %s75
      %s95 = sphi 0, %s95
      %s97 = sphi 0, %s95
      %s98 = sphi 0, %s97
      %s112 = sphi 0, %s98
      %s116 = sphi 0, %s116
      %s118 = sphi 0, %s116
      %s119 = sphi 0, %s118
      %s133 = sphi 0, %s119
      %s137 = sphi 0, %s137
      %s139 = sphi 0, %s137
      %s140 = sphi 0, %s139
      %s154 = sphi 0, %s140
      %s158 = sphi 0, %s158
      %s160 = sphi 0, %s158
      %s161 = sphi 0, %s160
      %s175 = sphi 0, %s161
      %s179 = sphi 0, %s179
      %s181 = sphi 0, %s179
      %s182 = sphi 0, %s181
      %s196 = sphi 0, %s182
      %s200 = sphi 0, %s200
      %s202 = sphi 0, %s200
      %s203 = sphi 0, %s202
      %s217 = sphi 0, %s203
      %s221 = sphi 0, %s221
      %s223 = sphi 0, %s221
      %s224 = sphi 0, %s223
      %s238 = sphi 0, %s224
      %s242 = sphi 0, %s242
      %s244 = sphi 0, %s242
      %s245 = sphi 0, %s244
      %s259 = sphi 0, %s245
      %s263 = sphi 0, %s263
      %s265 = sphi 0, %s263
      %s266 = sphi 0, %s265
      %s280 = sphi 0, %s266
      %s284 = sphi 0, %s284
      %s286 = sphi 0, %s284
      %s287 = sphi 0, %s286
      %s301 = sphi 0, %s287
      %s305 = sphi 0, %s305
      %s307 = sphi 0, %s305
      %s308 = sphi 0, %s307
      %s322 = sphi 0, %s308
      %s326 = sphi 0, %s326
      %s328 = sphi 0, %s326
      %s329 = sphi 0, %s328
      %s343 = sphi 0, %s329
      %s347 = sphi 0, %s347
      %s349 = sphi 0, %s347
      %s350 = sphi 0, %s349
      %s364 = sphi 0, %s350
      %s368 = sphi 0, %s368
      %s370 = sphi 0, %s368
      %s371 = sphi 0, %s370
      %s385 = sphi 0, %s371
      %s389 = sphi 0, %s389
      %s391 = sphi 0, %s389
      %s392 = sphi 0, %s391
      %s406 = sphi 0, %s392
      %s410 = sphi 0, %s410
      %s412 = sphi 0, %s410
      %s413 = sphi 0, %s412
      %s427 = sphi 0, %s413
      %s431 = sphi 0, %s431
      %s433 = sphi 0, %s431
      %s434 = sphi 0, %s433
      %s448 = sphi 0, %s434
      %s454 = sphi 0, %s456
      %s457 = sphi 0, %s454
      %s458 = sphi 0, %s457
      %s474 = sphi 0, %s458
    $region4: #{tpu_custom_call.1} parent=1 // loop_header_branch
      %38 = sbr.rel (%p36) target = $region8
    $region5: #{tpu_custom_call.1} parent=1 // loop_body
      %s40 = ssub.s32 %s35, 1
      %s41 = ssub.s32 %s35, 2
      %s42 = sadd.s32 %s35, 1
      %s43 = ssub.s32 %s35, %s42
      %p44 = scmp.eq.s32.totalorder %s43, 0
      %s46 = sadd.s32 %s45, 1
      %s47 = scalar_select %p44, %s45, %s46
      %p50 = pneg %p44
      %p51 = scmp.eq.s32.totalorder %s35, 1
      %p52 = por %p50, %p51
      %p53 = scmp.ne.s32.totalorder %s45, %s48
      %p54 = scmp.eq.s32.totalorder %s35, 0
      %p55 = por %p53, %p54
      %p56 = scmp.ne.s32.totalorder %s45, %s48
      %p57 = scmp.eq.s32.totalorder %s40, 1
      %p58 = por %p56, %p57
      %p59 = scmp.ne.s32.totalorder %s48, %s49
      %p60 = scmp.eq.s32.totalorder %s40, 0
      %p61 = por %p59, %p60
      %p62 = scmp.ne.s32.totalorder %s48, %s49
      %p63 = scmp.eq.s32.totalorder %s41, 1
      %p64 = por %p62, %p63
      %p66 = scmp.ne.s32.totalorder %s49, %s65
      %p67 = scmp.eq.s32.totalorder %s41, 0
      %p68 = por %p66, %p67
      %s69 = ssub.s32 %s35, %s42
      %p70 = scmp.eq.s32.totalorder %s69, 0
      %s72 = sadd.s32 %s71, 1
      %s73 = scalar_select %p70, %s71, %s72
      %p76 = pneg %p70
      %p77 = scmp.eq.s32.totalorder %s35, 1
      %p78 = por %p76, %p77
      %p79 = scmp.ne.s32.totalorder %s71, %s74
      %p80 = scmp.eq.s32.totalorder %s35, 0
      %p81 = por %p79, %p80
      %p82 = scmp.ne.s32.totalorder %s71, %s74
      %p83 = scmp.eq.s32.totalorder %s40, 1
      %p84 = por %p82, %p83
      %p85 = scmp.ne.s32.totalorder %s74, %s75
      %p86 = scmp.eq.s32.totalorder %s40, 0
      %p87 = por %p85, %p86
      %p88 = scmp.ne.s32.totalorder %s74, %s75
      %p89 = scmp.eq.s32.totalorder %s41, 1
      %p90 = por %p88, %p89
      %p92 = scmp.ne.s32.totalorder %s75, %s91
      %p93 = scmp.eq.s32.totalorder %s41, 0
      %p94 = por %p92, %p93
      %s96 = sadd.s32 %s95, 1
      %p99 = scmp.eq.s32.totalorder %s35, 1
      %p100 = scmp.ne.s32.totalorder %s95, %s97
      %p101 = scmp.eq.s32.totalorder %s35, 0
      %p102 = por %p100, %p101
      %p103 = scmp.ne.s32.totalorder %s95, %s97
      %p104 = scmp.eq.s32.totalorder %s40, 1
      %p105 = por %p103, %p104
      %p106 = scmp.ne.s32.totalorder %s97, %s98
      %p107 = scmp.eq.s32.totalorder %s40, 0
      %p108 = por %p106, %p107
      %p109 = scmp.ne.s32.totalorder %s97, %s98
      %p110 = scmp.eq.s32.totalorder %s41, 1
      %p111 = por %p109, %p110
      %p113 = scmp.ne.s32.totalorder %s98, %s112
      %p114 = scmp.eq.s32.totalorder %s41, 0
      %p115 = por %p113, %p114
      %s117 = sadd.s32 %s116, 1
      %p120 = scmp.eq.s32.totalorder %s35, 1
      %p121 = scmp.ne.s32.totalorder %s116, %s118
      %p122 = scmp.eq.s32.totalorder %s35, 0
      %p123 = por %p121, %p122
      %p124 = scmp.ne.s32.totalorder %s116, %s118
      %p125 = scmp.eq.s32.totalorder %s40, 1
      %p126 = por %p124, %p125
      %p127 = scmp.ne.s32.totalorder %s118, %s119
      %p128 = scmp.eq.s32.totalorder %s40, 0
      %p129 = por %p127, %p128
      %p130 = scmp.ne.s32.totalorder %s118, %s119
      %p131 = scmp.eq.s32.totalorder %s41, 1
      %p132 = por %p130, %p131
      %p134 = scmp.ne.s32.totalorder %s119, %s133
      %p135 = scmp.eq.s32.totalorder %s41, 0
      %p136 = por %p134, %p135
      %s138 = sadd.s32 %s137, 1
      %p141 = scmp.eq.s32.totalorder %s35, 1
      %p142 = scmp.ne.s32.totalorder %s137, %s139
      %p143 = scmp.eq.s32.totalorder %s35, 0
      %p144 = por %p142, %p143
      %p145 = scmp.ne.s32.totalorder %s137, %s139
      %p146 = scmp.eq.s32.totalorder %s40, 1
      %p147 = por %p145, %p146
      %p148 = scmp.ne.s32.totalorder %s139, %s140
      %p149 = scmp.eq.s32.totalorder %s40, 0
      %p150 = por %p148, %p149
      %p151 = scmp.ne.s32.totalorder %s139, %s140
      %p152 = scmp.eq.s32.totalorder %s41, 1
      %p153 = por %p151, %p152
      %p155 = scmp.ne.s32.totalorder %s140, %s154
      %p156 = scmp.eq.s32.totalorder %s41, 0
      %p157 = por %p155, %p156
      %s159 = sadd.s32 %s158, 1
      %p162 = scmp.eq.s32.totalorder %s35, 1
      %p163 = scmp.ne.s32.totalorder %s158, %s160
      %p164 = scmp.eq.s32.totalorder %s35, 0
      %p165 = por %p163, %p164
      %p166 = scmp.ne.s32.totalorder %s158, %s160
      %p167 = scmp.eq.s32.totalorder %s40, 1
      %p168 = por %p166, %p167
      %p169 = scmp.ne.s32.totalorder %s160, %s161
      %p170 = scmp.eq.s32.totalorder %s40, 0
      %p171 = por %p169, %p170
      %p172 = scmp.ne.s32.totalorder %s160, %s161
      %p173 = scmp.eq.s32.totalorder %s41, 1
      %p174 = por %p172, %p173
      %p176 = scmp.ne.s32.totalorder %s161, %s175
      %p177 = scmp.eq.s32.totalorder %s41, 0
      %p178 = por %p176, %p177
      %s180 = sadd.s32 %s179, 1
      %p183 = scmp.eq.s32.totalorder %s35, 1
      %p184 = scmp.ne.s32.totalorder %s179, %s181
      %p185 = scmp.eq.s32.totalorder %s35, 0
      %p186 = por %p184, %p185
      %p187 = scmp.ne.s32.totalorder %s179, %s181
      %p188 = scmp.eq.s32.totalorder %s40, 1
      %p189 = por %p187, %p188
      %p190 = scmp.ne.s32.totalorder %s181, %s182
      %p191 = scmp.eq.s32.totalorder %s40, 0
      %p192 = por %p190, %p191
      %p193 = scmp.ne.s32.totalorder %s181, %s182
      %p194 = scmp.eq.s32.totalorder %s41, 1
      %p195 = por %p193, %p194
      %p197 = scmp.ne.s32.totalorder %s182, %s196
      %p198 = scmp.eq.s32.totalorder %s41, 0
      %p199 = por %p197, %p198
      %s201 = sadd.s32 %s200, 1
      %p204 = scmp.eq.s32.totalorder %s35, 1
      %p205 = scmp.ne.s32.totalorder %s200, %s202
      %p206 = scmp.eq.s32.totalorder %s35, 0
      %p207 = por %p205, %p206
      %p208 = scmp.ne.s32.totalorder %s200, %s202
      %p209 = scmp.eq.s32.totalorder %s40, 1
      %p210 = por %p208, %p209
      %p211 = scmp.ne.s32.totalorder %s202, %s203
      %p212 = scmp.eq.s32.totalorder %s40, 0
      %p213 = por %p211, %p212
      %p214 = scmp.ne.s32.totalorder %s202, %s203
      %p215 = scmp.eq.s32.totalorder %s41, 1
      %p216 = por %p214, %p215
      %p218 = scmp.ne.s32.totalorder %s203, %s217
      %p219 = scmp.eq.s32.totalorder %s41, 0
      %p220 = por %p218, %p219
      %s222 = sadd.s32 %s221, 1
      %p225 = scmp.eq.s32.totalorder %s35, 1
      %p226 = scmp.ne.s32.totalorder %s221, %s223
      %p227 = scmp.eq.s32.totalorder %s35, 0
      %p228 = por %p226, %p227
      %p229 = scmp.ne.s32.totalorder %s221, %s223
      %p230 = scmp.eq.s32.totalorder %s40, 1
      %p231 = por %p229, %p230
      %p232 = scmp.ne.s32.totalorder %s223, %s224
      %p233 = scmp.eq.s32.totalorder %s40, 0
      %p234 = por %p232, %p233
      %p235 = scmp.ne.s32.totalorder %s223, %s224
      %p236 = scmp.eq.s32.totalorder %s41, 1
      %p237 = por %p235, %p236
      %p239 = scmp.ne.s32.totalorder %s224, %s238
      %p240 = scmp.eq.s32.totalorder %s41, 0
      %p241 = por %p239, %p240
      %s243 = sadd.s32 %s242, 1
      %p246 = scmp.eq.s32.totalorder %s35, 1
      %p247 = scmp.ne.s32.totalorder %s242, %s244
      %p248 = scmp.eq.s32.totalorder %s35, 0
      %p249 = por %p247, %p248
      %p250 = scmp.ne.s32.totalorder %s242, %s244
      %p251 = scmp.eq.s32.totalorder %s40, 1
      %p252 = por %p250, %p251
      %p253 = scmp.ne.s32.totalorder %s244, %s245
      %p254 = scmp.eq.s32.totalorder %s40, 0
      %p255 = por %p253, %p254
      %p256 = scmp.ne.s32.totalorder %s244, %s245
      %p257 = scmp.eq.s32.totalorder %s41, 1
      %p258 = por %p256, %p257
      %p260 = scmp.ne.s32.totalorder %s245, %s259
      %p261 = scmp.eq.s32.totalorder %s41, 0
      %p262 = por %p260, %p261
      %s264 = sadd.s32 %s263, 1
      %p267 = scmp.eq.s32.totalorder %s35, 1
      %p268 = scmp.ne.s32.totalorder %s263, %s265
      %p269 = scmp.eq.s32.totalorder %s35, 0
      %p270 = por %p268, %p269
      %p271 = scmp.ne.s32.totalorder %s263, %s265
      %p272 = scmp.eq.s32.totalorder %s40, 1
      %p273 = por %p271, %p272
      %p274 = scmp.ne.s32.totalorder %s265, %s266
      %p275 = scmp.eq.s32.totalorder %s40, 0
      %p276 = por %p274, %p275
      %p277 = scmp.ne.s32.totalorder %s265, %s266
      %p278 = scmp.eq.s32.totalorder %s41, 1
      %p279 = por %p277, %p278
      %p281 = scmp.ne.s32.totalorder %s266, %s280
      %p282 = scmp.eq.s32.totalorder %s41, 0
      %p283 = por %p281, %p282
      %s285 = sadd.s32 %s284, 1
      %p288 = scmp.eq.s32.totalorder %s35, 1
      %p289 = scmp.ne.s32.totalorder %s284, %s286
      %p290 = scmp.eq.s32.totalorder %s35, 0
      %p291 = por %p289, %p290
      %p292 = scmp.ne.s32.totalorder %s284, %s286
      %p293 = scmp.eq.s32.totalorder %s40, 1
      %p294 = por %p292, %p293
      %p295 = scmp.ne.s32.totalorder %s286, %s287
      %p296 = scmp.eq.s32.totalorder %s40, 0
      %p297 = por %p295, %p296
      %p298 = scmp.ne.s32.totalorder %s286, %s287
      %p299 = scmp.eq.s32.totalorder %s41, 1
      %p300 = por %p298, %p299
      %p302 = scmp.ne.s32.totalorder %s287, %s301
      %p303 = scmp.eq.s32.totalorder %s41, 0
      %p304 = por %p302, %p303
      %s306 = sadd.s32 %s305, 1
      %p309 = scmp.eq.s32.totalorder %s35, 1
      %p310 = scmp.ne.s32.totalorder %s305, %s307
      %p311 = scmp.eq.s32.totalorder %s35, 0
      %p312 = por %p310, %p311
      %p313 = scmp.ne.s32.totalorder %s305, %s307
      %p314 = scmp.eq.s32.totalorder %s40, 1
      %p315 = por %p313, %p314
      %p316 = scmp.ne.s32.totalorder %s307, %s308
      %p317 = scmp.eq.s32.totalorder %s40, 0
      %p318 = por %p316, %p317
      %p319 = scmp.ne.s32.totalorder %s307, %s308
      %p320 = scmp.eq.s32.totalorder %s41, 1
      %p321 = por %p319, %p320
      %p323 = scmp.ne.s32.totalorder %s308, %s322
      %p324 = scmp.eq.s32.totalorder %s41, 0
      %p325 = por %p323, %p324
      %s327 = sadd.s32 %s326, 1
      %p330 = scmp.eq.s32.totalorder %s35, 1
      %p331 = scmp.ne.s32.totalorder %s326, %s328
      %p332 = scmp.eq.s32.totalorder %s35, 0
      %p333 = por %p331, %p332
      %p334 = scmp.ne.s32.totalorder %s326, %s328
      %p335 = scmp.eq.s32.totalorder %s40, 1
      %p336 = por %p334, %p335
      %p337 = scmp.ne.s32.totalorder %s328, %s329
      %p338 = scmp.eq.s32.totalorder %s40, 0
      %p339 = por %p337, %p338
      %p340 = scmp.ne.s32.totalorder %s328, %s329
      %p341 = scmp.eq.s32.totalorder %s41, 1
      %p342 = por %p340, %p341
      %p344 = scmp.ne.s32.totalorder %s329, %s343
      %p345 = scmp.eq.s32.totalorder %s41, 0
      %p346 = por %p344, %p345
      %s348 = sadd.s32 %s347, 1
      %p351 = scmp.eq.s32.totalorder %s35, 1
      %p352 = scmp.ne.s32.totalorder %s347, %s349
      %p353 = scmp.eq.s32.totalorder %s35, 0
      %p354 = por %p352, %p353
      %p355 = scmp.ne.s32.totalorder %s347, %s349
      %p356 = scmp.eq.s32.totalorder %s40, 1
      %p357 = por %p355, %p356
      %p358 = scmp.ne.s32.totalorder %s349, %s350
      %p359 = scmp.eq.s32.totalorder %s40, 0
      %p360 = por %p358, %p359
      %p361 = scmp.ne.s32.totalorder %s349, %s350
      %p362 = scmp.eq.s32.totalorder %s41, 1
      %p363 = por %p361, %p362
      %p365 = scmp.ne.s32.totalorder %s350, %s364
      %p366 = scmp.eq.s32.totalorder %s41, 0
      %p367 = por %p365, %p366
      %s369 = sadd.s32 %s368, 1
      %p372 = scmp.eq.s32.totalorder %s35, 1
      %p373 = scmp.ne.s32.totalorder %s368, %s370
      %p374 = scmp.eq.s32.totalorder %s35, 0
      %p375 = por %p373, %p374
      %p376 = scmp.ne.s32.totalorder %s368, %s370
      %p377 = scmp.eq.s32.totalorder %s40, 1
      %p378 = por %p376, %p377
      %p379 = scmp.ne.s32.totalorder %s370, %s371
      %p380 = scmp.eq.s32.totalorder %s40, 0
      %p381 = por %p379, %p380
      %p382 = scmp.ne.s32.totalorder %s370, %s371
      %p383 = scmp.eq.s32.totalorder %s41, 1
      %p384 = por %p382, %p383
      %p386 = scmp.ne.s32.totalorder %s371, %s385
      %p387 = scmp.eq.s32.totalorder %s41, 0
      %p388 = por %p386, %p387
      %s390 = sadd.s32 %s389, 1
      %p393 = scmp.eq.s32.totalorder %s35, 1
      %p394 = scmp.ne.s32.totalorder %s389, %s391
      %p395 = scmp.eq.s32.totalorder %s35, 0
      %p396 = por %p394, %p395
      %p397 = scmp.ne.s32.totalorder %s389, %s391
      %p398 = scmp.eq.s32.totalorder %s40, 1
      %p399 = por %p397, %p398
      %p400 = scmp.ne.s32.totalorder %s391, %s392
      %p401 = scmp.eq.s32.totalorder %s40, 0
      %p402 = por %p400, %p401
      %p403 = scmp.ne.s32.totalorder %s391, %s392
      %p404 = scmp.eq.s32.totalorder %s41, 1
      %p405 = por %p403, %p404
      %p407 = scmp.ne.s32.totalorder %s392, %s406
      %p408 = scmp.eq.s32.totalorder %s41, 0
      %p409 = por %p407, %p408
      %s411 = sadd.s32 %s410, 1
      %p414 = scmp.eq.s32.totalorder %s35, 1
      %p415 = scmp.ne.s32.totalorder %s410, %s412
      %p416 = scmp.eq.s32.totalorder %s35, 0
      %p417 = por %p415, %p416
      %p418 = scmp.ne.s32.totalorder %s410, %s412
      %p419 = scmp.eq.s32.totalorder %s40, 1
      %p420 = por %p418, %p419
      %p421 = scmp.ne.s32.totalorder %s412, %s413
      %p422 = scmp.eq.s32.totalorder %s40, 0
      %p423 = por %p421, %p422
      %p424 = scmp.ne.s32.totalorder %s412, %s413
      %p425 = scmp.eq.s32.totalorder %s41, 1
      %p426 = por %p424, %p425
      %p428 = scmp.ne.s32.totalorder %s413, %s427
      %p429 = scmp.eq.s32.totalorder %s41, 0
      %p430 = por %p428, %p429
      %s432 = sadd.s32 %s431, 1
      %p435 = scmp.eq.s32.totalorder %s35, 1
      %p436 = scmp.ne.s32.totalorder %s431, %s433
      %p437 = scmp.eq.s32.totalorder %s35, 0
      %p438 = por %p436, %p437
      %p439 = scmp.ne.s32.totalorder %s431, %s433
      %p440 = scmp.eq.s32.totalorder %s40, 1
      %p441 = por %p439, %p440
      %p442 = scmp.ne.s32.totalorder %s433, %s434
      %p443 = scmp.eq.s32.totalorder %s40, 0
      %p444 = por %p442, %p443
      %p445 = scmp.ne.s32.totalorder %s433, %s434
      %p446 = scmp.eq.s32.totalorder %s41, 1
      %p447 = por %p445, %p446
      %p449 = scmp.ne.s32.totalorder %s434, %s448
      %p450 = scmp.eq.s32.totalorder %s41, 0
      %p451 = por %p449, %p450
      %s452 = ssub.s32 %s35, %s42
      %p453 = scmp.eq.s32.totalorder %s452, 0
      %s455 = sadd.s32 %s454, 1
      %s456 = scalar_select %p453, %s454, %s455
      %p459 = pneg %p453
      %p460 = scmp.eq.s32.totalorder %s35, 1
      %p461 = por %p459, %p460
      %p462 = scmp.ne.s32.totalorder %s454, %s457
      %p463 = scmp.eq.s32.totalorder %s35, 0
      %p464 = por %p462, %p463
      %p465 = scmp.ne.s32.totalorder %s454, %s457
      %p466 = scmp.eq.s32.totalorder %s40, 1
      %p467 = por %p465, %p466
      %p468 = scmp.ne.s32.totalorder %s457, %s458
      %p469 = scmp.eq.s32.totalorder %s40, 0
      %p470 = por %p468, %p469
      %p471 = scmp.ne.s32.totalorder %s457, %s458
      %p472 = scmp.eq.s32.totalorder %s41, 1
      %p473 = por %p471, %p472
      %p475 = scmp.ne.s32.totalorder %s458, %s474
      %p476 = scmp.eq.s32.totalorder %s41, 0
      %p477 = por %p475, %p476
      %p478 = scmp.le.s32.totalorder 1, %s35
      %p479 = scmp.lt.s32.totalorder %s35, 3
      %p480 = pnand %p478, %p479
      %p481 = pneg %p480
      // Predicated region
      $region9: #{tpu_custom_call.1} parent=5 // pred_check
        _
      $region10: #{tpu_custom_call.1} parent=5 // pred_check_branch
        %483 = sbr.rel (%p480) target = $region12
      $region11: #{tpu_custom_call.1} parent=5 // pred_region
        %s484 = ssub.s32 %s35, 1
        // Predicated region
        $region13: #{tpu_custom_call.1} parent=11 // pred_check
          %p485 = pneg %p108
        $region14: #{tpu_custom_call.1} parent=11 // pred_check_branch
          %487 = sbr.rel (%p485) target = $region16
        $region15: #{tpu_custom_call.1} parent=11 // pred_region
          %s489 = ssub.s32 512, 512
          %490 = vsyncadd [#allocation6], %s489
          %s491 = sshll.u32 [#allocation5], 4
          %s492 = int_to_ptr.vmem [resolvable:$true] %s491
          %497 = dma.hbm_to_vmem [thread:$0]  %s2, 512, %s492, [#allocation6], 64, 64, 4
        $region16: #{tpu_custom_call.1} parent=11 // pred_fallthru
          _
        // Predicated region
        $region17: #{tpu_custom_call.1} parent=11 // pred_check
          %p498 = pneg %p129
        $region18: #{tpu_custom_call.1} parent=11 // pred_check_branch
          %500 = sbr.rel (%p498) target = $region20
        $region19: #{tpu_custom_call.1} parent=11 // pred_region
          %s502 = ssub.s32 16, 16
          %503 = vsyncadd [#allocation6], %s502
          %s505 = sshll.u32 [#allocation7], 4
          %s506 = int_to_ptr.vmem [resolvable:$true] %s505
          %508 = dma.hbm_to_vmem [thread:$0]  %s3, 16, %s506, [#allocation6]
        $region20: #{tpu_custom_call.1} parent=11 // pred_fallthru
          _
        // Predicated region
        $region21: #{tpu_custom_call.1} parent=11 // pred_check
          %p509 = pneg %p150
        $region22: #{tpu_custom_call.1} parent=11 // pred_check_branch
          %511 = sbr.rel (%p509) target = $region24
        $region23: #{tpu_custom_call.1} parent=11 // pred_region
          _
        $region24: #{tpu_custom_call.1} parent=11 // pred_fallthru
          _
        // Predicated region
        $region25: #{tpu_custom_call.1} parent=11 // pred_check
          %p512 = pneg %p171
        $region26: #{tpu_custom_call.1} parent=11 // pred_check_branch
          %514 = sbr.rel (%p512) target = $region28
        $region27: #{tpu_custom_call.1} parent=11 // pred_region
          %s516 = ssub.s32 128, 128
          %517 = vsyncadd [#allocation9], %s516
          %s519 = sshll.u32 [#allocation8], 4
          %s520 = int_to_ptr.vmem [resolvable:$true] %s519
          %522 = dma.hbm_to_vmem [thread:$0]  %s5, 128, %s520, [#allocation9]
        $region28: #{tpu_custom_call.1} parent=11 // pred_fallthru
          _
        // Predicated region
        $region29: #{tpu_custom_call.1} parent=11 // pred_check
          %p523 = pneg %p192
        $region30: #{tpu_custom_call.1} parent=11 // pred_check_branch
          %525 = sbr.rel (%p523) target = $region32
        $region31: #{tpu_custom_call.1} parent=11 // pred_region
          %s527 = ssub.s32 512, 512
          %528 = vsyncadd [#allocation9], %s527
          %s529 = sshll.u32 [#allocation10], 4
          %s530 = int_to_ptr.vmem [resolvable:$true] %s529
          %535 = dma.hbm_to_vmem [thread:$0]  %s6, 512, %s530, [#allocation9], 128, 128, 8
        $region32: #{tpu_custom_call.1} parent=11 // pred_fallthru
          _
        // Predicated region
        $region33: #{tpu_custom_call.1} parent=11 // pred_check
          %p536 = pneg %p213
        $region34: #{tpu_custom_call.1} parent=11 // pred_check_branch
          %538 = sbr.rel (%p536) target = $region36
        $region35: #{tpu_custom_call.1} parent=11 // pred_region
          _
        $region36: #{tpu_custom_call.1} parent=11 // pred_fallthru
          _
        // Predicated region
        $region37: #{tpu_custom_call.1} parent=11 // pred_check
          %p539 = pneg %p234
        $region38: #{tpu_custom_call.1} parent=11 // pred_check_branch
          %541 = sbr.rel (%p539) target = $region40
        $region39: #{tpu_custom_call.1} parent=11 // pred_region
          _
        $region40: #{tpu_custom_call.1} parent=11 // pred_fallthru
          _
        // Predicated region
        $region41: #{tpu_custom_call.1} parent=11 // pred_check
          %p542 = pneg %p255
        $region42: #{tpu_custom_call.1} parent=11 // pred_check_branch
          %544 = sbr.rel (%p542) target = $region44
        $region43: #{tpu_custom_call.1} parent=11 // pred_region
          _
        $region44: #{tpu_custom_call.1} parent=11 // pred_fallthru
          _
        // Predicated region
        $region45: #{tpu_custom_call.1} parent=11 // pred_check
          %p545 = pneg %p276
        $region46: #{tpu_custom_call.1} parent=11 // pred_check_branch
          %547 = sbr.rel (%p545) target = $region48
        $region47: #{tpu_custom_call.1} parent=11 // pred_region
          %s549 = ssub.s32 64, 64
          %550 = vsyncadd [#allocation12], %s549
          %s551 = sshll.u32 [#allocation11], 4
          %s552 = int_to_ptr.vmem [resolvable:$true] %s551
          %557 = dma.hbm_to_vmem [thread:$0]  %s10, 64, %s552, [#allocation12], 16, 16, 1
        $region48: #{tpu_custom_call.1} parent=11 // pred_fallthru
          _
        // Predicated region
        $region49: #{tpu_custom_call.1} parent=11 // pred_check
          %p558 = pneg %p297
        $region50: #{tpu_custom_call.1} parent=11 // pred_check_branch
          %560 = sbr.rel (%p558) target = $region52
        $region51: #{tpu_custom_call.1} parent=11 // pred_region
          %s562 = ssub.s32 64, 64
          %563 = vsyncadd [#allocation12], %s562
          %s564 = sshll.u32 [#allocation13], 4
          %s565 = int_to_ptr.vmem [resolvable:$true] %s564
          %570 = dma.hbm_to_vmem [thread:$0]  %s11, 64, %s565, [#allocation12], 16, 16, 1
        $region52: #{tpu_custom_call.1} parent=11 // pred_fallthru
          _
        // Predicated region
        $region53: #{tpu_custom_call.1} parent=11 // pred_check
          %p571 = pneg %p318
        $region54: #{tpu_custom_call.1} parent=11 // pred_check_branch
          %573 = sbr.rel (%p571) target = $region56
        $region55: #{tpu_custom_call.1} parent=11 // pred_region
          _
        $region56: #{tpu_custom_call.1} parent=11 // pred_fallthru
          _
        // Predicated region
        $region57: #{tpu_custom_call.1} parent=11 // pred_check
          %p574 = pneg %p339
        $region58: #{tpu_custom_call.1} parent=11 // pred_check_branch
          %576 = sbr.rel (%p574) target = $region60
        $region59: #{tpu_custom_call.1} parent=11 // pred_region
          _
        $region60: #{tpu_custom_call.1} parent=11 // pred_fallthru
          _
        // Predicated region
        $region61: #{tpu_custom_call.1} parent=11 // pred_check
          %p577 = pneg %p360
        $region62: #{tpu_custom_call.1} parent=11 // pred_check_branch
          %579 = sbr.rel (%p577) target = $region64
        $region63: #{tpu_custom_call.1} parent=11 // pred_region
          %s581 = ssub.s32 64, 64
          %582 = vsyncadd [#allocation15], %s581
          %s583 = sshll.u32 [#allocation14], 4
          %s584 = int_to_ptr.vmem [resolvable:$true] %s583
          %589 = dma.hbm_to_vmem [thread:$0]  %s14, 64, %s584, [#allocation15], 16, 16, 1
        $region64: #{tpu_custom_call.1} parent=11 // pred_fallthru
          _
        // Predicated region
        $region65: #{tpu_custom_call.1} parent=11 // pred_check
          %p590 = pneg %p381
        $region66: #{tpu_custom_call.1} parent=11 // pred_check_branch
          %592 = sbr.rel (%p590) target = $region68
        $region67: #{tpu_custom_call.1} parent=11 // pred_region
          _
        $region68: #{tpu_custom_call.1} parent=11 // pred_fallthru
          _
        // Predicated region
        $region69: #{tpu_custom_call.1} parent=11 // pred_check
          %p593 = pneg %p402
        $region70: #{tpu_custom_call.1} parent=11 // pred_check_branch
          %595 = sbr.rel (%p593) target = $region72
        $region71: #{tpu_custom_call.1} parent=11 // pred_region
          _
        $region72: #{tpu_custom_call.1} parent=11 // pred_fallthru
          _
        // Predicated region
        $region73: #{tpu_custom_call.1} parent=11 // pred_check
          %p596 = pneg %p423
        $region74: #{tpu_custom_call.1} parent=11 // pred_check_branch
          %598 = sbr.rel (%p596) target = $region76
        $region75: #{tpu_custom_call.1} parent=11 // pred_region
          _
        $region76: #{tpu_custom_call.1} parent=11 // pred_fallthru
          _
        // Predicated region
        $region77: #{tpu_custom_call.1} parent=11 // pred_check
          %p599 = pneg %p444
        $region78: #{tpu_custom_call.1} parent=11 // pred_check_branch
          %601 = sbr.rel (%p599) target = $region80
        $region79: #{tpu_custom_call.1} parent=11 // pred_region
          %s603 = ssub.s32 64, 64
          %604 = vsyncadd [#allocation15], %s603
          %s605 = sshll.u32 [#allocation16], 4
          %s606 = int_to_ptr.vmem [resolvable:$true] %s605
          %611 = dma.hbm_to_vmem [thread:$0]  %s18, 64, %s606, [#allocation15], 16, 16, 1
        $region80: #{tpu_custom_call.1} parent=11 // pred_fallthru
          _
      $region12: #{tpu_custom_call.1} parent=5 // pred_fallthru
        _
      %p612 = scmp.lt.s32.totalorder %s35, 2
      // Predicated region
      $region81: #{tpu_custom_call.1} parent=5 // pred_check
        %p613 = pneg %p612
      $region82: #{tpu_custom_call.1} parent=5 // pred_check_branch
        %615 = sbr.rel (%p613) target = $region84
      $region83: #{tpu_custom_call.1} parent=5 // pred_region
        // Predicated region
        $region85: #{tpu_custom_call.1} parent=83 // pred_check
          %p616 = pneg %p55
        $region86: #{tpu_custom_call.1} parent=83 // pred_check_branch
          %618 = sbr.rel (%p616) target = $region88
        $region87: #{tpu_custom_call.1} parent=83 // pred_region
          %s619 = smul.u32 16, %s35
          %p620 = scmp.lt.s32.totalorder %s619, 31
          %s621 = scalar_select %p620, %s619, 31
          %s622 = smul.addr %s621, 8
          %s623 = scalar_lea.vmem %s0, %s622
          %s624 = smul.u32 16, %s35
        $region88: #{tpu_custom_call.1} parent=83 // pred_fallthru
          _
        // Predicated region
        $region89: #{tpu_custom_call.1} parent=83 // pred_check
          %p625 = pneg %p81
        $region90: #{tpu_custom_call.1} parent=83 // pred_check_branch
          %627 = sbr.rel (%p625) target = $region92
        $region91: #{tpu_custom_call.1} parent=83 // pred_region
          %s628 = sand.u32 %s71, 1
          %s629 = scalar_lea.sflag [#allocation3], %s628
          %s630 = sand.u32 %s71, 1
          %s631 = smul.addr %s630, 8
          %s632 = scalar_lea.vmem [#allocation2], %s631
          %s634 = ssub.s32 128, 128
          %635 = vsyncadd %s629, %s634
          %s636 = smul.addr %s35, 128
          %s637 = scalar_lea.hbm %s1, %s636
          %s639 = sshll.u32 %s632, 4
          %s640 = int_to_ptr.vmem [resolvable:$true] %s639
          %642 = dma.hbm_to_vmem [thread:$0]  %s637, 128, %s640, %s629
        $region92: #{tpu_custom_call.1} parent=83 // pred_fallthru
          _
      $region84: #{tpu_custom_call.1} parent=5 // pred_fallthru
        _
      %p643 = scmp.le.s32.totalorder 1, %s35
      %p644 = scmp.lt.s32.totalorder %s35, 3
      %p645 = pnand %p643, %p644
      %p646 = pneg %p645
      // Predicated region
      $region93: #{tpu_custom_call.1} parent=5 // pred_check
        _
      $region94: #{tpu_custom_call.1} parent=5 // pred_check_branch
        %648 = sbr.rel (%p645) target = $region96
      $region95: #{tpu_custom_call.1} parent=5 // pred_region
        %s649 = ssub.s32 %s35, 1
        %s650 = sand.u32 %s74, 1
        %s651 = scalar_lea.sflag [#allocation3], %s650
        %s652 = sand.u32 %s74, 1
        %s653 = smul.addr %s652, 8
        %s654 = scalar_lea.vmem [#allocation2], %s653
        // Predicated region
        $region97: #{tpu_custom_call.1} parent=95 // pred_check
          %p655 = pneg %p87
        $region98: #{tpu_custom_call.1} parent=95 // pred_check_branch
          %657 = sbr.rel (%p655) target = $region100
        $region99: #{tpu_custom_call.1} parent=95 // pred_region
          %658 = dma.done %s651, 128
        $region100: #{tpu_custom_call.1} parent=95 // pred_fallthru
          _
        // Predicated region
        $region101: #{tpu_custom_call.1} parent=95 // pred_check
          %p659 = pneg %p108
        $region102: #{tpu_custom_call.1} parent=95 // pred_check_branch
          %661 = sbr.rel (%p659) target = $region104
        $region103: #{tpu_custom_call.1} parent=95 // pred_region
          %662 = dma.done [#allocation6], 512
        $region104: #{tpu_custom_call.1} parent=95 // pred_fallthru
          _
        // Predicated region
        $region105: #{tpu_custom_call.1} parent=95 // pred_check
          %p663 = pneg %p129
        $region106: #{tpu_custom_call.1} parent=95 // pred_check_branch
          %665 = sbr.rel (%p663) target = $region108
        $region107: #{tpu_custom_call.1} parent=95 // pred_region
          %666 = dma.done [#allocation6], 16
        $region108: #{tpu_custom_call.1} parent=95 // pred_fallthru
          _
        // Predicated region
        $region109: #{tpu_custom_call.1} parent=95 // pred_check
          %p667 = pneg %p171
        $region110: #{tpu_custom_call.1} parent=95 // pred_check_branch
          %669 = sbr.rel (%p667) target = $region112
        $region111: #{tpu_custom_call.1} parent=95 // pred_region
          %670 = dma.done [#allocation9], 128
        $region112: #{tpu_custom_call.1} parent=95 // pred_fallthru
          _
        // Predicated region
        $region113: #{tpu_custom_call.1} parent=95 // pred_check
          %p671 = pneg %p192
        $region114: #{tpu_custom_call.1} parent=95 // pred_check_branch
          %673 = sbr.rel (%p671) target = $region116
        $region115: #{tpu_custom_call.1} parent=95 // pred_region
          %674 = dma.done [#allocation9], 512
        $region116: #{tpu_custom_call.1} parent=95 // pred_fallthru
          _
        // Predicated region
        $region117: #{tpu_custom_call.1} parent=95 // pred_check
          %p675 = pneg %p276
        $region118: #{tpu_custom_call.1} parent=95 // pred_check_branch
          %677 = sbr.rel (%p675) target = $region120
        $region119: #{tpu_custom_call.1} parent=95 // pred_region
          %678 = dma.done [#allocation12], 64
        $region120: #{tpu_custom_call.1} parent=95 // pred_fallthru
          _
        // Predicated region
        $region121: #{tpu_custom_call.1} parent=95 // pred_check
          %p679 = pneg %p297
        $region122: #{tpu_custom_call.1} parent=95 // pred_check_branch
          %681 = sbr.rel (%p679) target = $region124
        $region123: #{tpu_custom_call.1} parent=95 // pred_region
          %682 = dma.done [#allocation12], 64
        $region124: #{tpu_custom_call.1} parent=95 // pred_fallthru
          _
        // Predicated region
        $region125: #{tpu_custom_call.1} parent=95 // pred_check
          %p683 = pneg %p360
        $region126: #{tpu_custom_call.1} parent=95 // pred_check_branch
          %685 = sbr.rel (%p683) target = $region128
        $region127: #{tpu_custom_call.1} parent=95 // pred_region
          %686 = dma.done [#allocation15], 64
        $region128: #{tpu_custom_call.1} parent=95 // pred_fallthru
          _
        // Predicated region
        $region129: #{tpu_custom_call.1} parent=95 // pred_check
          %p687 = pneg %p444
        $region130: #{tpu_custom_call.1} parent=95 // pred_check_branch
          %689 = sbr.rel (%p687) target = $region132
        $region131: #{tpu_custom_call.1} parent=95 // pred_region
          %690 = dma.done [#allocation15], 64
        $region132: #{tpu_custom_call.1} parent=95 // pred_fallthru
          _
        %s691 = smul.u32 16, %s40
        %p692 = scmp.lt.s32.totalorder %s691, 31
        %s693 = scalar_select %p692, %s691, 31
        %s694 = smul.addr %s693, 8
        %s695 = scalar_lea.vmem %s0, %s694
        %p696 = pneg %p61
        %p697 = pneg %p58
        %s698 = sand.u32 %s74, 1
        %s699 = scalar_lea.sflag [#allocation3], %s698
        %s700 = sand.u32 %s74, 1
        %s701 = smul.addr %s700, 8
        %s702 = scalar_lea.vmem [#allocation2], %s701
        %p703 = pneg %p87
        %p704 = pneg %p84
        %p705 = pneg %p108
        %p706 = pneg %p105
        %p707 = pneg %p129
        %p708 = pneg %p126
        %p709 = pneg %p150
        %p710 = pneg %p147
        %p711 = pneg %p171
        %p712 = pneg %p168
        %p713 = pneg %p192
        %p714 = pneg %p189
        %p715 = pneg %p213
        %p716 = pneg %p210
        %p717 = pneg %p234
        %p718 = pneg %p231
        %p719 = pneg %p255
        %p720 = pneg %p252
        %p721 = pneg %p276
        %p722 = pneg %p273
        %p723 = pneg %p297
        %p724 = pneg %p294
        %p725 = pneg %p318
        %p726 = pneg %p315
        %p727 = pneg %p339
        %p728 = pneg %p336
        %p729 = pneg %p360
        %p730 = pneg %p357
        %p731 = pneg %p381
        %p732 = pneg %p378
        %p733 = pneg %p402
        %p734 = pneg %p399
        %p735 = pneg %p423
        %p736 = pneg %p420
        %p737 = pneg %p444
        %p738 = pneg %p441
        %p739 = pneg %p470
        %p740 = pneg %p467
        %s741 = sand.u32 %s457, 1
        %s742 = scalar_lea.sflag [#allocation4], %s741
        %s743 = sand.u32 %s457, 1
        %s744 = smul.addr %s743, 2
        %s745 = scalar_lea.vmem [#allocation17], %s744
        %s746 = smul.u32 16, %s40
        %p747 = scmp.lt.s32.totalorder %s746, 31
        %s748 = scalar_select %p747, %s746, 31
        %s749 = smul.addr %s748, 8
        %s750 = scalar_lea.vmem %s0, %s749
        %s751 = smul.u32 16, %s40
        %v753 = vld [vmem:[%s750] sm:$0xff]
        %v754 = vld [vmem:[%s750 + $0x8] sm:$0xff]
        %v755 = vld [vmem:[%s750 + $0x10] sm:$0xff]
        %v756 = vld [vmem:[%s750 + $0x18] sm:$0xff]
        %v757 = vld [vmem:[%s750 + $0x20] sm:$0xff]
        %v758 = vld [vmem:[%s750 + $0x28] sm:$0xff]
        %v759 = vld [vmem:[%s750 + $0x30] sm:$0xff]
        %v760 = vld [vmem:[%s750 + $0x38] sm:$0xff]
        %v761 = vld [vmem:[%s750 + $0x40] sm:$0xff]
        %v762 = vld [vmem:[%s750 + $0x48] sm:$0xff]
        %v763 = vld [vmem:[%s750 + $0x50] sm:$0xff]
        %v764 = vld [vmem:[%s750 + $0x58] sm:$0xff]
        %v765 = vld [vmem:[%s750 + $0x60] sm:$0xff]
        %v766 = vld [vmem:[%s750 + $0x68] sm:$0xff]
        %v767 = vld [vmem:[%s750 + $0x70] sm:$0xff]
        %v768 = vld [vmem:[%s750 + $0x78] sm:$0xff]
        %v769 = vlaneseq
        %v770 = vand.u32 %v769, 127
        %771 = vset.pattern.permute.xlu0 0
        %772 = vperm.xlu0 %771, %v753
        %v773 = vpop.permute.xlu0 %772
        %774 = vset.pattern.permute.xlu0 0
        %775 = vperm.xlu0 %774, %v754
        %v776 = vpop.permute.xlu0 %775
        %777 = vset.pattern.permute.xlu0 0
        %778 = vperm.xlu0 %777, %v755
        %v779 = vpop.permute.xlu0 %778
        %780 = vset.pattern.permute.xlu0 0
        %781 = vperm.xlu0 %780, %v756
        %v782 = vpop.permute.xlu0 %781
        %783 = vset.pattern.permute.xlu0 0
        %784 = vperm.xlu0 %783, %v757
        %v785 = vpop.permute.xlu0 %784
        %786 = vset.pattern.permute.xlu0 0
        %787 = vperm.xlu0 %786, %v758
        %v788 = vpop.permute.xlu0 %787
        %789 = vset.pattern.permute.xlu0 0
        %790 = vperm.xlu0 %789, %v759
        %v791 = vpop.permute.xlu0 %790
        %792 = vset.pattern.permute.xlu0 0
        %793 = vperm.xlu0 %792, %v760
        %v794 = vpop.permute.xlu0 %793
        %795 = vset.pattern.permute.xlu0 0
        %796 = vperm.xlu0 %795, %v761
        %v797 = vpop.permute.xlu0 %796
        %798 = vset.pattern.permute.xlu0 0
        %799 = vperm.xlu0 %798, %v762
        %v800 = vpop.permute.xlu0 %799
        %801 = vset.pattern.permute.xlu0 0
        %802 = vperm.xlu0 %801, %v763
        %v803 = vpop.permute.xlu0 %802
        %804 = vset.pattern.permute.xlu0 0
        %805 = vperm.xlu0 %804, %v764
        %v806 = vpop.permute.xlu0 %805
        %807 = vset.pattern.permute.xlu0 0
        %808 = vperm.xlu0 %807, %v765
        %v809 = vpop.permute.xlu0 %808
        %810 = vset.pattern.permute.xlu0 0
        %811 = vperm.xlu0 %810, %v766
        %v812 = vpop.permute.xlu0 %811
        %813 = vset.pattern.permute.xlu0 0
        %814 = vperm.xlu0 %813, %v767
        %v815 = vpop.permute.xlu0 %814
        %816 = vset.pattern.permute.xlu0 0
        %817 = vperm.xlu0 %816, %v768
        %v818 = vpop.permute.xlu0 %817
        %vm819 = vcmp.eq.s32.totalorder %v773, %v770
        %vm820 = vcmp.eq.s32.totalorder %v776, %v770
        %vm821 = vcmp.eq.s32.totalorder %v779, %v770
        %vm822 = vcmp.eq.s32.totalorder %v782, %v770
        %vm823 = vcmp.eq.s32.totalorder %v785, %v770
        %vm824 = vcmp.eq.s32.totalorder %v788, %v770
        %vm825 = vcmp.eq.s32.totalorder %v791, %v770
        %vm826 = vcmp.eq.s32.totalorder %v794, %v770
        %vm827 = vcmp.eq.s32.totalorder %v797, %v770
        %vm828 = vcmp.eq.s32.totalorder %v800, %v770
        %vm829 = vcmp.eq.s32.totalorder %v803, %v770
        %vm830 = vcmp.eq.s32.totalorder %v806, %v770
        %vm831 = vcmp.eq.s32.totalorder %v809, %v770
        %vm832 = vcmp.eq.s32.totalorder %v812, %v770
        %vm833 = vcmp.eq.s32.totalorder %v815, %v770
        %vm834 = vcmp.eq.s32.totalorder %v818, %v770
        %v835 = vsel %vm819, 1, 0
        %v836 = vsel %vm820, 1, 0
        %v837 = vsel %vm821, 1, 0
        %v838 = vsel %vm822, 1, 0
        %v839 = vsel %vm823, 1, 0
        %v840 = vsel %vm824, 1, 0
        %v841 = vsel %vm825, 1, 0
        %v842 = vsel %vm826, 1, 0
        %v843 = vsel %vm827, 1, 0
        %v844 = vsel %vm828, 1, 0
        %v845 = vsel %vm829, 1, 0
        %v846 = vsel %vm830, 1, 0
        %v847 = vsel %vm831, 1, 0
        %v848 = vsel %vm832, 1, 0
        %v849 = vsel %vm833, 1, 0
        %v850 = vsel %vm834, 1, 0
        %v851 = vcvt.s32.f32 %v835
        %v852 = vcvt.s32.f32 %v836
        %v853 = vcvt.s32.f32 %v837
        %v854 = vcvt.s32.f32 %v838
        %v855 = vcvt.s32.f32 %v839
        %v856 = vcvt.s32.f32 %v840
        %v857 = vcvt.s32.f32 %v841
        %v858 = vcvt.s32.f32 %v842
        %v859 = vcvt.s32.f32 %v843
        %v860 = vcvt.s32.f32 %v844
        %v861 = vcvt.s32.f32 %v845
        %v862 = vcvt.s32.f32 %v846
        %v863 = vcvt.s32.f32 %v847
        %v864 = vcvt.s32.f32 %v848
        %v865 = vcvt.s32.f32 %v849
        %v866 = vcvt.s32.f32 %v850
        %v867 = vld [vmem:[%s654] sm:$0xff]
        %868 = vmatprep.subr.mxu0 0.0
        %869 = vmatpush1.msra.mxu0 %v866
        %870 = vmatprep.subr.mxu0 0.0
        %871 = vmatpush1.msra.mxu0 %v865
        %872 = vmatprep.subr.mxu0 0.0
        %873 = vmatpush1.msra.mxu0 %v864
        %874 = vmatprep.subr.mxu0 0.0
        %875 = vmatpush1.msra.mxu0 %v863
        %876 = vmatprep.subr.mxu0 0.0
        %877 = vmatpush1.msra.mxu0 %v862
        %878 = vmatprep.subr.mxu0 0.0
        %879 = vmatpush1.msra.mxu0 %v861
        %880 = vmatprep.subr.mxu0 0.0
        %881 = vmatpush1.msra.mxu0 %v860
        %882 = vmatprep.subr.mxu0 0.0
        %883 = vmatpush1.msra.mxu0 %v859
        %884 = vmatprep.subr.mxu0 0.0
        %885 = vmatpush1.msra.mxu0 %v858
        %886 = vmatprep.subr.mxu0 0.0
        %887 = vmatpush1.msra.mxu0 %v857
        %888 = vmatprep.subr.mxu0 0.0
        %889 = vmatpush1.msra.mxu0 %v856
        %890 = vmatprep.subr.mxu0 0.0
        %891 = vmatpush1.msra.mxu0 %v855
        %892 = vmatprep.subr.mxu0 0.0
        %893 = vmatpush1.msra.mxu0 %v854
        %894 = vmatprep.subr.mxu0 0.0
        %895 = vmatpush1.msra.mxu0 %v853
        %896 = vmatprep.subr.mxu0 0.0
        %897 = vmatpush1.msra.mxu0 %v852
        %898 = vmatprep.subr.mxu0 0.0
        %899 = vmatpush1.msra.mxu0 %v851
        %900 = vmatprep.subr.mxu0 0.0
        %901 = vmatpush2.msra.mxu0 0.0
        %902 = vmatprep.subr.mxu0 0.0
        %903 = vmatpush2.msra.mxu0 0.0
        %904 = vmatprep.subr.mxu0 0.0
        %905 = vmatpush2.msra.mxu0 0.0
        %906 = vmatprep.subr.mxu0 0.0
        %907 = vmatpush2.msra.mxu0 0.0
        %908 = vmatprep.subr.mxu0 0.0
        %909 = vmatpush2.msra.mxu0 0.0
        %910 = vmatprep.subr.mxu0 0.0
        %911 = vmatpush2.msra.mxu0 0.0
        %912 = vmatprep.subr.mxu0 0.0
        %913 = vmatpush2.msra.mxu0 0.0
        %914 = vmatprep.subr.mxu0 0.0
        %915 = vmatpush2.msra.mxu0 0.0
        %916 = vmatprep.subr.mxu0 0.0
        %917 = vmatpush2.msra.mxu0 0.0
        %918 = vmatprep.subr.mxu0 0.0
        %919 = vmatpush2.msra.mxu0 0.0
        %920 = vmatprep.subr.mxu0 0.0
        %921 = vmatpush2.msra.mxu0 0.0
        %922 = vmatprep.subr.mxu0 0.0
        %923 = vmatpush2.msra.mxu0 0.0
        %924 = vmatprep.subr.mxu0 0.0
        %925 = vmatpush2.msra.mxu0 0.0
        %926 = vmatprep.subr.mxu0 0.0
        %927 = vmatpush2.msra.mxu0 0.0
        %928 = vmatprep.subr.mxu0 0.0
        %929 = vmatpush2.msra.mxu0 0.0
        %930 = vmatprep.subr.mxu0 0.0
        %931 = vmatpush2.msra.mxu0 0.0
        %932 = vmatprep.mubr.f32.mxu0 0.0
        %933 = vmatmul.mubr.f32.gmra.mxu0 %v867
        %v934 = vpop.f32.mrf.mxu0
        %v935 = vadd.f32 0.0, %v934
        %v936 = vpop.f32.mrf.mxu0
        %937 = vdwg.mxu0
        %v938 = vpack.c.bf16 %v935, %v935
        %v939 = vld [vmem:[#allocation5] sm:$0xf]
        %v940 = vld [vmem:[#allocation5 + $0x4] sm:$0xf]
        %v941 = vld [vmem:[#allocation5 + $0x8] sm:$0xf]
        %v942 = vld [vmem:[#allocation5 + $0xc] sm:$0xf]
        %v943 = vld [vmem:[#allocation5 + $0x10] sm:$0xf]
        %v944 = vld [vmem:[#allocation5 + $0x14] sm:$0xf]
        %v945 = vld [vmem:[#allocation5 + $0x18] sm:$0xf]
        %v946 = vld [vmem:[#allocation5 + $0x1c] sm:$0xf]
        %v947 = vld [vmem:[#allocation7] sm:$0x1]
        %v949 = vlaneseq
        %v950 = vshrl.u32 %v949, 7
        %v951 = vsub.s32 0, %v950
        %v952 = vrot.slane %v947, %v951
        %v962 = vunpack.c.l.b16 %v939
        %v963 = vunpack.c.l.b16 %v940
        %v964 = vunpack.c.l.b16 %v941
        %v965 = vunpack.c.l.b16 %v942
        %v966 = vunpack.c.l.b16 %v943
        %v967 = vunpack.c.l.b16 %v944
        %v968 = vunpack.c.l.b16 %v945
        %v969 = vunpack.c.l.b16 %v946
        %v970 = vpack.c.b16 %v963, %v962
        %v971 = vpack.c.b16 %v965, %v964
        %v972 = vpack.c.b16 %v967, %v966
        %v973 = vpack.c.b16 %v969, %v968
        %vm978 = vcmask 523264
        %v980 = vsel %vm978, %v938, 0
        %982 = vmatprep.subr.bf16.mxu0 0
        %983 = vmatpush1.bf16.msra.mxu0 0
        %984 = vmatprep.subr.bf16.mxu0 0
        %985 = vmatpush1.bf16.msra.mxu0 0
        %986 = vmatprep.subr.bf16.mxu0 0
        %987 = vmatpush1.bf16.msra.mxu0 0
        %988 = vmatprep.subr.bf16.mxu0 0
        %989 = vmatpush1.bf16.msra.mxu0 0
        %990 = vmatprep.subr.bf16.mxu0 0
        %991 = vmatpush1.bf16.msra.mxu0 %v973
        %992 = vmatprep.subr.bf16.mxu0 0
        %993 = vmatpush1.bf16.msra.mxu0 %v972
        %994 = vmatprep.subr.bf16.mxu0 0
        %995 = vmatpush1.bf16.msra.mxu0 %v971
        %996 = vmatprep.subr.bf16.mxu0 0
        %997 = vmatpush1.bf16.msra.mxu0 %v970
        %998 = vmatprep.subr.bf16.mxu0 0
        %999 = vmatpush2.bf16.msra.mxu0 0
        %1000 = vmatprep.subr.bf16.mxu0 0
        %1001 = vmatpush2.bf16.msra.mxu0 0
        %1002 = vmatprep.subr.bf16.mxu0 0
        %1003 = vmatpush2.bf16.msra.mxu0 0
        %1004 = vmatprep.subr.bf16.mxu0 0
        %1005 = vmatpush2.bf16.msra.mxu0 0
        %1006 = vmatprep.subr.bf16.mxu0 0
        %1007 = vmatpush2.bf16.msra.mxu0 0
        %1008 = vmatprep.subr.bf16.mxu0 0
        %1009 = vmatpush2.bf16.msra.mxu0 0
        %1010 = vmatprep.subr.bf16.mxu0 0
        %1011 = vmatpush2.bf16.msra.mxu0 0
        %1012 = vmatprep.subr.bf16.mxu0 0
        %1013 = vmatpush2.bf16.msra.mxu0 0
        %1014 = vmatprep.mubr.bf16.mxu0 0
        %1015 = vmatmul.mubr.bf16.gmra.mxu0 %v980
        %v1016 = vpop.f32.mrf.mxu0
        %v1017 = vadd.f32 %v952, %v1016
        %v1018 = vpop.f32.mrf.mxu0
        %v1019 = vpop.f32.mrf.mxu0
        %v1020 = vpop.f32.mrf.mxu0
        %1021 = vdwg.mxu0
        %v1022 = vtanh.pop %v1017
        %v1023 = vld [vmem:[%s4] sm:$0xff]
        %v1024 = vadd.f32 %v1022, %v1023
        %v1025 = vld [vmem:[#allocation8] sm:$0xff]
        %v1026 = vld [vmem:[#allocation10] sm:$0xff]
        %v1027 = vld [vmem:[#allocation10 + $0x8] sm:$0xff]
        %v1028 = vld [vmem:[#allocation10 + $0x10] sm:$0xff]
        %v1029 = vld [vmem:[#allocation10 + $0x18] sm:$0xff]
        %v1030 = vpack.c.bf16 %v1024, %v1024
        %v1031 = vld [vmem:[%s7] sm:$0xff]
        %v1032 = vld [vmem:[%s7 + $0x8] sm:$0xff]
        %v1033 = vld [vmem:[%s7 + $0x10] sm:$0xff]
        %v1034 = vld [vmem:[%s7 + $0x18] sm:$0xff]
        %v1035 = vld [vmem:[%s7 + $0x20] sm:$0xff]
        %v1036 = vld [vmem:[%s7 + $0x28] sm:$0xff]
        %v1037 = vld [vmem:[%s7 + $0x30] sm:$0xff]
        %v1038 = vld [vmem:[%s7 + $0x38] sm:$0xff]
        %v1039 = vld [vmem:[%s8] sm:$0x3]
        %v1041 = vlaneseq
        %v1042 = vshrl.u32 %v1041, 7
        %v1043 = vsub.s32 0, %v1042
        %v1044 = vrot.slane %v1039, %v1043
        %v1045 = vlaneseq
        %v1046 = vshrl.u32 %v1045, 7
        %v1047 = vsub.s32 1, %v1046
        %v1048 = vrot.slane %v1039, %v1047
        %v1059 = vunpack.c.l.b16 %v1031
        %v1060 = vunpack.c.h.b16 %v1031
        %v1061 = vunpack.c.l.b16 %v1032
        %v1062 = vunpack.c.h.b16 %v1032
        %v1063 = vunpack.c.l.b16 %v1033
        %v1064 = vunpack.c.h.b16 %v1033
        %v1065 = vunpack.c.l.b16 %v1034
        %v1066 = vunpack.c.h.b16 %v1034
        %v1067 = vunpack.c.l.b16 %v1035
        %v1068 = vunpack.c.h.b16 %v1035
        %v1069 = vunpack.c.l.b16 %v1036
        %v1070 = vunpack.c.h.b16 %v1036
        %v1071 = vunpack.c.l.b16 %v1037
        %v1072 = vunpack.c.h.b16 %v1037
        %v1073 = vunpack.c.l.b16 %v1038
        %v1074 = vunpack.c.h.b16 %v1038
        %v1075 = vpack.c.b16 %v1061, %v1059
        %v1076 = vpack.c.b16 %v1062, %v1060
        %v1077 = vpack.c.b16 %v1065, %v1063
        %v1078 = vpack.c.b16 %v1066, %v1064
        %v1079 = vpack.c.b16 %v1069, %v1067
        %v1080 = vpack.c.b16 %v1070, %v1068
        %v1081 = vpack.c.b16 %v1073, %v1071
        %v1082 = vpack.c.b16 %v1074, %v1072
        %v1092 = vsel %vm978, %v1030, 0
        %1094 = vmatprep.subr.bf16.mxu0 0
        %1095 = vmatpush1.bf16.msra.mxu0 0
        %1096 = vmatprep.subr.bf16.mxu0 0
        %1097 = vmatpush1.bf16.msra.mxu0 0
        %1098 = vmatprep.subr.bf16.mxu0 0
        %1099 = vmatpush1.bf16.msra.mxu0 0
        %1100 = vmatprep.subr.bf16.mxu0 0
        %1101 = vmatpush1.bf16.msra.mxu0 0
        %1102 = vmatprep.subr.bf16.mxu0 %v1082
        %1103 = vmatpush1.bf16.msra.mxu0 %v1081
        %1104 = vmatprep.subr.bf16.mxu0 %v1080
        %1105 = vmatpush1.bf16.msra.mxu0 %v1079
        %1106 = vmatprep.subr.bf16.mxu0 %v1078
        %1107 = vmatpush1.bf16.msra.mxu0 %v1077
        %1108 = vmatprep.subr.bf16.mxu0 %v1076
        %1109 = vmatpush1.bf16.msra.mxu0 %v1075
        %1110 = vmatprep.subr.bf16.mxu0 0
        %1111 = vmatpush2.bf16.msra.mxu0 0
        %1112 = vmatprep.subr.bf16.mxu0 0
        %1113 = vmatpush2.bf16.msra.mxu0 0
        %1114 = vmatprep.subr.bf16.mxu0 0
        %1115 = vmatpush2.bf16.msra.mxu0 0
        %1116 = vmatprep.subr.bf16.mxu0 0
        %1117 = vmatpush2.bf16.msra.mxu0 0
        %1118 = vmatprep.subr.bf16.mxu0 0
        %1119 = vmatpush2.bf16.msra.mxu0 0
        %1120 = vmatprep.subr.bf16.mxu0 0
        %1121 = vmatpush2.bf16.msra.mxu0 0
        %1122 = vmatprep.subr.bf16.mxu0 0
        %1123 = vmatpush2.bf16.msra.mxu0 0
        %1124 = vmatprep.subr.bf16.mxu0 0
        %1125 = vmatpush2.bf16.msra.mxu0 0
        %1126 = vmatprep.mubr.bf16.mxu0 0
        %1127 = vmatmul.mubr.bf16.gmra.mxu0 %v1092
        %v1128 = vpop.f32.mrf.mxu0
        %v1129 = vadd.f32 %v1044, %v1128
        %v1130 = vpop.f32.mrf.mxu0
        %v1131 = vadd.f32 %v1048, %v1130
        %v1132 = vpop.f32.mrf.mxu0
        %v1133 = vpop.f32.mrf.mxu0
        %1134 = vdwg.mxu0
        %v1135 = vmul.f32 %v1129, 0.25
        %1140 = vrot.lane.b32.xlu0 %v1026, 64
        %v1141 = vpop.permute.xlu0 %1140
        %1142 = vrot.lane.b32.xlu0 %v1027, 64
        %v1143 = vpop.permute.xlu0 %1142
        %1144 = vrot.lane.b32.xlu0 %v1028, 64
        %v1145 = vpop.permute.xlu0 %1144
        %1146 = vrot.lane.b32.xlu0 %v1029, 64
        %v1147 = vpop.permute.xlu0 %1146
        %v1152 = vmul.f32 %v1129, %v1141
        %v1153 = vmul.f32 %v1129, %v1143
        %v1154 = vmul.f32 %v1129, %v1145
        %v1155 = vmul.f32 %v1129, %v1147
        %1160 = vrot.lane.b32.xlu0 %v1152, 64
        %v1161 = vpop.permute.xlu0 %1160
        %1162 = vrot.lane.b32.xlu0 %v1153, 64
        %v1163 = vpop.permute.xlu0 %1162
        %1164 = vrot.lane.b32.xlu0 %v1154, 64
        %v1165 = vpop.permute.xlu0 %1164
        %1166 = vrot.lane.b32.xlu0 %v1155, 64
        %v1167 = vpop.permute.xlu0 %1166
        %v1169 = vsel %vm978, %v1135, 0
        %v1171 = vsel %vm978, %v1161, 0
        %v1173 = vsel %vm978, %v1163, 0
        %v1175 = vsel %vm978, %v1165, 0
        %v1177 = vsel %vm978, %v1167, 0
        %1179 = vmatprep.subr.mxu0 0.0
        %1180 = vmatpush1.xpose.msra.mxu0 0.0
        %1181 = vmatprep.subr.mxu0 0.0
        %1182 = vmatpush1.xpose.msra.mxu0 0.0
        %1183 = vmatprep.subr.mxu0 0.0
        %1184 = vmatpush1.xpose.msra.mxu0 0.0
        %1185 = vmatprep.subr.mxu0 0.0
        %1186 = vmatpush1.xpose.msra.mxu0 0.0
        %1187 = vmatprep.subr.mxu0 0.0
        %1188 = vmatpush1.xpose.msra.mxu0 0.0
        %1189 = vmatprep.subr.mxu0 0.0
        %1190 = vmatpush1.xpose.msra.mxu0 0.0
        %1191 = vmatprep.subr.mxu0 0.0
        %1192 = vmatpush1.xpose.msra.mxu0 0.0
        %1193 = vmatprep.subr.mxu0 0.0
        %1194 = vmatpush1.xpose.msra.mxu0 0.0
        %1195 = vmatprep.subr.mxu0 0.0
        %1196 = vmatpush1.xpose.msra.mxu0 0.0
        %1197 = vmatprep.subr.mxu0 0.0
        %1198 = vmatpush1.xpose.msra.mxu0 0.0
        %1199 = vmatprep.subr.mxu0 0.0
        %1200 = vmatpush1.xpose.msra.mxu0 0.0
        %1201 = vmatprep.subr.mxu0 0.0
        %1202 = vmatpush1.xpose.msra.mxu0 0.0
        %1203 = vmatprep.subr.mxu0 0.0
        %1204 = vmatpush1.xpose.msra.mxu0 %v1177
        %1205 = vmatprep.subr.mxu0 0.0
        %1206 = vmatpush1.xpose.msra.mxu0 %v1175
        %1207 = vmatprep.subr.mxu0 0.0
        %1208 = vmatpush1.xpose.msra.mxu0 %v1173
        %1209 = vmatprep.subr.mxu0 0.0
        %1210 = vmatpush1.xpose.msra.mxu0 %v1171
        %1211 = vmatprep.subr.mxu0 0.0
        %1212 = vmatpush2.xpose.msra.mxu0 0.0
        %1213 = vmatprep.subr.mxu0 0.0
        %1214 = vmatpush2.xpose.msra.mxu0 0.0
        %1215 = vmatprep.subr.mxu0 0.0
        %1216 = vmatpush2.xpose.msra.mxu0 0.0
        %1217 = vmatprep.subr.mxu0 0.0
        %1218 = vmatpush2.xpose.msra.mxu0 0.0
        %1219 = vmatprep.subr.mxu0 0.0
        %1220 = vmatpush2.xpose.msra.mxu0 0.0
        %1221 = vmatprep.subr.mxu0 0.0
        %1222 = vmatpush2.xpose.msra.mxu0 0.0
        %1223 = vmatprep.subr.mxu0 0.0
        %1224 = vmatpush2.xpose.msra.mxu0 0.0
        %1225 = vmatprep.subr.mxu0 0.0
        %1226 = vmatpush2.xpose.msra.mxu0 0.0
        %1227 = vmatprep.subr.mxu0 0.0
        %1228 = vmatpush2.xpose.msra.mxu0 0.0
        %1229 = vmatprep.subr.mxu0 0.0
        %1230 = vmatpush2.xpose.msra.mxu0 0.0
        %1231 = vmatprep.subr.mxu0 0.0
        %1232 = vmatpush2.xpose.msra.mxu0 0.0
        %1233 = vmatprep.subr.mxu0 0.0
        %1234 = vmatpush2.xpose.msra.mxu0 0.0
        %1235 = vmatprep.subr.mxu0 0.0
        %1236 = vmatpush2.xpose.msra.mxu0 0.0
        %1237 = vmatprep.subr.mxu0 0.0
        %1238 = vmatpush2.xpose.msra.mxu0 0.0
        %1239 = vmatprep.subr.mxu0 0.0
        %1240 = vmatpush2.xpose.msra.mxu0 0.0
        %1241 = vmatprep.subr.mxu0 0.0
        %1242 = vmatpush2.xpose.msra.mxu0 0.0
        %1243 = vmatprep.mubr.f32.mxu0 0.0
        %1244 = vmatmul.mubr.f32.gmra.mxu0 %v1169
        %v1245 = vpop.f32.mrf.mxu0
        %v1246 = vadd.f32 %v1025, %v1245
        %v1247 = vpop.f32.mrf.mxu0
        %1248 = vdwg.mxu0
        %vm1249 = vcmask 261120
        %v1250 = vsel %vm1249, %v1246, -inf
        %1251 = vmax.xlane.f32.xlu0 %v1250
        %v1252 = vpop.xlane.xlu0 %1251
        %v1253 = vsub.f32 %v1246, %v1252
        %v1254 = vmul.f32 %v1253, 1.442695
        %v1255 = vpow.pop %v1254
        %v1256 = vmul.f32 %v1131, %v1026
        %v1257 = vmul.f32 %v1131, %v1027
        %v1258 = vmul.f32 %v1131, %v1028
        %v1259 = vmul.f32 %v1131, %v1029
        %v1260 = vsel %vm978, %v1256, %v1141
        %v1261 = vsel %vm978, %v1257, %v1143
        %v1262 = vsel %vm978, %v1258, %v1145
        %v1263 = vsel %vm978, %v1259, %v1147
        %v1265 = vsel %vm1249, %v1255, 0
        %1267 = vmatprep.subr.mxu0 0.0
        %1268 = vmatpush1.msra.mxu0 0.0
        %1269 = vmatprep.subr.mxu0 0.0
        %1270 = vmatpush1.msra.mxu0 0.0
        %1271 = vmatprep.subr.mxu0 0.0
        %1272 = vmatpush1.msra.mxu0 0.0
        %1273 = vmatprep.subr.mxu0 0.0
        %1274 = vmatpush1.msra.mxu0 0.0
        %1275 = vmatprep.subr.mxu0 0.0
        %1276 = vmatpush1.msra.mxu0 0.0
        %1277 = vmatprep.subr.mxu0 0.0
        %1278 = vmatpush1.msra.mxu0 0.0
        %1279 = vmatprep.subr.mxu0 0.0
        %1280 = vmatpush1.msra.mxu0 0.0
        %1281 = vmatprep.subr.mxu0 0.0
        %1282 = vmatpush1.msra.mxu0 0.0
        %1283 = vmatprep.subr.mxu0 0.0
        %1284 = vmatpush1.msra.mxu0 0.0
        %1285 = vmatprep.subr.mxu0 0.0
        %1286 = vmatpush1.msra.mxu0 0.0
        %1287 = vmatprep.subr.mxu0 0.0
        %1288 = vmatpush1.msra.mxu0 0.0
        %1289 = vmatprep.subr.mxu0 0.0
        %1290 = vmatpush1.msra.mxu0 0.0
        %1291 = vmatprep.subr.mxu0 0.0
        %1292 = vmatpush1.msra.mxu0 %v1263
        %1293 = vmatprep.subr.mxu0 0.0
        %1294 = vmatpush1.msra.mxu0 %v1262
        %1295 = vmatprep.subr.mxu0 0.0
        %1296 = vmatpush1.msra.mxu0 %v1261
        %1297 = vmatprep.subr.mxu0 0.0
        %1298 = vmatpush1.msra.mxu0 %v1260
        %1299 = vmatprep.subr.mxu0 0.0
        %1300 = vmatpush2.msra.mxu0 0.0
        %1301 = vmatprep.subr.mxu0 0.0
        %1302 = vmatpush2.msra.mxu0 0.0
        %1303 = vmatprep.subr.mxu0 0.0
        %1304 = vmatpush2.msra.mxu0 0.0
        %1305 = vmatprep.subr.mxu0 0.0
        %1306 = vmatpush2.msra.mxu0 0.0
        %1307 = vmatprep.subr.mxu0 0.0
        %1308 = vmatpush2.msra.mxu0 0.0
        %1309 = vmatprep.subr.mxu0 0.0
        %1310 = vmatpush2.msra.mxu0 0.0
        %1311 = vmatprep.subr.mxu0 0.0
        %1312 = vmatpush2.msra.mxu0 0.0
        %1313 = vmatprep.subr.mxu0 0.0
        %1314 = vmatpush2.msra.mxu0 0.0
        %1315 = vmatprep.subr.mxu0 0.0
        %1316 = vmatpush2.msra.mxu0 0.0
        %1317 = vmatprep.subr.mxu0 0.0
        %1318 = vmatpush2.msra.mxu0 0.0
        %1319 = vmatprep.subr.mxu0 0.0
        %1320 = vmatpush2.msra.mxu0 0.0
        %1321 = vmatprep.subr.mxu0 0.0
        %1322 = vmatpush2.msra.mxu0 0.0
        %1323 = vmatprep.subr.mxu0 0.0
        %1324 = vmatpush2.msra.mxu0 0.0
        %1325 = vmatprep.subr.mxu0 0.0
        %1326 = vmatpush2.msra.mxu0 0.0
        %1327 = vmatprep.subr.mxu0 0.0
        %1328 = vmatpush2.msra.mxu0 0.0
        %1329 = vmatprep.subr.mxu0 0.0
        %1330 = vmatpush2.msra.mxu0 0.0
        %1331 = vmatprep.mubr.f32.mxu0 0.0
        %1332 = vmatmul.mubr.f32.gmra.mxu0 %v1265
        %v1333 = vpop.f32.mrf.mxu0
        %v1334 = vadd.f32 0.0, %v1333
        %v1335 = vpop.f32.mrf.mxu0
        %1336 = vdwg.mxu0
        %v1337 = vadd.f32 %v1334, 1e-30
        %v1338 = vrcp.pop %v1337
        %1340 = vrot.lane.b32.xlu0 %v1338, 64
        %v1341 = vpop.permute.xlu0 %1340
        %v1343 = vmul.f32 %v1334, %v1341
        %v1344 = vpack.c.bf16 %v1343, %v1343
        %v1345 = vld [vmem:[%s9] sm:$0xf]
        %v1346 = vld [vmem:[%s9 + $0x4] sm:$0xf]
        %v1347 = vld [vmem:[%s9 + $0x8] sm:$0xf]
        %v1348 = vld [vmem:[%s9 + $0xc] sm:$0xf]
        %v1349 = vld [vmem:[%s9 + $0x10] sm:$0xf]
        %v1350 = vld [vmem:[%s9 + $0x14] sm:$0xf]
        %v1351 = vld [vmem:[%s9 + $0x18] sm:$0xf]
        %v1352 = vld [vmem:[%s9 + $0x1c] sm:$0xf]
        %v1353 = vld [vmem:[#allocation11] sm:$0x1]
        %v1355 = vlaneseq
        %v1356 = vshrl.u32 %v1355, 7
        %v1357 = vsub.s32 0, %v1356
        %v1358 = vrot.slane %v1353, %v1357
        %v1368 = vunpack.c.l.b16 %v1345
        %v1369 = vunpack.c.l.b16 %v1346
        %v1370 = vunpack.c.l.b16 %v1347
        %v1371 = vunpack.c.l.b16 %v1348
        %v1372 = vunpack.c.l.b16 %v1349
        %v1373 = vunpack.c.l.b16 %v1350
        %v1374 = vunpack.c.l.b16 %v1351
        %v1375 = vunpack.c.l.b16 %v1352
        %v1376 = vpack.c.b16 %v1369, %v1368
        %v1377 = vpack.c.b16 %v1371, %v1370
        %v1378 = vpack.c.b16 %v1373, %v1372
        %v1379 = vpack.c.b16 %v1375, %v1374
        %v1385 = vsel %vm978, %v1344, 0
        %1387 = vmatprep.subr.bf16.mxu0 0
        %1388 = vmatpush1.bf16.msra.mxu0 0
        %1389 = vmatprep.subr.bf16.mxu0 0
        %1390 = vmatpush1.bf16.msra.mxu0 0
        %1391 = vmatprep.subr.bf16.mxu0 0
        %1392 = vmatpush1.bf16.msra.mxu0 0
        %1393 = vmatprep.subr.bf16.mxu0 0
        %1394 = vmatpush1.bf16.msra.mxu0 0
        %1395 = vmatprep.subr.bf16.mxu0 0
        %1396 = vmatpush1.bf16.msra.mxu0 %v1379
        %1397 = vmatprep.subr.bf16.mxu0 0
        %1398 = vmatpush1.bf16.msra.mxu0 %v1378
        %1399 = vmatprep.subr.bf16.mxu0 0
        %1400 = vmatpush1.bf16.msra.mxu0 %v1377
        %1401 = vmatprep.subr.bf16.mxu0 0
        %1402 = vmatpush1.bf16.msra.mxu0 %v1376
        %1403 = vmatprep.subr.bf16.mxu0 0
        %1404 = vmatpush2.bf16.msra.mxu0 0
        %1405 = vmatprep.subr.bf16.mxu0 0
        %1406 = vmatpush2.bf16.msra.mxu0 0
        %1407 = vmatprep.subr.bf16.mxu0 0
        %1408 = vmatpush2.bf16.msra.mxu0 0
        %1409 = vmatprep.subr.bf16.mxu0 0
        %1410 = vmatpush2.bf16.msra.mxu0 0
        %1411 = vmatprep.subr.bf16.mxu0 0
        %1412 = vmatpush2.bf16.msra.mxu0 0
        %1413 = vmatprep.subr.bf16.mxu0 0
        %1414 = vmatpush2.bf16.msra.mxu0 0
        %1415 = vmatprep.subr.bf16.mxu0 0
        %1416 = vmatpush2.bf16.msra.mxu0 0
        %1417 = vmatprep.subr.bf16.mxu0 0
        %1418 = vmatpush2.bf16.msra.mxu0 0
        %1419 = vmatprep.mubr.bf16.mxu0 0
        %1420 = vmatmul.mubr.bf16.gmra.mxu0 %v1385
        %v1421 = vpop.f32.mrf.mxu0
        %v1422 = vadd.f32 %v1358, %v1421
        %v1423 = vpop.f32.mrf.mxu0
        %v1424 = vpop.f32.mrf.mxu0
        %v1425 = vpop.f32.mrf.mxu0
        %1426 = vdwg.mxu0
        %v1427 = vadd.f32 %v1024, %v1422
        %v1428 = vld [vmem:[#allocation13] sm:$0x1]
        %v1429 = vld [vmem:[%s12] sm:$0x1]
        %v1430 = vsel %vm978, %v1427, 0.0
        %1431 = vadd.xlane.f32.xlu0 %v1430
        %v1432 = vpop.xlane.xlu0 %1431
        %v1433 = vrcp.pop 64.0
        %v1434 = vmul.f32 %v1432, %v1433
        %v1435 = vsub.f32 %v1427, %v1434
        %v1436 = vmul.f32 %v1435, %v1435
        %v1437 = vsel %vm978, %v1436, 0.0
        %1438 = vadd.xlane.f32.xlu0 %v1437
        %v1439 = vpop.xlane.xlu0 %1438
        %v1440 = vmul.f32 %v1439, %v1433
        %v1441 = vadd.f32 %v1440, 1e-05
        %v1442 = vrsqrt.pop %v1441
        %v1443 = vmul.f32 %v1435, %v1442
        %v1445 = vlaneseq
        %v1446 = vshrl.u32 %v1445, 7
        %v1447 = vsub.s32 0, %v1446
        %v1448 = vrot.slane %v1428, %v1447
        %v1450 = vmul.f32 %v1443, %v1448
        %v1452 = vlaneseq
        %v1453 = vshrl.u32 %v1452, 7
        %v1454 = vsub.s32 0, %v1453
        %v1455 = vrot.slane %v1429, %v1454
        %v1457 = vadd.f32 %v1450, %v1455
        %v1458 = vpack.c.bf16 %v1457, %v1457
        %v1459 = vld [vmem:[%s13] sm:$0xf]
        %v1460 = vld [vmem:[%s13 + $0x4] sm:$0xf]
        %v1461 = vld [vmem:[%s13 + $0x8] sm:$0xf]
        %v1462 = vld [vmem:[%s13 + $0xc] sm:$0xf]
        %v1463 = vld [vmem:[%s13 + $0x10] sm:$0xf]
        %v1464 = vld [vmem:[%s13 + $0x14] sm:$0xf]
        %v1465 = vld [vmem:[%s13 + $0x18] sm:$0xf]
        %v1466 = vld [vmem:[%s13 + $0x1c] sm:$0xf]
        %v1467 = vld [vmem:[#allocation14] sm:$0x1]
        %v1469 = vlaneseq
        %v1470 = vshrl.u32 %v1469, 7
        %v1471 = vsub.s32 0, %v1470
        %v1472 = vrot.slane %v1467, %v1471
        %v1482 = vunpack.c.l.b16 %v1459
        %v1483 = vunpack.c.l.b16 %v1460
        %v1484 = vunpack.c.l.b16 %v1461
        %v1485 = vunpack.c.l.b16 %v1462
        %v1486 = vunpack.c.l.b16 %v1463
        %v1487 = vunpack.c.l.b16 %v1464
        %v1488 = vunpack.c.l.b16 %v1465
        %v1489 = vunpack.c.l.b16 %v1466
        %v1490 = vpack.c.b16 %v1483, %v1482
        %v1491 = vpack.c.b16 %v1485, %v1484
        %v1492 = vpack.c.b16 %v1487, %v1486
        %v1493 = vpack.c.b16 %v1489, %v1488
        %v1499 = vsel %vm978, %v1458, 0
        %1501 = vmatprep.subr.bf16.mxu0 0
        %1502 = vmatpush1.bf16.msra.mxu0 0
        %1503 = vmatprep.subr.bf16.mxu0 0
        %1504 = vmatpush1.bf16.msra.mxu0 0
        %1505 = vmatprep.subr.bf16.mxu0 0
        %1506 = vmatpush1.bf16.msra.mxu0 0
        %1507 = vmatprep.subr.bf16.mxu0 0
        %1508 = vmatpush1.bf16.msra.mxu0 0
        %1509 = vmatprep.subr.bf16.mxu0 0
        %1510 = vmatpush1.bf16.msra.mxu0 %v1493
        %1511 = vmatprep.subr.bf16.mxu0 0
        %1512 = vmatpush1.bf16.msra.mxu0 %v1492
        %1513 = vmatprep.subr.bf16.mxu0 0
        %1514 = vmatpush1.bf16.msra.mxu0 %v1491
        %1515 = vmatprep.subr.bf16.mxu0 0
        %1516 = vmatpush1.bf16.msra.mxu0 %v1490
        %1517 = vmatprep.subr.bf16.mxu0 0
        %1518 = vmatpush2.bf16.msra.mxu0 0
        %1519 = vmatprep.subr.bf16.mxu0 0
        %1520 = vmatpush2.bf16.msra.mxu0 0
        %1521 = vmatprep.subr.bf16.mxu0 0
        %1522 = vmatpush2.bf16.msra.mxu0 0
        %1523 = vmatprep.subr.bf16.mxu0 0
        %1524 = vmatpush2.bf16.msra.mxu0 0
        %1525 = vmatprep.subr.bf16.mxu0 0
        %1526 = vmatpush2.bf16.msra.mxu0 0
        %1527 = vmatprep.subr.bf16.mxu0 0
        %1528 = vmatpush2.bf16.msra.mxu0 0
        %1529 = vmatprep.subr.bf16.mxu0 0
        %1530 = vmatpush2.bf16.msra.mxu0 0
        %1531 = vmatprep.subr.bf16.mxu0 0
        %1532 = vmatpush2.bf16.msra.mxu0 0
        %1533 = vmatprep.mubr.bf16.mxu0 0
        %1534 = vmatmul.mubr.bf16.gmra.mxu0 %v1499
        %v1535 = vpop.f32.mrf.mxu0
        %v1536 = vadd.f32 %v1472, %v1535
        %v1537 = vpop.f32.mrf.mxu0
        %v1538 = vpop.f32.mrf.mxu0
        %v1539 = vpop.f32.mrf.mxu0
        %1540 = vdwg.mxu0
        %v1541 = vmax.f32 %v1536, 0.0
        %v1542 = vpack.c.bf16 %v1541, %v1541
        %v1543 = vld [vmem:[%s15] sm:$0xf]
        %v1544 = vld [vmem:[%s15 + $0x4] sm:$0xf]
        %v1545 = vld [vmem:[%s15 + $0x8] sm:$0xf]
        %v1546 = vld [vmem:[%s15 + $0xc] sm:$0xf]
        %v1547 = vld [vmem:[%s15 + $0x10] sm:$0xf]
        %v1548 = vld [vmem:[%s15 + $0x14] sm:$0xf]
        %v1549 = vld [vmem:[%s15 + $0x18] sm:$0xf]
        %v1550 = vld [vmem:[%s15 + $0x1c] sm:$0xf]
        %v1551 = vld [vmem:[%s15 + $0x20] sm:$0xf]
        %v1552 = vld [vmem:[%s15 + $0x24] sm:$0xf]
        %v1553 = vld [vmem:[%s15 + $0x28] sm:$0xf]
        %v1554 = vld [vmem:[%s15 + $0x2c] sm:$0xf]
        %v1555 = vld [vmem:[%s15 + $0x30] sm:$0xf]
        %v1556 = vld [vmem:[%s15 + $0x34] sm:$0xf]
        %v1557 = vld [vmem:[%s15 + $0x38] sm:$0xf]
        %v1558 = vld [vmem:[%s15 + $0x3c] sm:$0xf]
        %v1559 = vld [vmem:[%s16] sm:$0x1]
        %v1561 = vlaneseq
        %v1562 = vshrl.u32 %v1561, 7
        %v1563 = vsub.s32 0, %v1562
        %v1564 = vrot.slane %v1559, %v1563
        %v1582 = vunpack.c.l.b16 %v1543
        %v1583 = vunpack.c.l.b16 %v1544
        %v1584 = vunpack.c.l.b16 %v1545
        %v1585 = vunpack.c.l.b16 %v1546
        %v1586 = vunpack.c.l.b16 %v1547
        %v1587 = vunpack.c.l.b16 %v1548
        %v1588 = vunpack.c.l.b16 %v1549
        %v1589 = vunpack.c.l.b16 %v1550
        %v1590 = vunpack.c.l.b16 %v1551
        %v1591 = vunpack.c.l.b16 %v1552
        %v1592 = vunpack.c.l.b16 %v1553
        %v1593 = vunpack.c.l.b16 %v1554
        %v1594 = vunpack.c.l.b16 %v1555
        %v1595 = vunpack.c.l.b16 %v1556
        %v1596 = vunpack.c.l.b16 %v1557
        %v1597 = vunpack.c.l.b16 %v1558
        %v1598 = vpack.c.b16 %v1583, %v1582
        %v1599 = vpack.c.b16 %v1585, %v1584
        %v1600 = vpack.c.b16 %v1587, %v1586
        %v1601 = vpack.c.b16 %v1589, %v1588
        %v1602 = vpack.c.b16 %v1591, %v1590
        %v1603 = vpack.c.b16 %v1593, %v1592
        %v1604 = vpack.c.b16 %v1595, %v1594
        %v1605 = vpack.c.b16 %v1597, %v1596
        %1614 = vmatprep.subr.bf16.mxu0 0
        %1615 = vmatpush1.bf16.msra.mxu0 %v1605
        %1616 = vmatprep.subr.bf16.mxu0 0
        %1617 = vmatpush1.bf16.msra.mxu0 %v1604
        %1618 = vmatprep.subr.bf16.mxu0 0
        %1619 = vmatpush1.bf16.msra.mxu0 %v1603
        %1620 = vmatprep.subr.bf16.mxu0 0
        %1621 = vmatpush1.bf16.msra.mxu0 %v1602
        %1622 = vmatprep.subr.bf16.mxu0 0
        %1623 = vmatpush1.bf16.msra.mxu0 %v1601
        %1624 = vmatprep.subr.bf16.mxu0 0
        %1625 = vmatpush1.bf16.msra.mxu0 %v1600
        %1626 = vmatprep.subr.bf16.mxu0 0
        %1627 = vmatpush1.bf16.msra.mxu0 %v1599
        %1628 = vmatprep.subr.bf16.mxu0 0
        %1629 = vmatpush1.bf16.msra.mxu0 %v1598
        %1630 = vmatprep.subr.bf16.mxu0 0
        %1631 = vmatpush2.bf16.msra.mxu0 0
        %1632 = vmatprep.subr.bf16.mxu0 0
        %1633 = vmatpush2.bf16.msra.mxu0 0
        %1634 = vmatprep.subr.bf16.mxu0 0
        %1635 = vmatpush2.bf16.msra.mxu0 0
        %1636 = vmatprep.subr.bf16.mxu0 0
        %1637 = vmatpush2.bf16.msra.mxu0 0
        %1638 = vmatprep.subr.bf16.mxu0 0
        %1639 = vmatpush2.bf16.msra.mxu0 0
        %1640 = vmatprep.subr.bf16.mxu0 0
        %1641 = vmatpush2.bf16.msra.mxu0 0
        %1642 = vmatprep.subr.bf16.mxu0 0
        %1643 = vmatpush2.bf16.msra.mxu0 0
        %1644 = vmatprep.subr.bf16.mxu0 0
        %1645 = vmatpush2.bf16.msra.mxu0 0
        %1646 = vmatprep.mubr.bf16.mxu0 0
        %1647 = vmatmul.mubr.bf16.gmra.mxu0 %v1542
        %v1648 = vpop.f32.mrf.mxu0
        %v1649 = vadd.f32 %v1564, %v1648
        %v1650 = vpop.f32.mrf.mxu0
        %v1651 = vpop.f32.mrf.mxu0
        %v1652 = vpop.f32.mrf.mxu0
        %1653 = vdwg.mxu0
        %v1654 = vadd.f32 %v1457, %v1649
        %v1655 = vld [vmem:[%s17] sm:$0x1]
        %v1656 = vld [vmem:[#allocation16] sm:$0x1]
        %v1657 = vsel %vm978, %v1654, 0.0
        %1658 = vadd.xlane.f32.xlu0 %v1657
        %v1659 = vpop.xlane.xlu0 %1658
        %v1660 = vmul.f32 %v1659, %v1433
        %v1661 = vsub.f32 %v1654, %v1660
        %v1662 = vmul.f32 %v1661, %v1661
        %v1663 = vsel %vm978, %v1662, 0.0
        %1664 = vadd.xlane.f32.xlu0 %v1663
        %v1665 = vpop.xlane.xlu0 %1664
        %v1666 = vmul.f32 %v1665, %v1433
        %v1667 = vadd.f32 %v1666, 1e-05
        %v1668 = vrsqrt.pop %v1667
        %v1669 = vmul.f32 %v1661, %v1668
        %v1671 = vlaneseq
        %v1672 = vshrl.u32 %v1671, 7
        %v1673 = vsub.s32 0, %v1672
        %v1674 = vrot.slane %v1655, %v1673
        %v1676 = vmul.f32 %v1669, %v1674
        %v1678 = vlaneseq
        %v1679 = vshrl.u32 %v1678, 7
        %v1680 = vsub.s32 0, %v1679
        %v1681 = vrot.slane %v1656, %v1680
        %v1683 = vadd.f32 %v1676, %v1681
        %v1684 = vpack.c.bf16 %v1683, %v1683
        %s1685 = scalar_lea.vmem %s7, 64
        %v1686 = vld [vmem:[%s1685] sm:$0xff]
        %v1687 = vld [vmem:[%s1685 + $0x8] sm:$0xff]
        %v1688 = vld [vmem:[%s1685 + $0x10] sm:$0xff]
        %v1689 = vld [vmem:[%s1685 + $0x18] sm:$0xff]
        %v1690 = vld [vmem:[%s1685 + $0x20] sm:$0xff]
        %v1691 = vld [vmem:[%s1685 + $0x28] sm:$0xff]
        %v1692 = vld [vmem:[%s1685 + $0x30] sm:$0xff]
        %v1693 = vld [vmem:[%s1685 + $0x38] sm:$0xff]
        %s1694 = scalar_lea.vmem %s8, 2
        %v1695 = vld [vmem:[%s1694] sm:$0x3]
        %v1697 = vlaneseq
        %v1698 = vshrl.u32 %v1697, 7
        %v1699 = vsub.s32 0, %v1698
        %v1700 = vrot.slane %v1695, %v1699
        %v1701 = vlaneseq
        %v1702 = vshrl.u32 %v1701, 7
        %v1703 = vsub.s32 1, %v1702
        %v1704 = vrot.slane %v1695, %v1703
        %v1715 = vunpack.c.l.b16 %v1686
        %v1716 = vunpack.c.h.b16 %v1686
        %v1717 = vunpack.c.l.b16 %v1687
        %v1718 = vunpack.c.h.b16 %v1687
        %v1719 = vunpack.c.l.b16 %v1688
        %v1720 = vunpack.c.h.b16 %v1688
        %v1721 = vunpack.c.l.b16 %v1689
        %v1722 = vunpack.c.h.b16 %v1689
        %v1723 = vunpack.c.l.b16 %v1690
        %v1724 = vunpack.c.h.b16 %v1690
        %v1725 = vunpack.c.l.b16 %v1691
        %v1726 = vunpack.c.h.b16 %v1691
        %v1727 = vunpack.c.l.b16 %v1692
        %v1728 = vunpack.c.h.b16 %v1692
        %v1729 = vunpack.c.l.b16 %v1693
        %v1730 = vunpack.c.h.b16 %v1693
        %v1731 = vpack.c.b16 %v1717, %v1715
        %v1732 = vpack.c.b16 %v1718, %v1716
        %v1733 = vpack.c.b16 %v1721, %v1719
        %v1734 = vpack.c.b16 %v1722, %v1720
        %v1735 = vpack.c.b16 %v1725, %v1723
        %v1736 = vpack.c.b16 %v1726, %v1724
        %v1737 = vpack.c.b16 %v1729, %v1727
        %v1738 = vpack.c.b16 %v1730, %v1728
        %v1748 = vsel %vm978, %v1684, 0
        %1750 = vmatprep.subr.bf16.mxu0 0
        %1751 = vmatpush1.bf16.msra.mxu0 0
        %1752 = vmatprep.subr.bf16.mxu0 0
        %1753 = vmatpush1.bf16.msra.mxu0 0
        %1754 = vmatprep.subr.bf16.mxu0 0
        %1755 = vmatpush1.bf16.msra.mxu0 0
        %1756 = vmatprep.subr.bf16.mxu0 0
        %1757 = vmatpush1.bf16.msra.mxu0 0
        %1758 = vmatprep.subr.bf16.mxu0 %v1738
        %1759 = vmatpush1.bf16.msra.mxu0 %v1737
        %1760 = vmatprep.subr.bf16.mxu0 %v1736
        %1761 = vmatpush1.bf16.msra.mxu0 %v1735
        %1762 = vmatprep.subr.bf16.mxu0 %v1734
        %1763 = vmatpush1.bf16.msra.mxu0 %v1733
        %1764 = vmatprep.subr.bf16.mxu0 %v1732
        %1765 = vmatpush1.bf16.msra.mxu0 %v1731
        %1766 = vmatprep.subr.bf16.mxu0 0
        %1767 = vmatpush2.bf16.msra.mxu0 0
        %1768 = vmatprep.subr.bf16.mxu0 0
        %1769 = vmatpush2.bf16.msra.mxu0 0
        %1770 = vmatprep.subr.bf16.mxu0 0
        %1771 = vmatpush2.bf16.msra.mxu0 0
        %1772 = vmatprep.subr.bf16.mxu0 0
        %1773 = vmatpush2.bf16.msra.mxu0 0
        %1774 = vmatprep.subr.bf16.mxu0 0
        %1775 = vmatpush2.bf16.msra.mxu0 0
        %1776 = vmatprep.subr.bf16.mxu0 0
        %1777 = vmatpush2.bf16.msra.mxu0 0
        %1778 = vmatprep.subr.bf16.mxu0 0
        %1779 = vmatpush2.bf16.msra.mxu0 0
        %1780 = vmatprep.subr.bf16.mxu0 0
        %1781 = vmatpush2.bf16.msra.mxu0 0
        %1782 = vmatprep.mubr.bf16.mxu0 0
        %1783 = vmatmul.mubr.bf16.gmra.mxu0 %v1748
        %v1784 = vpop.f32.mrf.mxu0
        %v1785 = vadd.f32 %v1700, %v1784
        %v1786 = vpop.f32.mrf.mxu0
        %v1787 = vadd.f32 %v1704, %v1786
        %v1788 = vpop.f32.mrf.mxu0
        %v1789 = vpop.f32.mrf.mxu0
        %1790 = vdwg.mxu0
        %v1791 = vmul.f32 %v1785, 0.25
        %v1792 = vmul.f32 %v1785, %v1141
        %v1793 = vmul.f32 %v1785, %v1143
        %v1794 = vmul.f32 %v1785, %v1145
        %v1795 = vmul.f32 %v1785, %v1147
        %1800 = vrot.lane.b32.xlu0 %v1792, 64
        %v1801 = vpop.permute.xlu0 %1800
        %1802 = vrot.lane.b32.xlu0 %v1793, 64
        %v1803 = vpop.permute.xlu0 %1802
        %1804 = vrot.lane.b32.xlu0 %v1794, 64
        %v1805 = vpop.permute.xlu0 %1804
        %1806 = vrot.lane.b32.xlu0 %v1795, 64
        %v1807 = vpop.permute.xlu0 %1806
        %v1809 = vsel %vm978, %v1791, 0
        %v1811 = vsel %vm978, %v1801, 0
        %v1813 = vsel %vm978, %v1803, 0
        %v1815 = vsel %vm978, %v1805, 0
        %v1817 = vsel %vm978, %v1807, 0
        %1819 = vmatprep.subr.mxu0 0.0
        %1820 = vmatpush1.xpose.msra.mxu0 0.0
        %1821 = vmatprep.subr.mxu0 0.0
        %1822 = vmatpush1.xpose.msra.mxu0 0.0
        %1823 = vmatprep.subr.mxu0 0.0
        %1824 = vmatpush1.xpose.msra.mxu0 0.0
        %1825 = vmatprep.subr.mxu0 0.0
        %1826 = vmatpush1.xpose.msra.mxu0 0.0
        %1827 = vmatprep.subr.mxu0 0.0
        %1828 = vmatpush1.xpose.msra.mxu0 0.0
        %1829 = vmatprep.subr.mxu0 0.0
        %1830 = vmatpush1.xpose.msra.mxu0 0.0
        %1831 = vmatprep.subr.mxu0 0.0
        %1832 = vmatpush1.xpose.msra.mxu0 0.0
        %1833 = vmatprep.subr.mxu0 0.0
        %1834 = vmatpush1.xpose.msra.mxu0 0.0
        %1835 = vmatprep.subr.mxu0 0.0
        %1836 = vmatpush1.xpose.msra.mxu0 0.0
        %1837 = vmatprep.subr.mxu0 0.0
        %1838 = vmatpush1.xpose.msra.mxu0 0.0
        %1839 = vmatprep.subr.mxu0 0.0
        %1840 = vmatpush1.xpose.msra.mxu0 0.0
        %1841 = vmatprep.subr.mxu0 0.0
        %1842 = vmatpush1.xpose.msra.mxu0 0.0
        %1843 = vmatprep.subr.mxu0 0.0
        %1844 = vmatpush1.xpose.msra.mxu0 %v1817
        %1845 = vmatprep.subr.mxu0 0.0
        %1846 = vmatpush1.xpose.msra.mxu0 %v1815
        %1847 = vmatprep.subr.mxu0 0.0
        %1848 = vmatpush1.xpose.msra.mxu0 %v1813
        %1849 = vmatprep.subr.mxu0 0.0
        %1850 = vmatpush1.xpose.msra.mxu0 %v1811
        %1851 = vmatprep.subr.mxu0 0.0
        %1852 = vmatpush2.xpose.msra.mxu0 0.0
        %1853 = vmatprep.subr.mxu0 0.0
        %1854 = vmatpush2.xpose.msra.mxu0 0.0
        %1855 = vmatprep.subr.mxu0 0.0
        %1856 = vmatpush2.xpose.msra.mxu0 0.0
        %1857 = vmatprep.subr.mxu0 0.0
        %1858 = vmatpush2.xpose.msra.mxu0 0.0
        %1859 = vmatprep.subr.mxu0 0.0
        %1860 = vmatpush2.xpose.msra.mxu0 0.0
        %1861 = vmatprep.subr.mxu0 0.0
        %1862 = vmatpush2.xpose.msra.mxu0 0.0
        %1863 = vmatprep.subr.mxu0 0.0
        %1864 = vmatpush2.xpose.msra.mxu0 0.0
        %1865 = vmatprep.subr.mxu0 0.0
        %1866 = vmatpush2.xpose.msra.mxu0 0.0
        %1867 = vmatprep.subr.mxu0 0.0
        %1868 = vmatpush2.xpose.msra.mxu0 0.0
        %1869 = vmatprep.subr.mxu0 0.0
        %1870 = vmatpush2.xpose.msra.mxu0 0.0
        %1871 = vmatprep.subr.mxu0 0.0
        %1872 = vmatpush2.xpose.msra.mxu0 0.0
        %1873 = vmatprep.subr.mxu0 0.0
        %1874 = vmatpush2.xpose.msra.mxu0 0.0
        %1875 = vmatprep.subr.mxu0 0.0
        %1876 = vmatpush2.xpose.msra.mxu0 0.0
        %1877 = vmatprep.subr.mxu0 0.0
        %1878 = vmatpush2.xpose.msra.mxu0 0.0
        %1879 = vmatprep.subr.mxu0 0.0
        %1880 = vmatpush2.xpose.msra.mxu0 0.0
        %1881 = vmatprep.subr.mxu0 0.0
        %1882 = vmatpush2.xpose.msra.mxu0 0.0
        %1883 = vmatprep.mubr.f32.mxu0 0.0
        %1884 = vmatmul.mubr.f32.gmra.mxu0 %v1809
        %v1885 = vpop.f32.mrf.mxu0
        %v1886 = vadd.f32 %v1025, %v1885
        %v1887 = vpop.f32.mrf.mxu0
        %1888 = vdwg.mxu0
        %v1889 = vsel %vm1249, %v1886, -inf
        %1890 = vmax.xlane.f32.xlu0 %v1889
        %v1891 = vpop.xlane.xlu0 %1890
        %v1892 = vsub.f32 %v1886, %v1891
        %v1893 = vmul.f32 %v1892, 1.442695
        %v1894 = vpow.pop %v1893
        %v1895 = vmul.f32 %v1787, %v1026
        %v1896 = vmul.f32 %v1787, %v1027
        %v1897 = vmul.f32 %v1787, %v1028
        %v1898 = vmul.f32 %v1787, %v1029
        %v1899 = vsel %vm978, %v1895, %v1141
        %v1900 = vsel %vm978, %v1896, %v1143
        %v1901 = vsel %vm978, %v1897, %v1145
        %v1902 = vsel %vm978, %v1898, %v1147
        %v1904 = vsel %vm1249, %v1894, 0
        %1906 = vmatprep.subr.mxu0 0.0
        %1907 = vmatpush1.msra.mxu0 0.0
        %1908 = vmatprep.subr.mxu0 0.0
        %1909 = vmatpush1.msra.mxu0 0.0
        %1910 = vmatprep.subr.mxu0 0.0
        %1911 = vmatpush1.msra.mxu0 0.0
        %1912 = vmatprep.subr.mxu0 0.0
        %1913 = vmatpush1.msra.mxu0 0.0
        %1914 = vmatprep.subr.mxu0 0.0
        %1915 = vmatpush1.msra.mxu0 0.0
        %1916 = vmatprep.subr.mxu0 0.0
        %1917 = vmatpush1.msra.mxu0 0.0
        %1918 = vmatprep.subr.mxu0 0.0
        %1919 = vmatpush1.msra.mxu0 0.0
        %1920 = vmatprep.subr.mxu0 0.0
        %1921 = vmatpush1.msra.mxu0 0.0
        %1922 = vmatprep.subr.mxu0 0.0
        %1923 = vmatpush1.msra.mxu0 0.0
        %1924 = vmatprep.subr.mxu0 0.0
        %1925 = vmatpush1.msra.mxu0 0.0
        %1926 = vmatprep.subr.mxu0 0.0
        %1927 = vmatpush1.msra.mxu0 0.0
        %1928 = vmatprep.subr.mxu0 0.0
        %1929 = vmatpush1.msra.mxu0 0.0
        %1930 = vmatprep.subr.mxu0 0.0
        %1931 = vmatpush1.msra.mxu0 %v1902
        %1932 = vmatprep.subr.mxu0 0.0
        %1933 = vmatpush1.msra.mxu0 %v1901
        %1934 = vmatprep.subr.mxu0 0.0
        %1935 = vmatpush1.msra.mxu0 %v1900
        %1936 = vmatprep.subr.mxu0 0.0
        %1937 = vmatpush1.msra.mxu0 %v1899
        %1938 = vmatprep.subr.mxu0 0.0
        %1939 = vmatpush2.msra.mxu0 0.0
        %1940 = vmatprep.subr.mxu0 0.0
        %1941 = vmatpush2.msra.mxu0 0.0
        %1942 = vmatprep.subr.mxu0 0.0
        %1943 = vmatpush2.msra.mxu0 0.0
        %1944 = vmatprep.subr.mxu0 0.0
        %1945 = vmatpush2.msra.mxu0 0.0
        %1946 = vmatprep.subr.mxu0 0.0
        %1947 = vmatpush2.msra.mxu0 0.0
        %1948 = vmatprep.subr.mxu0 0.0
        %1949 = vmatpush2.msra.mxu0 0.0
        %1950 = vmatprep.subr.mxu0 0.0
        %1951 = vmatpush2.msra.mxu0 0.0
        %1952 = vmatprep.subr.mxu0 0.0
        %1953 = vmatpush2.msra.mxu0 0.0
        %1954 = vmatprep.subr.mxu0 0.0
        %1955 = vmatpush2.msra.mxu0 0.0
        %1956 = vmatprep.subr.mxu0 0.0
        %1957 = vmatpush2.msra.mxu0 0.0
        %1958 = vmatprep.subr.mxu0 0.0
        %1959 = vmatpush2.msra.mxu0 0.0
        %1960 = vmatprep.subr.mxu0 0.0
        %1961 = vmatpush2.msra.mxu0 0.0
        %1962 = vmatprep.subr.mxu0 0.0
        %1963 = vmatpush2.msra.mxu0 0.0
        %1964 = vmatprep.subr.mxu0 0.0
        %1965 = vmatpush2.msra.mxu0 0.0
        %1966 = vmatprep.subr.mxu0 0.0
        %1967 = vmatpush2.msra.mxu0 0.0
        %1968 = vmatprep.subr.mxu0 0.0
        %1969 = vmatpush2.msra.mxu0 0.0
        %1970 = vmatprep.mubr.f32.mxu0 0.0
        %1971 = vmatmul.mubr.f32.gmra.mxu0 %v1904
        %v1972 = vpop.f32.mrf.mxu0
        %v1973 = vadd.f32 0.0, %v1972
        %v1974 = vpop.f32.mrf.mxu0
        %1975 = vdwg.mxu0
        %v1976 = vadd.f32 %v1973, 1e-30
        %v1977 = vrcp.pop %v1976
        %1979 = vrot.lane.b32.xlu0 %v1977, 64
        %v1980 = vpop.permute.xlu0 %1979
        %v1982 = vmul.f32 %v1973, %v1980
        %v1983 = vpack.c.bf16 %v1982, %v1982
        %s1984 = scalar_lea.vmem %s9, 32
        %v1985 = vld [vmem:[%s1984] sm:$0xf]
        %v1986 = vld [vmem:[%s1984 + $0x4] sm:$0xf]
        %v1987 = vld [vmem:[%s1984 + $0x8] sm:$0xf]
        %v1988 = vld [vmem:[%s1984 + $0xc] sm:$0xf]
        %v1989 = vld [vmem:[%s1984 + $0x10] sm:$0xf]
        %v1990 = vld [vmem:[%s1984 + $0x14] sm:$0xf]
        %v1991 = vld [vmem:[%s1984 + $0x18] sm:$0xf]
        %v1992 = vld [vmem:[%s1984 + $0x1c] sm:$0xf]
        %s1993 = scalar_lea.vmem [#allocation11], 1
        %v1994 = vld [vmem:[%s1993] sm:$0x1]
        %v1996 = vlaneseq
        %v1997 = vshrl.u32 %v1996, 7
        %v1998 = vsub.s32 0, %v1997
        %v1999 = vrot.slane %v1994, %v1998
        %v2009 = vunpack.c.l.b16 %v1985
        %v2010 = vunpack.c.l.b16 %v1986
        %v2011 = vunpack.c.l.b16 %v1987
        %v2012 = vunpack.c.l.b16 %v1988
        %v2013 = vunpack.c.l.b16 %v1989
        %v2014 = vunpack.c.l.b16 %v1990
        %v2015 = vunpack.c.l.b16 %v1991
        %v2016 = vunpack.c.l.b16 %v1992
        %v2017 = vpack.c.b16 %v2010, %v2009
        %v2018 = vpack.c.b16 %v2012, %v2011
        %v2019 = vpack.c.b16 %v2014, %v2013
        %v2020 = vpack.c.b16 %v2016, %v2015
        %v2026 = vsel %vm978, %v1983, 0
        %2028 = vmatprep.subr.bf16.mxu0 0
        %2029 = vmatpush1.bf16.msra.mxu0 0
        %2030 = vmatprep.subr.bf16.mxu0 0
        %2031 = vmatpush1.bf16.msra.mxu0 0
        %2032 = vmatprep.subr.bf16.mxu0 0
        %2033 = vmatpush1.bf16.msra.mxu0 0
        %2034 = vmatprep.subr.bf16.mxu0 0
        %2035 = vmatpush1.bf16.msra.mxu0 0
        %2036 = vmatprep.subr.bf16.mxu0 0
        %2037 = vmatpush1.bf16.msra.mxu0 %v2020
        %2038 = vmatprep.subr.bf16.mxu0 0
        %2039 = vmatpush1.bf16.msra.mxu0 %v2019
        %2040 = vmatprep.subr.bf16.mxu0 0
        %2041 = vmatpush1.bf16.msra.mxu0 %v2018
        %2042 = vmatprep.subr.bf16.mxu0 0
        %2043 = vmatpush1.bf16.msra.mxu0 %v2017
        %2044 = vmatprep.subr.bf16.mxu0 0
        %2045 = vmatpush2.bf16.msra.mxu0 0
        %2046 = vmatprep.subr.bf16.mxu0 0
        %2047 = vmatpush2.bf16.msra.mxu0 0
        %2048 = vmatprep.subr.bf16.mxu0 0
        %2049 = vmatpush2.bf16.msra.mxu0 0
        %2050 = vmatprep.subr.bf16.mxu0 0
        %2051 = vmatpush2.bf16.msra.mxu0 0
        %2052 = vmatprep.subr.bf16.mxu0 0
        %2053 = vmatpush2.bf16.msra.mxu0 0
        %2054 = vmatprep.subr.bf16.mxu0 0
        %2055 = vmatpush2.bf16.msra.mxu0 0
        %2056 = vmatprep.subr.bf16.mxu0 0
        %2057 = vmatpush2.bf16.msra.mxu0 0
        %2058 = vmatprep.subr.bf16.mxu0 0
        %2059 = vmatpush2.bf16.msra.mxu0 0
        %2060 = vmatprep.mubr.bf16.mxu0 0
        %2061 = vmatmul.mubr.bf16.gmra.mxu0 %v2026
        %v2062 = vpop.f32.mrf.mxu0
        %v2063 = vadd.f32 %v1999, %v2062
        %v2064 = vpop.f32.mrf.mxu0
        %v2065 = vpop.f32.mrf.mxu0
        %v2066 = vpop.f32.mrf.mxu0
        %2067 = vdwg.mxu0
        %v2068 = vadd.f32 %v1683, %v2063
        %s2069 = scalar_lea.vmem [#allocation13], 1
        %v2070 = vld [vmem:[%s2069] sm:$0x1]
        %s2071 = scalar_lea.vmem %s12, 1
        %v2072 = vld [vmem:[%s2071] sm:$0x1]
        %v2073 = vsel %vm978, %v2068, 0.0
        %2074 = vadd.xlane.f32.xlu0 %v2073
        %v2075 = vpop.xlane.xlu0 %2074
        %v2076 = vmul.f32 %v2075, %v1433
        %v2077 = vsub.f32 %v2068, %v2076
        %v2078 = vmul.f32 %v2077, %v2077
        %v2079 = vsel %vm978, %v2078, 0.0
        %2080 = vadd.xlane.f32.xlu0 %v2079
        %v2081 = vpop.xlane.xlu0 %2080
        %v2082 = vmul.f32 %v2081, %v1433
        %v2083 = vadd.f32 %v2082, 1e-05
        %v2084 = vrsqrt.pop %v2083
        %v2085 = vmul.f32 %v2077, %v2084
        %v2087 = vlaneseq
        %v2088 = vshrl.u32 %v2087, 7
        %v2089 = vsub.s32 0, %v2088
        %v2090 = vrot.slane %v2070, %v2089
        %v2092 = vmul.f32 %v2085, %v2090
        %v2094 = vlaneseq
        %v2095 = vshrl.u32 %v2094, 7
        %v2096 = vsub.s32 0, %v2095
        %v2097 = vrot.slane %v2072, %v2096
        %v2099 = vadd.f32 %v2092, %v2097
        %v2100 = vpack.c.bf16 %v2099, %v2099
        %s2101 = scalar_lea.vmem %s13, 32
        %v2102 = vld [vmem:[%s2101] sm:$0xf]
        %v2103 = vld [vmem:[%s2101 + $0x4] sm:$0xf]
        %v2104 = vld [vmem:[%s2101 + $0x8] sm:$0xf]
        %v2105 = vld [vmem:[%s2101 + $0xc] sm:$0xf]
        %v2106 = vld [vmem:[%s2101 + $0x10] sm:$0xf]
        %v2107 = vld [vmem:[%s2101 + $0x14] sm:$0xf]
        %v2108 = vld [vmem:[%s2101 + $0x18] sm:$0xf]
        %v2109 = vld [vmem:[%s2101 + $0x1c] sm:$0xf]
        %s2110 = scalar_lea.vmem [#allocation14], 1
        %v2111 = vld [vmem:[%s2110] sm:$0x1]
        %v2113 = vlaneseq
        %v2114 = vshrl.u32 %v2113, 7
        %v2115 = vsub.s32 0, %v2114
        %v2116 = vrot.slane %v2111, %v2115
        %v2126 = vunpack.c.l.b16 %v2102
        %v2127 = vunpack.c.l.b16 %v2103
        %v2128 = vunpack.c.l.b16 %v2104
        %v2129 = vunpack.c.l.b16 %v2105
        %v2130 = vunpack.c.l.b16 %v2106
        %v2131 = vunpack.c.l.b16 %v2107
        %v2132 = vunpack.c.l.b16 %v2108
        %v2133 = vunpack.c.l.b16 %v2109
        %v2134 = vpack.c.b16 %v2127, %v2126
        %v2135 = vpack.c.b16 %v2129, %v2128
        %v2136 = vpack.c.b16 %v2131, %v2130
        %v2137 = vpack.c.b16 %v2133, %v2132
        %v2143 = vsel %vm978, %v2100, 0
        %2145 = vmatprep.subr.bf16.mxu0 0
        %2146 = vmatpush1.bf16.msra.mxu0 0
        %2147 = vmatprep.subr.bf16.mxu0 0
        %2148 = vmatpush1.bf16.msra.mxu0 0
        %2149 = vmatprep.subr.bf16.mxu0 0
        %2150 = vmatpush1.bf16.msra.mxu0 0
        %2151 = vmatprep.subr.bf16.mxu0 0
        %2152 = vmatpush1.bf16.msra.mxu0 0
        %2153 = vmatprep.subr.bf16.mxu0 0
        %2154 = vmatpush1.bf16.msra.mxu0 %v2137
        %2155 = vmatprep.subr.bf16.mxu0 0
        %2156 = vmatpush1.bf16.msra.mxu0 %v2136
        %2157 = vmatprep.subr.bf16.mxu0 0
        %2158 = vmatpush1.bf16.msra.mxu0 %v2135
        %2159 = vmatprep.subr.bf16.mxu0 0
        %2160 = vmatpush1.bf16.msra.mxu0 %v2134
        %2161 = vmatprep.subr.bf16.mxu0 0
        %2162 = vmatpush2.bf16.msra.mxu0 0
        %2163 = vmatprep.subr.bf16.mxu0 0
        %2164 = vmatpush2.bf16.msra.mxu0 0
        %2165 = vmatprep.subr.bf16.mxu0 0
        %2166 = vmatpush2.bf16.msra.mxu0 0
        %2167 = vmatprep.subr.bf16.mxu0 0
        %2168 = vmatpush2.bf16.msra.mxu0 0
        %2169 = vmatprep.subr.bf16.mxu0 0
        %2170 = vmatpush2.bf16.msra.mxu0 0
        %2171 = vmatprep.subr.bf16.mxu0 0
        %2172 = vmatpush2.bf16.msra.mxu0 0
        %2173 = vmatprep.subr.bf16.mxu0 0
        %2174 = vmatpush2.bf16.msra.mxu0 0
        %2175 = vmatprep.subr.bf16.mxu0 0
        %2176 = vmatpush2.bf16.msra.mxu0 0
        %2177 = vmatprep.mubr.bf16.mxu0 0
        %2178 = vmatmul.mubr.bf16.gmra.mxu0 %v2143
        %v2179 = vpop.f32.mrf.mxu0
        %v2180 = vadd.f32 %v2116, %v2179
        %v2181 = vpop.f32.mrf.mxu0
        %v2182 = vpop.f32.mrf.mxu0
        %v2183 = vpop.f32.mrf.mxu0
        %2184 = vdwg.mxu0
        %v2185 = vmax.f32 %v2180, 0.0
        %v2186 = vpack.c.bf16 %v2185, %v2185
        %s2187 = scalar_lea.vmem %s15, 64
        %v2188 = vld [vmem:[%s2187] sm:$0xf]
        %v2189 = vld [vmem:[%s2187 + $0x4] sm:$0xf]
        %v2190 = vld [vmem:[%s2187 + $0x8] sm:$0xf]
        %v2191 = vld [vmem:[%s2187 + $0xc] sm:$0xf]
        %v2192 = vld [vmem:[%s2187 + $0x10] sm:$0xf]
        %v2193 = vld [vmem:[%s2187 + $0x14] sm:$0xf]
        %v2194 = vld [vmem:[%s2187 + $0x18] sm:$0xf]
        %v2195 = vld [vmem:[%s2187 + $0x1c] sm:$0xf]
        %v2196 = vld [vmem:[%s2187 + $0x20] sm:$0xf]
        %v2197 = vld [vmem:[%s2187 + $0x24] sm:$0xf]
        %v2198 = vld [vmem:[%s2187 + $0x28] sm:$0xf]
        %v2199 = vld [vmem:[%s2187 + $0x2c] sm:$0xf]
        %v2200 = vld [vmem:[%s2187 + $0x30] sm:$0xf]
        %v2201 = vld [vmem:[%s2187 + $0x34] sm:$0xf]
        %v2202 = vld [vmem:[%s2187 + $0x38] sm:$0xf]
        %v2203 = vld [vmem:[%s2187 + $0x3c] sm:$0xf]
        %s2204 = scalar_lea.vmem %s16, 1
        %v2205 = vld [vmem:[%s2204] sm:$0x1]
        %v2207 = vlaneseq
        %v2208 = vshrl.u32 %v2207, 7
        %v2209 = vsub.s32 0, %v2208
        %v2210 = vrot.slane %v2205, %v2209
        %v2228 = vunpack.c.l.b16 %v2188
        %v2229 = vunpack.c.l.b16 %v2189
        %v2230 = vunpack.c.l.b16 %v2190
        %v2231 = vunpack.c.l.b16 %v2191
        %v2232 = vunpack.c.l.b16 %v2192
        %v2233 = vunpack.c.l.b16 %v2193
        %v2234 = vunpack.c.l.b16 %v2194
        %v2235 = vunpack.c.l.b16 %v2195
        %v2236 = vunpack.c.l.b16 %v2196
        %v2237 = vunpack.c.l.b16 %v2197
        %v2238 = vunpack.c.l.b16 %v2198
        %v2239 = vunpack.c.l.b16 %v2199
        %v2240 = vunpack.c.l.b16 %v2200
        %v2241 = vunpack.c.l.b16 %v2201
        %v2242 = vunpack.c.l.b16 %v2202
        %v2243 = vunpack.c.l.b16 %v2203
        %v2244 = vpack.c.b16 %v2229, %v2228
        %v2245 = vpack.c.b16 %v2231, %v2230
        %v2246 = vpack.c.b16 %v2233, %v2232
        %v2247 = vpack.c.b16 %v2235, %v2234
        %v2248 = vpack.c.b16 %v2237, %v2236
        %v2249 = vpack.c.b16 %v2239, %v2238
        %v2250 = vpack.c.b16 %v2241, %v2240
        %v2251 = vpack.c.b16 %v2243, %v2242
        %2260 = vmatprep.subr.bf16.mxu0 0
        %2261 = vmatpush1.bf16.msra.mxu0 %v2251
        %2262 = vmatprep.subr.bf16.mxu0 0
        %2263 = vmatpush1.bf16.msra.mxu0 %v2250
        %2264 = vmatprep.subr.bf16.mxu0 0
        %2265 = vmatpush1.bf16.msra.mxu0 %v2249
        %2266 = vmatprep.subr.bf16.mxu0 0
        %2267 = vmatpush1.bf16.msra.mxu0 %v2248
        %2268 = vmatprep.subr.bf16.mxu0 0
        %2269 = vmatpush1.bf16.msra.mxu0 %v2247
        %2270 = vmatprep.subr.bf16.mxu0 0
        %2271 = vmatpush1.bf16.msra.mxu0 %v2246
        %2272 = vmatprep.subr.bf16.mxu0 0
        %2273 = vmatpush1.bf16.msra.mxu0 %v2245
        %2274 = vmatprep.subr.bf16.mxu0 0
        %2275 = vmatpush1.bf16.msra.mxu0 %v2244
        %2276 = vmatprep.subr.bf16.mxu0 0
        %2277 = vmatpush2.bf16.msra.mxu0 0
        %2278 = vmatprep.subr.bf16.mxu0 0
        %2279 = vmatpush2.bf16.msra.mxu0 0
        %2280 = vmatprep.subr.bf16.mxu0 0
        %2281 = vmatpush2.bf16.msra.mxu0 0
        %2282 = vmatprep.subr.bf16.mxu0 0
        %2283 = vmatpush2.bf16.msra.mxu0 0
        %2284 = vmatprep.subr.bf16.mxu0 0
        %2285 = vmatpush2.bf16.msra.mxu0 0
        %2286 = vmatprep.subr.bf16.mxu0 0
        %2287 = vmatpush2.bf16.msra.mxu0 0
        %2288 = vmatprep.subr.bf16.mxu0 0
        %2289 = vmatpush2.bf16.msra.mxu0 0
        %2290 = vmatprep.subr.bf16.mxu0 0
        %2291 = vmatpush2.bf16.msra.mxu0 0
        %2292 = vmatprep.mubr.bf16.mxu0 0
        %2293 = vmatmul.mubr.bf16.gmra.mxu0 %v2186
        %v2294 = vpop.f32.mrf.mxu0
        %v2295 = vadd.f32 %v2210, %v2294
        %v2296 = vpop.f32.mrf.mxu0
        %v2297 = vpop.f32.mrf.mxu0
        %v2298 = vpop.f32.mrf.mxu0
        %2299 = vdwg.mxu0
        %v2300 = vadd.f32 %v2099, %v2295
        %s2301 = scalar_lea.vmem %s17, 1
        %v2302 = vld [vmem:[%s2301] sm:$0x1]
        %s2303 = scalar_lea.vmem [#allocation16], 1
        %v2304 = vld [vmem:[%s2303] sm:$0x1]
        %v2305 = vsel %vm978, %v2300, 0.0
        %2306 = vadd.xlane.f32.xlu0 %v2305
        %v2307 = vpop.xlane.xlu0 %2306
        %v2308 = vmul.f32 %v2307, %v1433
        %v2309 = vsub.f32 %v2300, %v2308
        %v2310 = vmul.f32 %v2309, %v2309
        %v2311 = vsel %vm978, %v2310, 0.0
        %2312 = vadd.xlane.f32.xlu0 %v2311
        %v2313 = vpop.xlane.xlu0 %2312
        %v2314 = vmul.f32 %v2313, %v1433
        %v2315 = vadd.f32 %v2314, 1e-05
        %v2316 = vrsqrt.pop %v2315
        %v2317 = vmul.f32 %v2309, %v2316
        %v2319 = vlaneseq
        %v2320 = vshrl.u32 %v2319, 7
        %v2321 = vsub.s32 0, %v2320
        %v2322 = vrot.slane %v2302, %v2321
        %v2324 = vmul.f32 %v2317, %v2322
        %v2326 = vlaneseq
        %v2327 = vshrl.u32 %v2326, 7
        %v2328 = vsub.s32 0, %v2327
        %v2329 = vrot.slane %v2304, %v2328
        %v2331 = vadd.f32 %v2324, %v2329
        %v2332 = vpack.c.bf16 %v2331, %v2331
        %s2333 = scalar_lea.vmem %s7, 128
        %v2334 = vld [vmem:[%s2333] sm:$0xff]
        %v2335 = vld [vmem:[%s2333 + $0x8] sm:$0xff]
        %v2336 = vld [vmem:[%s2333 + $0x10] sm:$0xff]
        %v2337 = vld [vmem:[%s2333 + $0x18] sm:$0xff]
        %v2338 = vld [vmem:[%s2333 + $0x20] sm:$0xff]
        %v2339 = vld [vmem:[%s2333 + $0x28] sm:$0xff]
        %v2340 = vld [vmem:[%s2333 + $0x30] sm:$0xff]
        %v2341 = vld [vmem:[%s2333 + $0x38] sm:$0xff]
        %s2342 = scalar_lea.vmem %s8, 4
        %v2343 = vld [vmem:[%s2342] sm:$0x3]
        %v2345 = vlaneseq
        %v2346 = vshrl.u32 %v2345, 7
        %v2347 = vsub.s32 0, %v2346
        %v2348 = vrot.slane %v2343, %v2347
        %v2349 = vlaneseq
        %v2350 = vshrl.u32 %v2349, 7
        %v2351 = vsub.s32 1, %v2350
        %v2352 = vrot.slane %v2343, %v2351
        %v2363 = vunpack.c.l.b16 %v2334
        %v2364 = vunpack.c.h.b16 %v2334
        %v2365 = vunpack.c.l.b16 %v2335
        %v2366 = vunpack.c.h.b16 %v2335
        %v2367 = vunpack.c.l.b16 %v2336
        %v2368 = vunpack.c.h.b16 %v2336
        %v2369 = vunpack.c.l.b16 %v2337
        %v2370 = vunpack.c.h.b16 %v2337
        %v2371 = vunpack.c.l.b16 %v2338
        %v2372 = vunpack.c.h.b16 %v2338
        %v2373 = vunpack.c.l.b16 %v2339
        %v2374 = vunpack.c.h.b16 %v2339
        %v2375 = vunpack.c.l.b16 %v2340
        %v2376 = vunpack.c.h.b16 %v2340
        %v2377 = vunpack.c.l.b16 %v2341
        %v2378 = vunpack.c.h.b16 %v2341
        %v2379 = vpack.c.b16 %v2365, %v2363
        %v2380 = vpack.c.b16 %v2366, %v2364
        %v2381 = vpack.c.b16 %v2369, %v2367
        %v2382 = vpack.c.b16 %v2370, %v2368
        %v2383 = vpack.c.b16 %v2373, %v2371
        %v2384 = vpack.c.b16 %v2374, %v2372
        %v2385 = vpack.c.b16 %v2377, %v2375
        %v2386 = vpack.c.b16 %v2378, %v2376
        %v2396 = vsel %vm978, %v2332, 0
        %2398 = vmatprep.subr.bf16.mxu0 0
        %2399 = vmatpush1.bf16.msra.mxu0 0
        %2400 = vmatprep.subr.bf16.mxu0 0
        %2401 = vmatpush1.bf16.msra.mxu0 0
        %2402 = vmatprep.subr.bf16.mxu0 0
        %2403 = vmatpush1.bf16.msra.mxu0 0
        %2404 = vmatprep.subr.bf16.mxu0 0
        %2405 = vmatpush1.bf16.msra.mxu0 0
        %2406 = vmatprep.subr.bf16.mxu0 %v2386
        %2407 = vmatpush1.bf16.msra.mxu0 %v2385
        %2408 = vmatprep.subr.bf16.mxu0 %v2384
        %2409 = vmatpush1.bf16.msra.mxu0 %v2383
        %2410 = vmatprep.subr.bf16.mxu0 %v2382
        %2411 = vmatpush1.bf16.msra.mxu0 %v2381
        %2412 = vmatprep.subr.bf16.mxu0 %v2380
        %2413 = vmatpush1.bf16.msra.mxu0 %v2379
        %2414 = vmatprep.subr.bf16.mxu0 0
        %2415 = vmatpush2.bf16.msra.mxu0 0
        %2416 = vmatprep.subr.bf16.mxu0 0
        %2417 = vmatpush2.bf16.msra.mxu0 0
        %2418 = vmatprep.subr.bf16.mxu0 0
        %2419 = vmatpush2.bf16.msra.mxu0 0
        %2420 = vmatprep.subr.bf16.mxu0 0
        %2421 = vmatpush2.bf16.msra.mxu0 0
        %2422 = vmatprep.subr.bf16.mxu0 0
        %2423 = vmatpush2.bf16.msra.mxu0 0
        %2424 = vmatprep.subr.bf16.mxu0 0
        %2425 = vmatpush2.bf16.msra.mxu0 0
        %2426 = vmatprep.subr.bf16.mxu0 0
        %2427 = vmatpush2.bf16.msra.mxu0 0
        %2428 = vmatprep.subr.bf16.mxu0 0
        %2429 = vmatpush2.bf16.msra.mxu0 0
        %2430 = vmatprep.mubr.bf16.mxu0 0
        %2431 = vmatmul.mubr.bf16.gmra.mxu0 %v2396
        %v2432 = vpop.f32.mrf.mxu0
        %v2433 = vadd.f32 %v2348, %v2432
        %v2434 = vpop.f32.mrf.mxu0
        %v2435 = vadd.f32 %v2352, %v2434
        %v2436 = vpop.f32.mrf.mxu0
        %v2437 = vpop.f32.mrf.mxu0
        %2438 = vdwg.mxu0
        %v2439 = vmul.f32 %v2433, 0.25
        %v2440 = vmul.f32 %v2433, %v1141
        %v2441 = vmul.f32 %v2433, %v1143
        %v2442 = vmul.f32 %v2433, %v1145
        %v2443 = vmul.f32 %v2433, %v1147
        %2448 = vrot.lane.b32.xlu0 %v2440, 64
        %v2449 = vpop.permute.xlu0 %2448
        %2450 = vrot.lane.b32.xlu0 %v2441, 64
        %v2451 = vpop.permute.xlu0 %2450
        %2452 = vrot.lane.b32.xlu0 %v2442, 64
        %v2453 = vpop.permute.xlu0 %2452
        %2454 = vrot.lane.b32.xlu0 %v2443, 64
        %v2455 = vpop.permute.xlu0 %2454
        %v2457 = vsel %vm978, %v2439, 0
        %v2459 = vsel %vm978, %v2449, 0
        %v2461 = vsel %vm978, %v2451, 0
        %v2463 = vsel %vm978, %v2453, 0
        %v2465 = vsel %vm978, %v2455, 0
        %2467 = vmatprep.subr.mxu0 0.0
        %2468 = vmatpush1.xpose.msra.mxu0 0.0
        %2469 = vmatprep.subr.mxu0 0.0
        %2470 = vmatpush1.xpose.msra.mxu0 0.0
        %2471 = vmatprep.subr.mxu0 0.0
        %2472 = vmatpush1.xpose.msra.mxu0 0.0
        %2473 = vmatprep.subr.mxu0 0.0
        %2474 = vmatpush1.xpose.msra.mxu0 0.0
        %2475 = vmatprep.subr.mxu0 0.0
        %2476 = vmatpush1.xpose.msra.mxu0 0.0
        %2477 = vmatprep.subr.mxu0 0.0
        %2478 = vmatpush1.xpose.msra.mxu0 0.0
        %2479 = vmatprep.subr.mxu0 0.0
        %2480 = vmatpush1.xpose.msra.mxu0 0.0
        %2481 = vmatprep.subr.mxu0 0.0
        %2482 = vmatpush1.xpose.msra.mxu0 0.0
        %2483 = vmatprep.subr.mxu0 0.0
        %2484 = vmatpush1.xpose.msra.mxu0 0.0
        %2485 = vmatprep.subr.mxu0 0.0
        %2486 = vmatpush1.xpose.msra.mxu0 0.0
        %2487 = vmatprep.subr.mxu0 0.0
        %2488 = vmatpush1.xpose.msra.mxu0 0.0
        %2489 = vmatprep.subr.mxu0 0.0
        %2490 = vmatpush1.xpose.msra.mxu0 0.0
        %2491 = vmatprep.subr.mxu0 0.0
        %2492 = vmatpush1.xpose.msra.mxu0 %v2465
        %2493 = vmatprep.subr.mxu0 0.0
        %2494 = vmatpush1.xpose.msra.mxu0 %v2463
        %2495 = vmatprep.subr.mxu0 0.0
        %2496 = vmatpush1.xpose.msra.mxu0 %v2461
        %2497 = vmatprep.subr.mxu0 0.0
        %2498 = vmatpush1.xpose.msra.mxu0 %v2459
        %2499 = vmatprep.subr.mxu0 0.0
        %2500 = vmatpush2.xpose.msra.mxu0 0.0
        %2501 = vmatprep.subr.mxu0 0.0
        %2502 = vmatpush2.xpose.msra.mxu0 0.0
        %2503 = vmatprep.subr.mxu0 0.0
        %2504 = vmatpush2.xpose.msra.mxu0 0.0
        %2505 = vmatprep.subr.mxu0 0.0
        %2506 = vmatpush2.xpose.msra.mxu0 0.0
        %2507 = vmatprep.subr.mxu0 0.0
        %2508 = vmatpush2.xpose.msra.mxu0 0.0
        %2509 = vmatprep.subr.mxu0 0.0
        %2510 = vmatpush2.xpose.msra.mxu0 0.0
        %2511 = vmatprep.subr.mxu0 0.0
        %2512 = vmatpush2.xpose.msra.mxu0 0.0
        %2513 = vmatprep.subr.mxu0 0.0
        %2514 = vmatpush2.xpose.msra.mxu0 0.0
        %2515 = vmatprep.subr.mxu0 0.0
        %2516 = vmatpush2.xpose.msra.mxu0 0.0
        %2517 = vmatprep.subr.mxu0 0.0
        %2518 = vmatpush2.xpose.msra.mxu0 0.0
        %2519 = vmatprep.subr.mxu0 0.0
        %2520 = vmatpush2.xpose.msra.mxu0 0.0
        %2521 = vmatprep.subr.mxu0 0.0
        %2522 = vmatpush2.xpose.msra.mxu0 0.0
        %2523 = vmatprep.subr.mxu0 0.0
        %2524 = vmatpush2.xpose.msra.mxu0 0.0
        %2525 = vmatprep.subr.mxu0 0.0
        %2526 = vmatpush2.xpose.msra.mxu0 0.0
        %2527 = vmatprep.subr.mxu0 0.0
        %2528 = vmatpush2.xpose.msra.mxu0 0.0
        %2529 = vmatprep.subr.mxu0 0.0
        %2530 = vmatpush2.xpose.msra.mxu0 0.0
        %2531 = vmatprep.mubr.f32.mxu0 0.0
        %2532 = vmatmul.mubr.f32.gmra.mxu0 %v2457
        %v2533 = vpop.f32.mrf.mxu0
        %v2534 = vadd.f32 %v1025, %v2533
        %v2535 = vpop.f32.mrf.mxu0
        %2536 = vdwg.mxu0
        %v2537 = vsel %vm1249, %v2534, -inf
        %2538 = vmax.xlane.f32.xlu0 %v2537
        %v2539 = vpop.xlane.xlu0 %2538
        %v2540 = vsub.f32 %v2534, %v2539
        %v2541 = vmul.f32 %v2540, 1.442695
        %v2542 = vpow.pop %v2541
        %v2543 = vmul.f32 %v2435, %v1026
        %v2544 = vmul.f32 %v2435, %v1027
        %v2545 = vmul.f32 %v2435, %v1028
        %v2546 = vmul.f32 %v2435, %v1029
        %v2547 = vsel %vm978, %v2543, %v1141
        %v2548 = vsel %vm978, %v2544, %v1143
        %v2549 = vsel %vm978, %v2545, %v1145
        %v2550 = vsel %vm978, %v2546, %v1147
        %v2552 = vsel %vm1249, %v2542, 0
        %2554 = vmatprep.subr.mxu0 0.0
        %2555 = vmatpush1.msra.mxu0 0.0
        %2556 = vmatprep.subr.mxu0 0.0
        %2557 = vmatpush1.msra.mxu0 0.0
        %2558 = vmatprep.subr.mxu0 0.0
        %2559 = vmatpush1.msra.mxu0 0.0
        %2560 = vmatprep.subr.mxu0 0.0
        %2561 = vmatpush1.msra.mxu0 0.0
        %2562 = vmatprep.subr.mxu0 0.0
        %2563 = vmatpush1.msra.mxu0 0.0
        %2564 = vmatprep.subr.mxu0 0.0
        %2565 = vmatpush1.msra.mxu0 0.0
        %2566 = vmatprep.subr.mxu0 0.0
        %2567 = vmatpush1.msra.mxu0 0.0
        %2568 = vmatprep.subr.mxu0 0.0
        %2569 = vmatpush1.msra.mxu0 0.0
        %2570 = vmatprep.subr.mxu0 0.0
        %2571 = vmatpush1.msra.mxu0 0.0
        %2572 = vmatprep.subr.mxu0 0.0
        %2573 = vmatpush1.msra.mxu0 0.0
        %2574 = vmatprep.subr.mxu0 0.0
        %2575 = vmatpush1.msra.mxu0 0.0
        %2576 = vmatprep.subr.mxu0 0.0
        %2577 = vmatpush1.msra.mxu0 0.0
        %2578 = vmatprep.subr.mxu0 0.0
        %2579 = vmatpush1.msra.mxu0 %v2550
        %2580 = vmatprep.subr.mxu0 0.0
        %2581 = vmatpush1.msra.mxu0 %v2549
        %2582 = vmatprep.subr.mxu0 0.0
        %2583 = vmatpush1.msra.mxu0 %v2548
        %2584 = vmatprep.subr.mxu0 0.0
        %2585 = vmatpush1.msra.mxu0 %v2547
        %2586 = vmatprep.subr.mxu0 0.0
        %2587 = vmatpush2.msra.mxu0 0.0
        %2588 = vmatprep.subr.mxu0 0.0
        %2589 = vmatpush2.msra.mxu0 0.0
        %2590 = vmatprep.subr.mxu0 0.0
        %2591 = vmatpush2.msra.mxu0 0.0
        %2592 = vmatprep.subr.mxu0 0.0
        %2593 = vmatpush2.msra.mxu0 0.0
        %2594 = vmatprep.subr.mxu0 0.0
        %2595 = vmatpush2.msra.mxu0 0.0
        %2596 = vmatprep.subr.mxu0 0.0
        %2597 = vmatpush2.msra.mxu0 0.0
        %2598 = vmatprep.subr.mxu0 0.0
        %2599 = vmatpush2.msra.mxu0 0.0
        %2600 = vmatprep.subr.mxu0 0.0
        %2601 = vmatpush2.msra.mxu0 0.0
        %2602 = vmatprep.subr.mxu0 0.0
        %2603 = vmatpush2.msra.mxu0 0.0
        %2604 = vmatprep.subr.mxu0 0.0
        %2605 = vmatpush2.msra.mxu0 0.0
        %2606 = vmatprep.subr.mxu0 0.0
        %2607 = vmatpush2.msra.mxu0 0.0
        %2608 = vmatprep.subr.mxu0 0.0
        %2609 = vmatpush2.msra.mxu0 0.0
        %2610 = vmatprep.subr.mxu0 0.0
        %2611 = vmatpush2.msra.mxu0 0.0
        %2612 = vmatprep.subr.mxu0 0.0
        %2613 = vmatpush2.msra.mxu0 0.0
        %2614 = vmatprep.subr.mxu0 0.0
        %2615 = vmatpush2.msra.mxu0 0.0
        %2616 = vmatprep.subr.mxu0 0.0
        %2617 = vmatpush2.msra.mxu0 0.0
        %2618 = vmatprep.mubr.f32.mxu0 0.0
        %2619 = vmatmul.mubr.f32.gmra.mxu0 %v2552
        %v2620 = vpop.f32.mrf.mxu0
        %v2621 = vadd.f32 0.0, %v2620
        %v2622 = vpop.f32.mrf.mxu0
        %2623 = vdwg.mxu0
        %v2624 = vadd.f32 %v2621, 1e-30
        %v2625 = vrcp.pop %v2624
        %2627 = vrot.lane.b32.xlu0 %v2625, 64
        %v2628 = vpop.permute.xlu0 %2627
        %v2630 = vmul.f32 %v2621, %v2628
        %v2631 = vpack.c.bf16 %v2630, %v2630
        %s2632 = scalar_lea.vmem %s9, 64
        %v2633 = vld [vmem:[%s2632] sm:$0xf]
        %v2634 = vld [vmem:[%s2632 + $0x4] sm:$0xf]
        %v2635 = vld [vmem:[%s2632 + $0x8] sm:$0xf]
        %v2636 = vld [vmem:[%s2632 + $0xc] sm:$0xf]
        %v2637 = vld [vmem:[%s2632 + $0x10] sm:$0xf]
        %v2638 = vld [vmem:[%s2632 + $0x14] sm:$0xf]
        %v2639 = vld [vmem:[%s2632 + $0x18] sm:$0xf]
        %v2640 = vld [vmem:[%s2632 + $0x1c] sm:$0xf]
        %s2641 = scalar_lea.vmem [#allocation11], 2
        %v2642 = vld [vmem:[%s2641] sm:$0x1]
        %v2644 = vlaneseq
        %v2645 = vshrl.u32 %v2644, 7
        %v2646 = vsub.s32 0, %v2645
        %v2647 = vrot.slane %v2642, %v2646
        %v2657 = vunpack.c.l.b16 %v2633
        %v2658 = vunpack.c.l.b16 %v2634
        %v2659 = vunpack.c.l.b16 %v2635
        %v2660 = vunpack.c.l.b16 %v2636
        %v2661 = vunpack.c.l.b16 %v2637
        %v2662 = vunpack.c.l.b16 %v2638
        %v2663 = vunpack.c.l.b16 %v2639
        %v2664 = vunpack.c.l.b16 %v2640
        %v2665 = vpack.c.b16 %v2658, %v2657
        %v2666 = vpack.c.b16 %v2660, %v2659
        %v2667 = vpack.c.b16 %v2662, %v2661
        %v2668 = vpack.c.b16 %v2664, %v2663
        %v2674 = vsel %vm978, %v2631, 0
        %2676 = vmatprep.subr.bf16.mxu0 0
        %2677 = vmatpush1.bf16.msra.mxu0 0
        %2678 = vmatprep.subr.bf16.mxu0 0
        %2679 = vmatpush1.bf16.msra.mxu0 0
        %2680 = vmatprep.subr.bf16.mxu0 0
        %2681 = vmatpush1.bf16.msra.mxu0 0
        %2682 = vmatprep.subr.bf16.mxu0 0
        %2683 = vmatpush1.bf16.msra.mxu0 0
        %2684 = vmatprep.subr.bf16.mxu0 0
        %2685 = vmatpush1.bf16.msra.mxu0 %v2668
        %2686 = vmatprep.subr.bf16.mxu0 0
        %2687 = vmatpush1.bf16.msra.mxu0 %v2667
        %2688 = vmatprep.subr.bf16.mxu0 0
        %2689 = vmatpush1.bf16.msra.mxu0 %v2666
        %2690 = vmatprep.subr.bf16.mxu0 0
        %2691 = vmatpush1.bf16.msra.mxu0 %v2665
        %2692 = vmatprep.subr.bf16.mxu0 0
        %2693 = vmatpush2.bf16.msra.mxu0 0
        %2694 = vmatprep.subr.bf16.mxu0 0
        %2695 = vmatpush2.bf16.msra.mxu0 0
        %2696 = vmatprep.subr.bf16.mxu0 0
        %2697 = vmatpush2.bf16.msra.mxu0 0
        %2698 = vmatprep.subr.bf16.mxu0 0
        %2699 = vmatpush2.bf16.msra.mxu0 0
        %2700 = vmatprep.subr.bf16.mxu0 0
        %2701 = vmatpush2.bf16.msra.mxu0 0
        %2702 = vmatprep.subr.bf16.mxu0 0
        %2703 = vmatpush2.bf16.msra.mxu0 0
        %2704 = vmatprep.subr.bf16.mxu0 0
        %2705 = vmatpush2.bf16.msra.mxu0 0
        %2706 = vmatprep.subr.bf16.mxu0 0
        %2707 = vmatpush2.bf16.msra.mxu0 0
        %2708 = vmatprep.mubr.bf16.mxu0 0
        %2709 = vmatmul.mubr.bf16.gmra.mxu0 %v2674
        %v2710 = vpop.f32.mrf.mxu0
        %v2711 = vadd.f32 %v2647, %v2710
        %v2712 = vpop.f32.mrf.mxu0
        %v2713 = vpop.f32.mrf.mxu0
        %v2714 = vpop.f32.mrf.mxu0
        %2715 = vdwg.mxu0
        %v2716 = vadd.f32 %v2331, %v2711
        %s2717 = scalar_lea.vmem [#allocation13], 2
        %v2718 = vld [vmem:[%s2717] sm:$0x1]
        %s2719 = scalar_lea.vmem %s12, 2
        %v2720 = vld [vmem:[%s2719] sm:$0x1]
        %v2721 = vsel %vm978, %v2716, 0.0
        %2722 = vadd.xlane.f32.xlu0 %v2721
        %v2723 = vpop.xlane.xlu0 %2722
        %v2724 = vmul.f32 %v2723, %v1433
        %v2725 = vsub.f32 %v2716, %v2724
        %v2726 = vmul.f32 %v2725, %v2725
        %v2727 = vsel %vm978, %v2726, 0.0
        %2728 = vadd.xlane.f32.xlu0 %v2727
        %v2729 = vpop.xlane.xlu0 %2728
        %v2730 = vmul.f32 %v2729, %v1433
        %v2731 = vadd.f32 %v2730, 1e-05
        %v2732 = vrsqrt.pop %v2731
        %v2733 = vmul.f32 %v2725, %v2732
        %v2735 = vlaneseq
        %v2736 = vshrl.u32 %v2735, 7
        %v2737 = vsub.s32 0, %v2736
        %v2738 = vrot.slane %v2718, %v2737
        %v2740 = vmul.f32 %v2733, %v2738
        %v2742 = vlaneseq
        %v2743 = vshrl.u32 %v2742, 7
        %v2744 = vsub.s32 0, %v2743
        %v2745 = vrot.slane %v2720, %v2744
        %v2747 = vadd.f32 %v2740, %v2745
        %v2748 = vpack.c.bf16 %v2747, %v2747
        %s2749 = scalar_lea.vmem %s13, 64
        %v2750 = vld [vmem:[%s2749] sm:$0xf]
        %v2751 = vld [vmem:[%s2749 + $0x4] sm:$0xf]
        %v2752 = vld [vmem:[%s2749 + $0x8] sm:$0xf]
        %v2753 = vld [vmem:[%s2749 + $0xc] sm:$0xf]
        %v2754 = vld [vmem:[%s2749 + $0x10] sm:$0xf]
        %v2755 = vld [vmem:[%s2749 + $0x14] sm:$0xf]
        %v2756 = vld [vmem:[%s2749 + $0x18] sm:$0xf]
        %v2757 = vld [vmem:[%s2749 + $0x1c] sm:$0xf]
        %s2758 = scalar_lea.vmem [#allocation14], 2
        %v2759 = vld [vmem:[%s2758] sm:$0x1]
        %v2761 = vlaneseq
        %v2762 = vshrl.u32 %v2761, 7
        %v2763 = vsub.s32 0, %v2762
        %v2764 = vrot.slane %v2759, %v2763
        %v2774 = vunpack.c.l.b16 %v2750
        %v2775 = vunpack.c.l.b16 %v2751
        %v2776 = vunpack.c.l.b16 %v2752
        %v2777 = vunpack.c.l.b16 %v2753
        %v2778 = vunpack.c.l.b16 %v2754
        %v2779 = vunpack.c.l.b16 %v2755
        %v2780 = vunpack.c.l.b16 %v2756
        %v2781 = vunpack.c.l.b16 %v2757
        %v2782 = vpack.c.b16 %v2775, %v2774
        %v2783 = vpack.c.b16 %v2777, %v2776
        %v2784 = vpack.c.b16 %v2779, %v2778
        %v2785 = vpack.c.b16 %v2781, %v2780
        %v2791 = vsel %vm978, %v2748, 0
        %2793 = vmatprep.subr.bf16.mxu0 0
        %2794 = vmatpush1.bf16.msra.mxu0 0
        %2795 = vmatprep.subr.bf16.mxu0 0
        %2796 = vmatpush1.bf16.msra.mxu0 0
        %2797 = vmatprep.subr.bf16.mxu0 0
        %2798 = vmatpush1.bf16.msra.mxu0 0
        %2799 = vmatprep.subr.bf16.mxu0 0
        %2800 = vmatpush1.bf16.msra.mxu0 0
        %2801 = vmatprep.subr.bf16.mxu0 0
        %2802 = vmatpush1.bf16.msra.mxu0 %v2785
        %2803 = vmatprep.subr.bf16.mxu0 0
        %2804 = vmatpush1.bf16.msra.mxu0 %v2784
        %2805 = vmatprep.subr.bf16.mxu0 0
        %2806 = vmatpush1.bf16.msra.mxu0 %v2783
        %2807 = vmatprep.subr.bf16.mxu0 0
        %2808 = vmatpush1.bf16.msra.mxu0 %v2782
        %2809 = vmatprep.subr.bf16.mxu0 0
        %2810 = vmatpush2.bf16.msra.mxu0 0
        %2811 = vmatprep.subr.bf16.mxu0 0
        %2812 = vmatpush2.bf16.msra.mxu0 0
        %2813 = vmatprep.subr.bf16.mxu0 0
        %2814 = vmatpush2.bf16.msra.mxu0 0
        %2815 = vmatprep.subr.bf16.mxu0 0
        %2816 = vmatpush2.bf16.msra.mxu0 0
        %2817 = vmatprep.subr.bf16.mxu0 0
        %2818 = vmatpush2.bf16.msra.mxu0 0
        %2819 = vmatprep.subr.bf16.mxu0 0
        %2820 = vmatpush2.bf16.msra.mxu0 0
        %2821 = vmatprep.subr.bf16.mxu0 0
        %2822 = vmatpush2.bf16.msra.mxu0 0
        %2823 = vmatprep.subr.bf16.mxu0 0
        %2824 = vmatpush2.bf16.msra.mxu0 0
        %2825 = vmatprep.mubr.bf16.mxu0 0
        %2826 = vmatmul.mubr.bf16.gmra.mxu0 %v2791
        %v2827 = vpop.f32.mrf.mxu0
        %v2828 = vadd.f32 %v2764, %v2827
        %v2829 = vpop.f32.mrf.mxu0
        %v2830 = vpop.f32.mrf.mxu0
        %v2831 = vpop.f32.mrf.mxu0
        %2832 = vdwg.mxu0
        %v2833 = vmax.f32 %v2828, 0.0
        %v2834 = vpack.c.bf16 %v2833, %v2833
        %s2835 = scalar_lea.vmem %s15, 128
        %v2836 = vld [vmem:[%s2835] sm:$0xf]
        %v2837 = vld [vmem:[%s2835 + $0x4] sm:$0xf]
        %v2838 = vld [vmem:[%s2835 + $0x8] sm:$0xf]
        %v2839 = vld [vmem:[%s2835 + $0xc] sm:$0xf]
        %v2840 = vld [vmem:[%s2835 + $0x10] sm:$0xf]
        %v2841 = vld [vmem:[%s2835 + $0x14] sm:$0xf]
        %v2842 = vld [vmem:[%s2835 + $0x18] sm:$0xf]
        %v2843 = vld [vmem:[%s2835 + $0x1c] sm:$0xf]
        %v2844 = vld [vmem:[%s2835 + $0x20] sm:$0xf]
        %v2845 = vld [vmem:[%s2835 + $0x24] sm:$0xf]
        %v2846 = vld [vmem:[%s2835 + $0x28] sm:$0xf]
        %v2847 = vld [vmem:[%s2835 + $0x2c] sm:$0xf]
        %v2848 = vld [vmem:[%s2835 + $0x30] sm:$0xf]
        %v2849 = vld [vmem:[%s2835 + $0x34] sm:$0xf]
        %v2850 = vld [vmem:[%s2835 + $0x38] sm:$0xf]
        %v2851 = vld [vmem:[%s2835 + $0x3c] sm:$0xf]
        %s2852 = scalar_lea.vmem %s16, 2
        %v2853 = vld [vmem:[%s2852] sm:$0x1]
        %v2855 = vlaneseq
        %v2856 = vshrl.u32 %v2855, 7
        %v2857 = vsub.s32 0, %v2856
        %v2858 = vrot.slane %v2853, %v2857
        %v2876 = vunpack.c.l.b16 %v2836
        %v2877 = vunpack.c.l.b16 %v2837
        %v2878 = vunpack.c.l.b16 %v2838
        %v2879 = vunpack.c.l.b16 %v2839
        %v2880 = vunpack.c.l.b16 %v2840
        %v2881 = vunpack.c.l.b16 %v2841
        %v2882 = vunpack.c.l.b16 %v2842
        %v2883 = vunpack.c.l.b16 %v2843
        %v2884 = vunpack.c.l.b16 %v2844
        %v2885 = vunpack.c.l.b16 %v2845
        %v2886 = vunpack.c.l.b16 %v2846
        %v2887 = vunpack.c.l.b16 %v2847
        %v2888 = vunpack.c.l.b16 %v2848
        %v2889 = vunpack.c.l.b16 %v2849
        %v2890 = vunpack.c.l.b16 %v2850
        %v2891 = vunpack.c.l.b16 %v2851
        %v2892 = vpack.c.b16 %v2877, %v2876
        %v2893 = vpack.c.b16 %v2879, %v2878
        %v2894 = vpack.c.b16 %v2881, %v2880
        %v2895 = vpack.c.b16 %v2883, %v2882
        %v2896 = vpack.c.b16 %v2885, %v2884
        %v2897 = vpack.c.b16 %v2887, %v2886
        %v2898 = vpack.c.b16 %v2889, %v2888
        %v2899 = vpack.c.b16 %v2891, %v2890
        %2908 = vmatprep.subr.bf16.mxu0 0
        %2909 = vmatpush1.bf16.msra.mxu0 %v2899
        %2910 = vmatprep.subr.bf16.mxu0 0
        %2911 = vmatpush1.bf16.msra.mxu0 %v2898
        %2912 = vmatprep.subr.bf16.mxu0 0
        %2913 = vmatpush1.bf16.msra.mxu0 %v2897
        %2914 = vmatprep.subr.bf16.mxu0 0
        %2915 = vmatpush1.bf16.msra.mxu0 %v2896
        %2916 = vmatprep.subr.bf16.mxu0 0
        %2917 = vmatpush1.bf16.msra.mxu0 %v2895
        %2918 = vmatprep.subr.bf16.mxu0 0
        %2919 = vmatpush1.bf16.msra.mxu0 %v2894
        %2920 = vmatprep.subr.bf16.mxu0 0
        %2921 = vmatpush1.bf16.msra.mxu0 %v2893
        %2922 = vmatprep.subr.bf16.mxu0 0
        %2923 = vmatpush1.bf16.msra.mxu0 %v2892
        %2924 = vmatprep.subr.bf16.mxu0 0
        %2925 = vmatpush2.bf16.msra.mxu0 0
        %2926 = vmatprep.subr.bf16.mxu0 0
        %2927 = vmatpush2.bf16.msra.mxu0 0
        %2928 = vmatprep.subr.bf16.mxu0 0
        %2929 = vmatpush2.bf16.msra.mxu0 0
        %2930 = vmatprep.subr.bf16.mxu0 0
        %2931 = vmatpush2.bf16.msra.mxu0 0
        %2932 = vmatprep.subr.bf16.mxu0 0
        %2933 = vmatpush2.bf16.msra.mxu0 0
        %2934 = vmatprep.subr.bf16.mxu0 0
        %2935 = vmatpush2.bf16.msra.mxu0 0
        %2936 = vmatprep.subr.bf16.mxu0 0
        %2937 = vmatpush2.bf16.msra.mxu0 0
        %2938 = vmatprep.subr.bf16.mxu0 0
        %2939 = vmatpush2.bf16.msra.mxu0 0
        %2940 = vmatprep.mubr.bf16.mxu0 0
        %2941 = vmatmul.mubr.bf16.gmra.mxu0 %v2834
        %v2942 = vpop.f32.mrf.mxu0
        %v2943 = vadd.f32 %v2858, %v2942
        %v2944 = vpop.f32.mrf.mxu0
        %v2945 = vpop.f32.mrf.mxu0
        %v2946 = vpop.f32.mrf.mxu0
        %2947 = vdwg.mxu0
        %v2948 = vadd.f32 %v2747, %v2943
        %s2949 = scalar_lea.vmem %s17, 2
        %v2950 = vld [vmem:[%s2949] sm:$0x1]
        %s2951 = scalar_lea.vmem [#allocation16], 2
        %v2952 = vld [vmem:[%s2951] sm:$0x1]
        %v2953 = vsel %vm978, %v2948, 0.0
        %2954 = vadd.xlane.f32.xlu0 %v2953
        %v2955 = vpop.xlane.xlu0 %2954
        %v2956 = vmul.f32 %v2955, %v1433
        %v2957 = vsub.f32 %v2948, %v2956
        %v2958 = vmul.f32 %v2957, %v2957
        %v2959 = vsel %vm978, %v2958, 0.0
        %2960 = vadd.xlane.f32.xlu0 %v2959
        %v2961 = vpop.xlane.xlu0 %2960
        %v2962 = vmul.f32 %v2961, %v1433
        %v2963 = vadd.f32 %v2962, 1e-05
        %v2964 = vrsqrt.pop %v2963
        %v2965 = vmul.f32 %v2957, %v2964
        %v2967 = vlaneseq
        %v2968 = vshrl.u32 %v2967, 7
        %v2969 = vsub.s32 0, %v2968
        %v2970 = vrot.slane %v2950, %v2969
        %v2972 = vmul.f32 %v2965, %v2970
        %v2974 = vlaneseq
        %v2975 = vshrl.u32 %v2974, 7
        %v2976 = vsub.s32 0, %v2975
        %v2977 = vrot.slane %v2952, %v2976
        %v2979 = vadd.f32 %v2972, %v2977
        %v2980 = vpack.c.bf16 %v2979, %v2979
        %s2981 = scalar_lea.vmem %s7, 192
        %v2982 = vld [vmem:[%s2981] sm:$0xff]
        %v2983 = vld [vmem:[%s2981 + $0x8] sm:$0xff]
        %v2984 = vld [vmem:[%s2981 + $0x10] sm:$0xff]
        %v2985 = vld [vmem:[%s2981 + $0x18] sm:$0xff]
        %v2986 = vld [vmem:[%s2981 + $0x20] sm:$0xff]
        %v2987 = vld [vmem:[%s2981 + $0x28] sm:$0xff]
        %v2988 = vld [vmem:[%s2981 + $0x30] sm:$0xff]
        %v2989 = vld [vmem:[%s2981 + $0x38] sm:$0xff]
        %s2990 = scalar_lea.vmem %s8, 6
        %v2991 = vld [vmem:[%s2990] sm:$0x3]
        %v2993 = vlaneseq
        %v2994 = vshrl.u32 %v2993, 7
        %v2995 = vsub.s32 0, %v2994
        %v2996 = vrot.slane %v2991, %v2995
        %v2997 = vlaneseq
        %v2998 = vshrl.u32 %v2997, 7
        %v2999 = vsub.s32 1, %v2998
        %v3000 = vrot.slane %v2991, %v2999
        %v3011 = vunpack.c.l.b16 %v2982
        %v3012 = vunpack.c.h.b16 %v2982
        %v3013 = vunpack.c.l.b16 %v2983
        %v3014 = vunpack.c.h.b16 %v2983
        %v3015 = vunpack.c.l.b16 %v2984
        %v3016 = vunpack.c.h.b16 %v2984
        %v3017 = vunpack.c.l.b16 %v2985
        %v3018 = vunpack.c.h.b16 %v2985
        %v3019 = vunpack.c.l.b16 %v2986
        %v3020 = vunpack.c.h.b16 %v2986
        %v3021 = vunpack.c.l.b16 %v2987
        %v3022 = vunpack.c.h.b16 %v2987
        %v3023 = vunpack.c.l.b16 %v2988
        %v3024 = vunpack.c.h.b16 %v2988
        %v3025 = vunpack.c.l.b16 %v2989
        %v3026 = vunpack.c.h.b16 %v2989
        %v3027 = vpack.c.b16 %v3013, %v3011
        %v3028 = vpack.c.b16 %v3014, %v3012
        %v3029 = vpack.c.b16 %v3017, %v3015
        %v3030 = vpack.c.b16 %v3018, %v3016
        %v3031 = vpack.c.b16 %v3021, %v3019
        %v3032 = vpack.c.b16 %v3022, %v3020
        %v3033 = vpack.c.b16 %v3025, %v3023
        %v3034 = vpack.c.b16 %v3026, %v3024
        %v3044 = vsel %vm978, %v2980, 0
        %3046 = vmatprep.subr.bf16.mxu0 0
        %3047 = vmatpush1.bf16.msra.mxu0 0
        %3048 = vmatprep.subr.bf16.mxu0 0
        %3049 = vmatpush1.bf16.msra.mxu0 0
        %3050 = vmatprep.subr.bf16.mxu0 0
        %3051 = vmatpush1.bf16.msra.mxu0 0
        %3052 = vmatprep.subr.bf16.mxu0 0
        %3053 = vmatpush1.bf16.msra.mxu0 0
        %3054 = vmatprep.subr.bf16.mxu0 %v3034
        %3055 = vmatpush1.bf16.msra.mxu0 %v3033
        %3056 = vmatprep.subr.bf16.mxu0 %v3032
        %3057 = vmatpush1.bf16.msra.mxu0 %v3031
        %3058 = vmatprep.subr.bf16.mxu0 %v3030
        %3059 = vmatpush1.bf16.msra.mxu0 %v3029
        %3060 = vmatprep.subr.bf16.mxu0 %v3028
        %3061 = vmatpush1.bf16.msra.mxu0 %v3027
        %3062 = vmatprep.subr.bf16.mxu0 0
        %3063 = vmatpush2.bf16.msra.mxu0 0
        %3064 = vmatprep.subr.bf16.mxu0 0
        %3065 = vmatpush2.bf16.msra.mxu0 0
        %3066 = vmatprep.subr.bf16.mxu0 0
        %3067 = vmatpush2.bf16.msra.mxu0 0
        %3068 = vmatprep.subr.bf16.mxu0 0
        %3069 = vmatpush2.bf16.msra.mxu0 0
        %3070 = vmatprep.subr.bf16.mxu0 0
        %3071 = vmatpush2.bf16.msra.mxu0 0
        %3072 = vmatprep.subr.bf16.mxu0 0
        %3073 = vmatpush2.bf16.msra.mxu0 0
        %3074 = vmatprep.subr.bf16.mxu0 0
        %3075 = vmatpush2.bf16.msra.mxu0 0
        %3076 = vmatprep.subr.bf16.mxu0 0
        %3077 = vmatpush2.bf16.msra.mxu0 0
        %3078 = vmatprep.mubr.bf16.mxu0 0
        %3079 = vmatmul.mubr.bf16.gmra.mxu0 %v3044
        %v3080 = vpop.f32.mrf.mxu0
        %v3081 = vadd.f32 %v2996, %v3080
        %v3082 = vpop.f32.mrf.mxu0
        %v3083 = vadd.f32 %v3000, %v3082
        %v3084 = vpop.f32.mrf.mxu0
        %v3085 = vpop.f32.mrf.mxu0
        %3086 = vdwg.mxu0
        %v3087 = vmul.f32 %v3081, 0.25
        %v3088 = vmul.f32 %v3081, %v1141
        %v3089 = vmul.f32 %v3081, %v1143
        %v3090 = vmul.f32 %v3081, %v1145
        %v3091 = vmul.f32 %v3081, %v1147
        %3096 = vrot.lane.b32.xlu0 %v3088, 64
        %v3097 = vpop.permute.xlu0 %3096
        %3098 = vrot.lane.b32.xlu0 %v3089, 64
        %v3099 = vpop.permute.xlu0 %3098
        %3100 = vrot.lane.b32.xlu0 %v3090, 64
        %v3101 = vpop.permute.xlu0 %3100
        %3102 = vrot.lane.b32.xlu0 %v3091, 64
        %v3103 = vpop.permute.xlu0 %3102
        %v3105 = vsel %vm978, %v3087, 0
        %v3107 = vsel %vm978, %v3097, 0
        %v3109 = vsel %vm978, %v3099, 0
        %v3111 = vsel %vm978, %v3101, 0
        %v3113 = vsel %vm978, %v3103, 0
        %3115 = vmatprep.subr.mxu0 0.0
        %3116 = vmatpush1.xpose.msra.mxu0 0.0
        %3117 = vmatprep.subr.mxu0 0.0
        %3118 = vmatpush1.xpose.msra.mxu0 0.0
        %3119 = vmatprep.subr.mxu0 0.0
        %3120 = vmatpush1.xpose.msra.mxu0 0.0
        %3121 = vmatprep.subr.mxu0 0.0
        %3122 = vmatpush1.xpose.msra.mxu0 0.0
        %3123 = vmatprep.subr.mxu0 0.0
        %3124 = vmatpush1.xpose.msra.mxu0 0.0
        %3125 = vmatprep.subr.mxu0 0.0
        %3126 = vmatpush1.xpose.msra.mxu0 0.0
        %3127 = vmatprep.subr.mxu0 0.0
        %3128 = vmatpush1.xpose.msra.mxu0 0.0
        %3129 = vmatprep.subr.mxu0 0.0
        %3130 = vmatpush1.xpose.msra.mxu0 0.0
        %3131 = vmatprep.subr.mxu0 0.0
        %3132 = vmatpush1.xpose.msra.mxu0 0.0
        %3133 = vmatprep.subr.mxu0 0.0
        %3134 = vmatpush1.xpose.msra.mxu0 0.0
        %3135 = vmatprep.subr.mxu0 0.0
        %3136 = vmatpush1.xpose.msra.mxu0 0.0
        %3137 = vmatprep.subr.mxu0 0.0
        %3138 = vmatpush1.xpose.msra.mxu0 0.0
        %3139 = vmatprep.subr.mxu0 0.0
        %3140 = vmatpush1.xpose.msra.mxu0 %v3113
        %3141 = vmatprep.subr.mxu0 0.0
        %3142 = vmatpush1.xpose.msra.mxu0 %v3111
        %3143 = vmatprep.subr.mxu0 0.0
        %3144 = vmatpush1.xpose.msra.mxu0 %v3109
        %3145 = vmatprep.subr.mxu0 0.0
        %3146 = vmatpush1.xpose.msra.mxu0 %v3107
        %3147 = vmatprep.subr.mxu0 0.0
        %3148 = vmatpush2.xpose.msra.mxu0 0.0
        %3149 = vmatprep.subr.mxu0 0.0
        %3150 = vmatpush2.xpose.msra.mxu0 0.0
        %3151 = vmatprep.subr.mxu0 0.0
        %3152 = vmatpush2.xpose.msra.mxu0 0.0
        %3153 = vmatprep.subr.mxu0 0.0
        %3154 = vmatpush2.xpose.msra.mxu0 0.0
        %3155 = vmatprep.subr.mxu0 0.0
        %3156 = vmatpush2.xpose.msra.mxu0 0.0
        %3157 = vmatprep.subr.mxu0 0.0
        %3158 = vmatpush2.xpose.msra.mxu0 0.0
        %3159 = vmatprep.subr.mxu0 0.0
        %3160 = vmatpush2.xpose.msra.mxu0 0.0
        %3161 = vmatprep.subr.mxu0 0.0
        %3162 = vmatpush2.xpose.msra.mxu0 0.0
        %3163 = vmatprep.subr.mxu0 0.0
        %3164 = vmatpush2.xpose.msra.mxu0 0.0
        %3165 = vmatprep.subr.mxu0 0.0
        %3166 = vmatpush2.xpose.msra.mxu0 0.0
        %3167 = vmatprep.subr.mxu0 0.0
        %3168 = vmatpush2.xpose.msra.mxu0 0.0
        %3169 = vmatprep.subr.mxu0 0.0
        %3170 = vmatpush2.xpose.msra.mxu0 0.0
        %3171 = vmatprep.subr.mxu0 0.0
        %3172 = vmatpush2.xpose.msra.mxu0 0.0
        %3173 = vmatprep.subr.mxu0 0.0
        %3174 = vmatpush2.xpose.msra.mxu0 0.0
        %3175 = vmatprep.subr.mxu0 0.0
        %3176 = vmatpush2.xpose.msra.mxu0 0.0
        %3177 = vmatprep.subr.mxu0 0.0
        %3178 = vmatpush2.xpose.msra.mxu0 0.0
        %3179 = vmatprep.mubr.f32.mxu0 0.0
        %3180 = vmatmul.mubr.f32.gmra.mxu0 %v3105
        %v3181 = vpop.f32.mrf.mxu0
        %v3182 = vadd.f32 %v1025, %v3181
        %v3183 = vpop.f32.mrf.mxu0
        %3184 = vdwg.mxu0
        %v3185 = vsel %vm1249, %v3182, -inf
        %3186 = vmax.xlane.f32.xlu0 %v3185
        %v3187 = vpop.xlane.xlu0 %3186
        %v3188 = vsub.f32 %v3182, %v3187
        %v3189 = vmul.f32 %v3188, 1.442695
        %v3190 = vpow.pop %v3189
        %v3191 = vmul.f32 %v3083, %v1026
        %v3192 = vmul.f32 %v3083, %v1027
        %v3193 = vmul.f32 %v3083, %v1028
        %v3194 = vmul.f32 %v3083, %v1029
        %v3195 = vsel %vm978, %v3191, %v1141
        %v3196 = vsel %vm978, %v3192, %v1143
        %v3197 = vsel %vm978, %v3193, %v1145
        %v3198 = vsel %vm978, %v3194, %v1147
        %v3200 = vsel %vm1249, %v3190, 0
        %3202 = vmatprep.subr.mxu0 0.0
        %3203 = vmatpush1.msra.mxu0 0.0
        %3204 = vmatprep.subr.mxu0 0.0
        %3205 = vmatpush1.msra.mxu0 0.0
        %3206 = vmatprep.subr.mxu0 0.0
        %3207 = vmatpush1.msra.mxu0 0.0
        %3208 = vmatprep.subr.mxu0 0.0
        %3209 = vmatpush1.msra.mxu0 0.0
        %3210 = vmatprep.subr.mxu0 0.0
        %3211 = vmatpush1.msra.mxu0 0.0
        %3212 = vmatprep.subr.mxu0 0.0
        %3213 = vmatpush1.msra.mxu0 0.0
        %3214 = vmatprep.subr.mxu0 0.0
        %3215 = vmatpush1.msra.mxu0 0.0
        %3216 = vmatprep.subr.mxu0 0.0
        %3217 = vmatpush1.msra.mxu0 0.0
        %3218 = vmatprep.subr.mxu0 0.0
        %3219 = vmatpush1.msra.mxu0 0.0
        %3220 = vmatprep.subr.mxu0 0.0
        %3221 = vmatpush1.msra.mxu0 0.0
        %3222 = vmatprep.subr.mxu0 0.0
        %3223 = vmatpush1.msra.mxu0 0.0
        %3224 = vmatprep.subr.mxu0 0.0
        %3225 = vmatpush1.msra.mxu0 0.0
        %3226 = vmatprep.subr.mxu0 0.0
        %3227 = vmatpush1.msra.mxu0 %v3198
        %3228 = vmatprep.subr.mxu0 0.0
        %3229 = vmatpush1.msra.mxu0 %v3197
        %3230 = vmatprep.subr.mxu0 0.0
        %3231 = vmatpush1.msra.mxu0 %v3196
        %3232 = vmatprep.subr.mxu0 0.0
        %3233 = vmatpush1.msra.mxu0 %v3195
        %3234 = vmatprep.subr.mxu0 0.0
        %3235 = vmatpush2.msra.mxu0 0.0
        %3236 = vmatprep.subr.mxu0 0.0
        %3237 = vmatpush2.msra.mxu0 0.0
        %3238 = vmatprep.subr.mxu0 0.0
        %3239 = vmatpush2.msra.mxu0 0.0
        %3240 = vmatprep.subr.mxu0 0.0
        %3241 = vmatpush2.msra.mxu0 0.0
        %3242 = vmatprep.subr.mxu0 0.0
        %3243 = vmatpush2.msra.mxu0 0.0
        %3244 = vmatprep.subr.mxu0 0.0
        %3245 = vmatpush2.msra.mxu0 0.0
        %3246 = vmatprep.subr.mxu0 0.0
        %3247 = vmatpush2.msra.mxu0 0.0
        %3248 = vmatprep.subr.mxu0 0.0
        %3249 = vmatpush2.msra.mxu0 0.0
        %3250 = vmatprep.subr.mxu0 0.0
        %3251 = vmatpush2.msra.mxu0 0.0
        %3252 = vmatprep.subr.mxu0 0.0
        %3253 = vmatpush2.msra.mxu0 0.0
        %3254 = vmatprep.subr.mxu0 0.0
        %3255 = vmatpush2.msra.mxu0 0.0
        %3256 = vmatprep.subr.mxu0 0.0
        %3257 = vmatpush2.msra.mxu0 0.0
        %3258 = vmatprep.subr.mxu0 0.0
        %3259 = vmatpush2.msra.mxu0 0.0
        %3260 = vmatprep.subr.mxu0 0.0
        %3261 = vmatpush2.msra.mxu0 0.0
        %3262 = vmatprep.subr.mxu0 0.0
        %3263 = vmatpush2.msra.mxu0 0.0
        %3264 = vmatprep.subr.mxu0 0.0
        %3265 = vmatpush2.msra.mxu0 0.0
        %3266 = vmatprep.mubr.f32.mxu0 0.0
        %3267 = vmatmul.mubr.f32.gmra.mxu0 %v3200
        %v3268 = vpop.f32.mrf.mxu0
        %v3269 = vadd.f32 0.0, %v3268
        %v3270 = vpop.f32.mrf.mxu0
        %3271 = vdwg.mxu0
        %v3272 = vadd.f32 %v3269, 1e-30
        %v3273 = vrcp.pop %v3272
        %3275 = vrot.lane.b32.xlu0 %v3273, 64
        %v3276 = vpop.permute.xlu0 %3275
        %v3278 = vmul.f32 %v3269, %v3276
        %v3279 = vpack.c.bf16 %v3278, %v3278
        %s3280 = scalar_lea.vmem %s9, 96
        %v3281 = vld [vmem:[%s3280] sm:$0xf]
        %v3282 = vld [vmem:[%s3280 + $0x4] sm:$0xf]
        %v3283 = vld [vmem:[%s3280 + $0x8] sm:$0xf]
        %v3284 = vld [vmem:[%s3280 + $0xc] sm:$0xf]
        %v3285 = vld [vmem:[%s3280 + $0x10] sm:$0xf]
        %v3286 = vld [vmem:[%s3280 + $0x14] sm:$0xf]
        %v3287 = vld [vmem:[%s3280 + $0x18] sm:$0xf]
        %v3288 = vld [vmem:[%s3280 + $0x1c] sm:$0xf]
        %s3289 = scalar_lea.vmem [#allocation11], 3
        %v3290 = vld [vmem:[%s3289] sm:$0x1]
        %v3292 = vlaneseq
        %v3293 = vshrl.u32 %v3292, 7
        %v3294 = vsub.s32 0, %v3293
        %v3295 = vrot.slane %v3290, %v3294
        %v3305 = vunpack.c.l.b16 %v3281
        %v3306 = vunpack.c.l.b16 %v3282
        %v3307 = vunpack.c.l.b16 %v3283
        %v3308 = vunpack.c.l.b16 %v3284
        %v3309 = vunpack.c.l.b16 %v3285
        %v3310 = vunpack.c.l.b16 %v3286
        %v3311 = vunpack.c.l.b16 %v3287
        %v3312 = vunpack.c.l.b16 %v3288
        %v3313 = vpack.c.b16 %v3306, %v3305
        %v3314 = vpack.c.b16 %v3308, %v3307
        %v3315 = vpack.c.b16 %v3310, %v3309
        %v3316 = vpack.c.b16 %v3312, %v3311
        %v3322 = vsel %vm978, %v3279, 0
        %3324 = vmatprep.subr.bf16.mxu0 0
        %3325 = vmatpush1.bf16.msra.mxu0 0
        %3326 = vmatprep.subr.bf16.mxu0 0
        %3327 = vmatpush1.bf16.msra.mxu0 0
        %3328 = vmatprep.subr.bf16.mxu0 0
        %3329 = vmatpush1.bf16.msra.mxu0 0
        %3330 = vmatprep.subr.bf16.mxu0 0
        %3331 = vmatpush1.bf16.msra.mxu0 0
        %3332 = vmatprep.subr.bf16.mxu0 0
        %3333 = vmatpush1.bf16.msra.mxu0 %v3316
        %3334 = vmatprep.subr.bf16.mxu0 0
        %3335 = vmatpush1.bf16.msra.mxu0 %v3315
        %3336 = vmatprep.subr.bf16.mxu0 0
        %3337 = vmatpush1.bf16.msra.mxu0 %v3314
        %3338 = vmatprep.subr.bf16.mxu0 0
        %3339 = vmatpush1.bf16.msra.mxu0 %v3313
        %3340 = vmatprep.subr.bf16.mxu0 0
        %3341 = vmatpush2.bf16.msra.mxu0 0
        %3342 = vmatprep.subr.bf16.mxu0 0
        %3343 = vmatpush2.bf16.msra.mxu0 0
        %3344 = vmatprep.subr.bf16.mxu0 0
        %3345 = vmatpush2.bf16.msra.mxu0 0
        %3346 = vmatprep.subr.bf16.mxu0 0
        %3347 = vmatpush2.bf16.msra.mxu0 0
        %3348 = vmatprep.subr.bf16.mxu0 0
        %3349 = vmatpush2.bf16.msra.mxu0 0
        %3350 = vmatprep.subr.bf16.mxu0 0
        %3351 = vmatpush2.bf16.msra.mxu0 0
        %3352 = vmatprep.subr.bf16.mxu0 0
        %3353 = vmatpush2.bf16.msra.mxu0 0
        %3354 = vmatprep.subr.bf16.mxu0 0
        %3355 = vmatpush2.bf16.msra.mxu0 0
        %3356 = vmatprep.mubr.bf16.mxu0 0
        %3357 = vmatmul.mubr.bf16.gmra.mxu0 %v3322
        %v3358 = vpop.f32.mrf.mxu0
        %v3359 = vadd.f32 %v3295, %v3358
        %v3360 = vpop.f32.mrf.mxu0
        %v3361 = vpop.f32.mrf.mxu0
        %v3362 = vpop.f32.mrf.mxu0
        %3363 = vdwg.mxu0
        %v3364 = vadd.f32 %v2979, %v3359
        %s3365 = scalar_lea.vmem [#allocation13], 3
        %v3366 = vld [vmem:[%s3365] sm:$0x1]
        %s3367 = scalar_lea.vmem %s12, 3
        %v3368 = vld [vmem:[%s3367] sm:$0x1]
        %v3369 = vsel %vm978, %v3364, 0.0
        %3370 = vadd.xlane.f32.xlu0 %v3369
        %v3371 = vpop.xlane.xlu0 %3370
        %v3372 = vmul.f32 %v3371, %v1433
        %v3373 = vsub.f32 %v3364, %v3372
        %v3374 = vmul.f32 %v3373, %v3373
        %v3375 = vsel %vm978, %v3374, 0.0
        %3376 = vadd.xlane.f32.xlu0 %v3375
        %v3377 = vpop.xlane.xlu0 %3376
        %v3378 = vmul.f32 %v3377, %v1433
        %v3379 = vadd.f32 %v3378, 1e-05
        %v3380 = vrsqrt.pop %v3379
        %v3381 = vmul.f32 %v3373, %v3380
        %v3383 = vlaneseq
        %v3384 = vshrl.u32 %v3383, 7
        %v3385 = vsub.s32 0, %v3384
        %v3386 = vrot.slane %v3366, %v3385
        %v3388 = vmul.f32 %v3381, %v3386
        %v3390 = vlaneseq
        %v3391 = vshrl.u32 %v3390, 7
        %v3392 = vsub.s32 0, %v3391
        %v3393 = vrot.slane %v3368, %v3392
        %v3395 = vadd.f32 %v3388, %v3393
        %v3396 = vpack.c.bf16 %v3395, %v3395
        %s3397 = scalar_lea.vmem %s13, 96
        %v3398 = vld [vmem:[%s3397] sm:$0xf]
        %v3399 = vld [vmem:[%s3397 + $0x4] sm:$0xf]
        %v3400 = vld [vmem:[%s3397 + $0x8] sm:$0xf]
        %v3401 = vld [vmem:[%s3397 + $0xc] sm:$0xf]
        %v3402 = vld [vmem:[%s3397 + $0x10] sm:$0xf]
        %v3403 = vld [vmem:[%s3397 + $0x14] sm:$0xf]
        %v3404 = vld [vmem:[%s3397 + $0x18] sm:$0xf]
        %v3405 = vld [vmem:[%s3397 + $0x1c] sm:$0xf]
        %s3406 = scalar_lea.vmem [#allocation14], 3
        %v3407 = vld [vmem:[%s3406] sm:$0x1]
        %v3409 = vlaneseq
        %v3410 = vshrl.u32 %v3409, 7
        %v3411 = vsub.s32 0, %v3410
        %v3412 = vrot.slane %v3407, %v3411
        %v3422 = vunpack.c.l.b16 %v3398
        %v3423 = vunpack.c.l.b16 %v3399
        %v3424 = vunpack.c.l.b16 %v3400
        %v3425 = vunpack.c.l.b16 %v3401
        %v3426 = vunpack.c.l.b16 %v3402
        %v3427 = vunpack.c.l.b16 %v3403
        %v3428 = vunpack.c.l.b16 %v3404
        %v3429 = vunpack.c.l.b16 %v3405
        %v3430 = vpack.c.b16 %v3423, %v3422
        %v3431 = vpack.c.b16 %v3425, %v3424
        %v3432 = vpack.c.b16 %v3427, %v3426
        %v3433 = vpack.c.b16 %v3429, %v3428
        %v3439 = vsel %vm978, %v3396, 0
        %3441 = vmatprep.subr.bf16.mxu0 0
        %3442 = vmatpush1.bf16.msra.mxu0 0
        %3443 = vmatprep.subr.bf16.mxu0 0
        %3444 = vmatpush1.bf16.msra.mxu0 0
        %3445 = vmatprep.subr.bf16.mxu0 0
        %3446 = vmatpush1.bf16.msra.mxu0 0
        %3447 = vmatprep.subr.bf16.mxu0 0
        %3448 = vmatpush1.bf16.msra.mxu0 0
        %3449 = vmatprep.subr.bf16.mxu0 0
        %3450 = vmatpush1.bf16.msra.mxu0 %v3433
        %3451 = vmatprep.subr.bf16.mxu0 0
        %3452 = vmatpush1.bf16.msra.mxu0 %v3432
        %3453 = vmatprep.subr.bf16.mxu0 0
        %3454 = vmatpush1.bf16.msra.mxu0 %v3431
        %3455 = vmatprep.subr.bf16.mxu0 0
        %3456 = vmatpush1.bf16.msra.mxu0 %v3430
        %3457 = vmatprep.subr.bf16.mxu0 0
        %3458 = vmatpush2.bf16.msra.mxu0 0
        %3459 = vmatprep.subr.bf16.mxu0 0
        %3460 = vmatpush2.bf16.msra.mxu0 0
        %3461 = vmatprep.subr.bf16.mxu0 0
        %3462 = vmatpush2.bf16.msra.mxu0 0
        %3463 = vmatprep.subr.bf16.mxu0 0
        %3464 = vmatpush2.bf16.msra.mxu0 0
        %3465 = vmatprep.subr.bf16.mxu0 0
        %3466 = vmatpush2.bf16.msra.mxu0 0
        %3467 = vmatprep.subr.bf16.mxu0 0
        %3468 = vmatpush2.bf16.msra.mxu0 0
        %3469 = vmatprep.subr.bf16.mxu0 0
        %3470 = vmatpush2.bf16.msra.mxu0 0
        %3471 = vmatprep.subr.bf16.mxu0 0
        %3472 = vmatpush2.bf16.msra.mxu0 0
        %3473 = vmatprep.mubr.bf16.mxu0 0
        %3474 = vmatmul.mubr.bf16.gmra.mxu0 %v3439
        %v3475 = vpop.f32.mrf.mxu0
        %v3476 = vadd.f32 %v3412, %v3475
        %v3477 = vpop.f32.mrf.mxu0
        %v3478 = vpop.f32.mrf.mxu0
        %v3479 = vpop.f32.mrf.mxu0
        %3480 = vdwg.mxu0
        %v3481 = vmax.f32 %v3476, 0.0
        %v3482 = vpack.c.bf16 %v3481, %v3481
        %s3483 = scalar_lea.vmem %s15, 192
        %v3484 = vld [vmem:[%s3483] sm:$0xf]
        %v3485 = vld [vmem:[%s3483 + $0x4] sm:$0xf]
        %v3486 = vld [vmem:[%s3483 + $0x8] sm:$0xf]
        %v3487 = vld [vmem:[%s3483 + $0xc] sm:$0xf]
        %v3488 = vld [vmem:[%s3483 + $0x10] sm:$0xf]
        %v3489 = vld [vmem:[%s3483 + $0x14] sm:$0xf]
        %v3490 = vld [vmem:[%s3483 + $0x18] sm:$0xf]
        %v3491 = vld [vmem:[%s3483 + $0x1c] sm:$0xf]
        %v3492 = vld [vmem:[%s3483 + $0x20] sm:$0xf]
        %v3493 = vld [vmem:[%s3483 + $0x24] sm:$0xf]
        %v3494 = vld [vmem:[%s3483 + $0x28] sm:$0xf]
        %v3495 = vld [vmem:[%s3483 + $0x2c] sm:$0xf]
        %v3496 = vld [vmem:[%s3483 + $0x30] sm:$0xf]
        %v3497 = vld [vmem:[%s3483 + $0x34] sm:$0xf]
        %v3498 = vld [vmem:[%s3483 + $0x38] sm:$0xf]
        %v3499 = vld [vmem:[%s3483 + $0x3c] sm:$0xf]
        %s3500 = scalar_lea.vmem %s16, 3
        %v3501 = vld [vmem:[%s3500] sm:$0x1]
        %v3503 = vlaneseq
        %v3504 = vshrl.u32 %v3503, 7
        %v3505 = vsub.s32 0, %v3504
        %v3506 = vrot.slane %v3501, %v3505
        %v3524 = vunpack.c.l.b16 %v3484
        %v3525 = vunpack.c.l.b16 %v3485
        %v3526 = vunpack.c.l.b16 %v3486
        %v3527 = vunpack.c.l.b16 %v3487
        %v3528 = vunpack.c.l.b16 %v3488
        %v3529 = vunpack.c.l.b16 %v3489
        %v3530 = vunpack.c.l.b16 %v3490
        %v3531 = vunpack.c.l.b16 %v3491
        %v3532 = vunpack.c.l.b16 %v3492
        %v3533 = vunpack.c.l.b16 %v3493
        %v3534 = vunpack.c.l.b16 %v3494
        %v3535 = vunpack.c.l.b16 %v3495
        %v3536 = vunpack.c.l.b16 %v3496
        %v3537 = vunpack.c.l.b16 %v3497
        %v3538 = vunpack.c.l.b16 %v3498
        %v3539 = vunpack.c.l.b16 %v3499
        %v3540 = vpack.c.b16 %v3525, %v3524
        %v3541 = vpack.c.b16 %v3527, %v3526
        %v3542 = vpack.c.b16 %v3529, %v3528
        %v3543 = vpack.c.b16 %v3531, %v3530
        %v3544 = vpack.c.b16 %v3533, %v3532
        %v3545 = vpack.c.b16 %v3535, %v3534
        %v3546 = vpack.c.b16 %v3537, %v3536
        %v3547 = vpack.c.b16 %v3539, %v3538
        %3556 = vmatprep.subr.bf16.mxu0 0
        %3557 = vmatpush1.bf16.msra.mxu0 %v3547
        %3558 = vmatprep.subr.bf16.mxu0 0
        %3559 = vmatpush1.bf16.msra.mxu0 %v3546
        %3560 = vmatprep.subr.bf16.mxu0 0
        %3561 = vmatpush1.bf16.msra.mxu0 %v3545
        %3562 = vmatprep.subr.bf16.mxu0 0
        %3563 = vmatpush1.bf16.msra.mxu0 %v3544
        %3564 = vmatprep.subr.bf16.mxu0 0
        %3565 = vmatpush1.bf16.msra.mxu0 %v3543
        %3566 = vmatprep.subr.bf16.mxu0 0
        %3567 = vmatpush1.bf16.msra.mxu0 %v3542
        %3568 = vmatprep.subr.bf16.mxu0 0
        %3569 = vmatpush1.bf16.msra.mxu0 %v3541
        %3570 = vmatprep.subr.bf16.mxu0 0
        %3571 = vmatpush1.bf16.msra.mxu0 %v3540
        %3572 = vmatprep.subr.bf16.mxu0 0
        %3573 = vmatpush2.bf16.msra.mxu0 0
        %3574 = vmatprep.subr.bf16.mxu0 0
        %3575 = vmatpush2.bf16.msra.mxu0 0
        %3576 = vmatprep.subr.bf16.mxu0 0
        %3577 = vmatpush2.bf16.msra.mxu0 0
        %3578 = vmatprep.subr.bf16.mxu0 0
        %3579 = vmatpush2.bf16.msra.mxu0 0
        %3580 = vmatprep.subr.bf16.mxu0 0
        %3581 = vmatpush2.bf16.msra.mxu0 0
        %3582 = vmatprep.subr.bf16.mxu0 0
        %3583 = vmatpush2.bf16.msra.mxu0 0
        %3584 = vmatprep.subr.bf16.mxu0 0
        %3585 = vmatpush2.bf16.msra.mxu0 0
        %3586 = vmatprep.subr.bf16.mxu0 0
        %3587 = vmatpush2.bf16.msra.mxu0 0
        %3588 = vmatprep.mubr.bf16.mxu0 0
        %3589 = vmatmul.mubr.bf16.gmra.mxu0 %v3482
        %v3590 = vpop.f32.mrf.mxu0
        %v3591 = vadd.f32 %v3506, %v3590
        %v3592 = vpop.f32.mrf.mxu0
        %v3593 = vpop.f32.mrf.mxu0
        %v3594 = vpop.f32.mrf.mxu0
        %3595 = vdwg.mxu0
        %v3596 = vadd.f32 %v3395, %v3591
        %s3597 = scalar_lea.vmem %s17, 3
        %v3598 = vld [vmem:[%s3597] sm:$0x1]
        %s3599 = scalar_lea.vmem [#allocation16], 3
        %v3600 = vld [vmem:[%s3599] sm:$0x1]
        %v3601 = vsel %vm978, %v3596, 0.0
        %3602 = vadd.xlane.f32.xlu0 %v3601
        %v3603 = vpop.xlane.xlu0 %3602
        %v3604 = vmul.f32 %v3603, %v1433
        %v3605 = vsub.f32 %v3596, %v3604
        %v3606 = vmul.f32 %v3605, %v3605
        %v3607 = vsel %vm978, %v3606, 0.0
        %3608 = vadd.xlane.f32.xlu0 %v3607
        %v3609 = vpop.xlane.xlu0 %3608
        %v3610 = vmul.f32 %v3609, %v1433
        %v3611 = vadd.f32 %v3610, 1e-05
        %v3612 = vrsqrt.pop %v3611
        %v3613 = vmul.f32 %v3605, %v3612
        %v3615 = vlaneseq
        %v3616 = vshrl.u32 %v3615, 7
        %v3617 = vsub.s32 0, %v3616
        %v3618 = vrot.slane %v3598, %v3617
        %v3620 = vmul.f32 %v3613, %v3618
        %v3622 = vlaneseq
        %v3623 = vshrl.u32 %v3622, 7
        %v3624 = vsub.s32 0, %v3623
        %v3625 = vrot.slane %v3600, %v3624
        %v3627 = vadd.f32 %v3620, %v3625
        %v3629 = vrot.slane %v3627, 3
        %vm3631 = vcmask 1040384
        %v3632 = vsel %vm3631, %v3627, %v3629
        %vm3633 = vcmask 517120
        %3634 = vst.msk [vmem:[%s745] sm:$0x3] %vm3633, %v3632
        %s3635 = sand.u32 %s457, 1
        %s3636 = scalar_lea.sflag [#allocation4], %s3635
        %s3637 = sand.u32 %s457, 1
        %s3638 = smul.addr %s3637, 2
        %s3639 = scalar_lea.vmem [#allocation17], %s3638
        // Predicated region
        $region133: #{tpu_custom_call.1} parent=95 // pred_check
          %p3640 = pneg %p467
        $region134: #{tpu_custom_call.1} parent=95 // pred_check_branch
          %3642 = sbr.rel (%p3640) target = $region136
        $region135: #{tpu_custom_call.1} parent=95 // pred_region
          %s3644 = ssub.s32 32, 32
          %3645 = vsyncadd %s3636, %s3644
          %s3646 = smul.addr %s40, 32
          %s3647 = scalar_lea.hbm %s19, %s3646
          %s3649 = sshll.u32 %s3639, 4
          %s3650 = int_to_ptr.vmem [resolvable:$true] %s3649
          %3652 = dma.vmem_to_hbm [thread:$0]  %s3650, 32, %s3647, %s3636
        $region136: #{tpu_custom_call.1} parent=95 // pred_fallthru
          _
      $region96: #{tpu_custom_call.1} parent=5 // pred_fallthru
        _
      %p3653 = scmp.le.s32.totalorder 2, %s35
      // Predicated region
      $region137: #{tpu_custom_call.1} parent=5 // pred_check
        %p3654 = pneg %p3653
      $region138: #{tpu_custom_call.1} parent=5 // pred_check_branch
        %3656 = sbr.rel (%p3654) target = $region140
      $region139: #{tpu_custom_call.1} parent=5 // pred_region
        %s3657 = ssub.s32 %s35, 2
        // Predicated region
        $region141: #{tpu_custom_call.1} parent=139 // pred_check
          %p3658 = pneg %p473
        $region142: #{tpu_custom_call.1} parent=139 // pred_check_branch
          %3660 = sbr.rel (%p3658) target = $region144
        $region143: #{tpu_custom_call.1} parent=139 // pred_region
          %s3661 = sand.u32 %s458, 1
          %s3662 = scalar_lea.sflag [#allocation4], %s3661
          %s3663 = sand.u32 %s458, 1
          %s3664 = smul.addr %s3663, 2
          %s3665 = scalar_lea.vmem [#allocation17], %s3664
          %3666 = dma.done %s3662, 32
        $region144: #{tpu_custom_call.1} parent=139 // pred_fallthru
          _
      $region140: #{tpu_custom_call.1} parent=5 // pred_fallthru
        _
    $region6: #{tpu_custom_call.1} parent=1 // loop_footer
      %s39 = sadd.s32 1, %s35
    $region7: #{tpu_custom_call.1} parent=1 // loop_footer_branch
      %34 = sbr.rel target = $region3
    $region8: #{tpu_custom_call.1} parent=1 // loop_exit
      _
    %3667 = vsyncpa [#allocation3], 1
    %s3668 = scalar_lea.sflag [#allocation3], 1
    %3669 = vsyncpa %s3668, 1
    %3670 = vsyncpa [#allocation6], 1
    %3671 = vsyncpa [#allocation9], 1
    %3672 = vsyncpa [#allocation12], 1
    %3673 = vsyncpa [#allocation15], 1
    %3674 = vsyncpa [#allocation4], 1
    %s3675 = scalar_lea.sflag [#allocation4], 1
    %3676 = vsyncpa %s3675, 1

</llo_original>
